<compile_context>
chip_gen: v7x
topology: tpu7x:2x2x1
jax: 0.10.0
libtpu: 0.0.40
codegen_flags: <defaults>
</compile_context>

<pallas_src>
import functools
import math

import jax
import jax.numpy as jnp
from jax.experimental import pallas as pl
from jax.experimental.pallas import tpu as pltpu


# ----------------------------------------------------------------------------
# Pallas kernel: fused (C_out, K) @ (K, tm) GEMM + bias + activation
# ----------------------------------------------------------------------------
def _mm_bias_act_kernel(w_ref, x_ref, b_ref, o_ref, *, act):
    acc = jnp.dot(w_ref[...], x_ref[...], preferred_element_type=jnp.float32)
    acc = acc + b_ref[...]          # (C_out, 1) broadcasts along the lane (M) axis
    if act == "relu":
        acc = jnp.maximum(acc, 0.0)
    elif act == "sigmoid":
        acc = jax.nn.sigmoid(acc)
    o_ref[...] = acc.astype(o_ref.dtype)


def matmul_bias_act(wmat, cols, bias, act, out_dtype, *, tm=512):
    """wmat: (C_out, K) bf16, cols: (K, M) bf16, bias: (C_out, 1) f32 -> (C_out, M)."""
    Cout, K = wmat.shape
    K2, M = cols.shape
    assert K == K2
    # Tile the lane-dense M axis when it divides cleanly; otherwise take it whole
    # (small M blocks are allowed because they equal the full array dim).
    tile_m = tm if (M % tm == 0) else M
    kernel = functools.partial(_mm_bias_act_kernel, act=act)
    return pl.pallas_call(
        kernel,
        out_shape=jax.ShapeDtypeStruct((Cout, M), out_dtype),
        grid=(M // tile_m,),
        in_specs=[
            pl.BlockSpec((Cout, K), lambda i: (0, 0)),       # weights: resident
            pl.BlockSpec((K, tile_m), lambda i: (0, i)),     # pixel tile
            pl.BlockSpec((Cout, 1), lambda i: (0, 0)),       # bias column
        ],
        out_specs=pl.BlockSpec((Cout, tile_m), lambda i: (0, i)),
        compiler_params=pltpu.CompilerParams(
            dimension_semantics=("parallel",)),              # megacore splits M tiles
    )(wmat, cols, bias)


# ----------------------------------------------------------------------------
# Conv2d (stride 2, k=4, pad 1) via im2col + Pallas GEMM, channel-major layout
# ----------------------------------------------------------------------------
def conv2d_gemm(x, wmat, bias, *, act, out_dtype, stride=2, pad=1, k=4):
    """x: (C_in, N, H, W); wmat: (C_out, C_in*k*k); bias: (C_out, 1)."""
    Cin, N, H, W = x.shape
    Cout = wmat.shape[0]
    assert wmat.shape[1] == Cin * k * k
    Ho = (H + 2 * pad - k) // stride + 1
    Wo = (W + 2 * pad - k) // stride + 1
    xp = jnp.pad(x, ((0, 0), (0, 0), (pad, pad), (pad, pad)))
    patches = [
        xp[:, :, i:i + stride * Ho:stride, j:j + stride * Wo:stride]
        for i in range(k) for j in range(k)
    ]
    # (Cin, k*k, N, Ho, Wo) -> (K, M) with K ordered (ci, i, j) to match wmat.
    cols = jnp.stack(patches, axis=1).reshape(Cin * k * k, N * Ho * Wo)
    out = matmul_bias_act(wmat, cols.astype(jnp.bfloat16), bias, act, out_dtype)
    return out.reshape(Cout, N, Ho, Wo)


# ----------------------------------------------------------------------------
# ConvTranspose2d (stride 2, k=4, pad 1, output_padding 0) via sub-pixel GEMM
# ----------------------------------------------------------------------------
# For output parity p (0/1) the contributing kernel taps are, in order of
# increasing input coordinate: parity 0 -> (ky=3, ky=1); parity 1 -> (ky=2, ky=0).
_KY = ((3, 1), (2, 0))


def conv_transpose2d_gemm(x, wmat, bias, *, act, out_dtype):
    """x: (C_in, N, H, W); wmat: (4*C_out, C_in*9); bias: (4*C_out, 1).

    Output: (C_out, N, 2H, 2W).  All four output parities are produced by a
    single GEMM over a 3x3 stride-1 im2col of the (once-)padded input, then
    pixel-shuffled into place — no zero-dilated intermediate.
    """
    Cin, N, H, W = x.shape
    Cout = wmat.shape[0] // 4
    assert wmat.shape[1] == Cin * 9
    xp = jnp.pad(x, ((0, 0), (0, 0), (1, 1), (1, 1)))
    patches = [xp[:, :, dy:dy + H, dx:dx + W] for dy in range(3) for dx in range(3)]
    cols = jnp.stack(patches, axis=1).reshape(Cin * 9, N * H * W)
    out = matmul_bias_act(wmat, cols.astype(jnp.bfloat16), bias, act, out_dtype)
    # pixel-shuffle: (py, px, C_out, N, H, W) -> (C_out, N, 2H, 2W)
    out = out.reshape(2, 2, Cout, N, H, W)
    out = out.transpose(2, 3, 4, 0, 5, 1).reshape(Cout, N, 2 * H, 2 * W)
    return out


# ----------------------------------------------------------------------------
# Parameter init (deterministic, PyTorch-default-style uniform)
# ----------------------------------------------------------------------------
def _init_conv(key, cout, cin, k):
    bound = 1.0 / math.sqrt(cin * k * k)
    kw_, kb_ = jax.random.split(key)
    w = jax.random.uniform(kw_, (cout, cin, k, k), jnp.float32, -bound, bound)
    b = jax.random.uniform(kb_, (cout,), jnp.float32, -bound, bound)
    return w, b


def _init_convt(key, cin, cout, k):
    bound = 1.0 / math.sqrt(cout * k * k)  # PyTorch uses weight.size(1)*k*k
    kw_, kb_ = jax.random.split(key)
    w = jax.random.uniform(kw_, (cin, cout, k, k), jnp.float32, -bound, bound)
    b = jax.random.uniform(kb_, (cout,), jnp.float32, -bound, bound)
    return w, b


def init_params(key):
    keys = jax.random.split(key, 8)
    p = {}
    p["cnn1"] = _init_conv(keys[0], 12, 3, 4)
    p["cnn2"] = _init_conv(keys[1], 24, 12, 4)
    p["cnn3"] = _init_conv(keys[2], 48, 24, 4)
    p["cnn4"] = _init_conv(keys[3], 96, 48, 4)
    p["cnnt1"] = _init_convt(keys[4], 96, 48, 4)
    p["cnnt2"] = _init_convt(keys[5], 48, 24, 4)
    p["cnnt3"] = _init_convt(keys[6], 24, 12, 4)
    p["cnnt4"] = _init_convt(keys[7], 12, 3, 4)
    return p


def prepare_params(params):
    """One-time weight packing into GEMM-ready (bf16) matrices + f32 bias columns."""
    prep = {}
    for name in ("cnn1", "cnn2", "cnn3", "cnn4"):
        w, b = params[name]                       # (Cout, Cin, 4, 4), (Cout,)
        Cout, Cin, kh, kw = w.shape
        prep[name] = (
            w.reshape(Cout, Cin * kh * kw).astype(jnp.bfloat16),
            b.reshape(Cout, 1).astype(jnp.float32),
        )
    for name in ("cnnt1", "cnnt2", "cnnt3", "cnnt4"):
        w, b = params[name]                       # (Cin, Cout, 4, 4), (Cout,)
        Cin, Cout, kh, kw = w.shape
        # Combined sub-pixel weight: parity (py,px) tap (dy,dx) sits at 3x3
        # position (py+dy, px+dx) with value w[ci, co, _KY[py][dy], _KY[px][dx]].
        wfull = jnp.zeros((2, 2, Cout, Cin, 3, 3), jnp.float32)
        for py in range(2):
            for px in range(2):
                for dy in range(2):
                    for dx in range(2):
                        wfull = wfull.at[py, px, :, :, py + dy, px + dx].set(
                            w[:, :, _KY[py][dy], _KY[px][dx]].T)
        prep[name] = (
            wfull.reshape(4 * Cout, Cin * 9).astype(jnp.bfloat16),
            jnp.tile(b, 4).reshape(4 * Cout, 1).astype(jnp.float32),
        )
    return prep


# ----------------------------------------------------------------------------
# Forward pass (mirrors Autoencoder.forward)
# ----------------------------------------------------------------------------
@jax.jit
def autoencoder_forward(prep, x):
    bf = jnp.bfloat16
    h = jnp.transpose(x, (1, 0, 2, 3)).astype(bf)   # NCHW -> channel-major (C,N,H,W)
    h = conv2d_gemm(h, *prep["cnn1"], act="relu", out_dtype=bf)
    h = conv2d_gemm(h, *prep["cnn2"], act="relu", out_dtype=bf)
    h = conv2d_gemm(h, *prep["cnn3"], act="relu", out_dtype=bf)
    h = conv2d_gemm(h, *prep["cnn4"], act="relu", out_dtype=bf)
    h = conv_transpose2d_gemm(h, *prep["cnnt1"], act="relu", out_dtype=bf)
    h = conv_transpose2d_gemm(h, *prep["cnnt2"], act="relu", out_dtype=bf)
    h = conv_transpose2d_gemm(h, *prep["cnnt3"], act="relu", out_dtype=bf)
    h = conv_transpose2d_gemm(h, *prep["cnnt4"], act="sigmoid", out_dtype=jnp.float32)
    return jnp.transpose(h, (1, 0, 2, 3))           # back to NCHW


if __name__ == "__main__":
    key = jax.random.PRNGKey(0)
    k_params, k_x = jax.random.split(key)
    params = init_params(k_params)
    prep = prepare_params(params)

    # Input: NCHW, 3 channels, 32x32 so the 4 stride-2 convs reach 2x2.
    x = jax.random.uniform(k_x, (2, 3, 32, 32), jnp.float32)

    y = autoencoder_forward(prep, x)
    y = jax.block_until_ready(y)

    assert y.shape == (2, 3, 32, 32), y.shape
    assert bool(jnp.all(jnp.isfinite(y)))
    assert bool(jnp.all((y >= 0.0) & (y <= 1.0)))   # sigmoid output range
    print("KERNEL_OK")
</pallas_src>

<mosaic_0001>
module attributes {stable_mosaic.version = 11 : i64} {
  func.func @_mm_bias_act_kernel(%arg0: i32, %arg1: memref<12x48xbf16, #tpu.memory_space<vmem>>, %arg2: memref<48x512xbf16, #tpu.memory_space<vmem>>, %arg3: memref<12x1xf32, #tpu.memory_space<vmem>>, %arg4: memref<12x512xbf16, #tpu.memory_space<vmem>>) attributes {dimension_semantics = [#tpu.dimension_semantics<parallel>], iteration_bounds = array<i64: 1>, scalar_prefetch = 0 : i64, scratch_operands = 0 : i64, tpu.core_type = #tpu.core_type<tc>, window_params = [{pipeline_mode = #tpu.pipeline_mode<synchronous>, transform_indices = @transform_0, window_bounds = array<i64: 12, 48>}, {transform_indices = @transform_1, window_bounds = array<i64: 48, 512>}, {pipeline_mode = #tpu.pipeline_mode<synchronous>, transform_indices = @transform_2, window_bounds = array<i64: 12, 1>}, {transform_indices = @transform_3, window_bounds = array<i64: 12, 512>}]} {
    %c0 = arith.constant 0 : index
    %c0_0 = arith.constant 0 : index
    %0 = vector.load %arg1[%c0, %c0_0] : memref<12x48xbf16, #tpu.memory_space<vmem>>, vector<12x48xbf16>
    %c0_1 = arith.constant 0 : index
    %c0_2 = arith.constant 0 : index
    %1 = vector.load %arg2[%c0_1, %c0_2] : memref<48x512xbf16, #tpu.memory_space<vmem>>, vector<48x512xbf16>
    %cst = arith.constant dense<0.000000e+00> : vector<12x512xf32>
    %2 = tpu.matmul %0, %1, %cst {dimension_numbers = #tpu.dot_dimension_numbers<[1], [0], [0], [1], [0, 0, 1, 1], [], []>} : vector<12x48xbf16>, vector<48x512xbf16>, vector<12x512xf32> -> vector<12x512xf32>
    %c0_3 = arith.constant 0 : index
    %c0_4 = arith.constant 0 : index
    %3 = vector.load %arg3[%c0_3, %c0_4] : memref<12x1xf32, #tpu.memory_space<vmem>>, vector<12x1xf32>
    %4 = vector.broadcast %3 : vector<12x1xf32> to vector<12x512xf32>
    %5 = arith.addf %2, %4 : vector<12x512xf32>
    %cst_5 = arith.constant 0.000000e+00 : f32
    %6 = vector.broadcast %cst_5 : f32 to vector<12x512xf32>
    %7 = arith.maximumf %5, %6 : vector<12x512xf32>
    %8 = arith.truncf %7 : vector<12x512xf32> to vector<12x512xbf16>
    %c0_6 = arith.constant 0 : index
    %c0_7 = arith.constant 0 : index
    %9 = vector.load %arg4[%c0_6, %c0_7] : memref<12x512xbf16, #tpu.memory_space<vmem>>, vector<12x512xbf16>
    tpu.vector_store %arg4[%c0_6, %c0_7], %8 {strides = array<i32>} : memref<12x512xbf16, #tpu.memory_space<vmem>>, vector<12x512xbf16>,
    return
  }
  func.func @transform_0(%arg0: i32) -> (i32, i32) {
    %c0_i32 = arith.constant 0 : i32
    %c0_i32_0 = arith.constant 0 : i32
    %c0_i32_1 = arith.constant 0 : i32
    return %c0_i32, %c0_i32_0 : i32, i32
  }
  func.func @transform_1(%arg0: i32) -> (i32, i32) {
    %c0_i32 = arith.constant 0 : i32
    %c0_i32_0 = arith.constant 0 : i32
    return %c0_i32, %arg0 : i32, i32
  }
  func.func @transform_2(%arg0: i32) -> (i32, i32) {
    %c0_i32 = arith.constant 0 : i32
    %c0_i32_0 = arith.constant 0 : i32
    %c0_i32_1 = arith.constant 0 : i32
    return %c0_i32, %c0_i32_0 : i32, i32
  }
  func.func @transform_3(%arg0: i32) -> (i32, i32) {
    %c0_i32 = arith.constant 0 : i32
    %c0_i32_0 = arith.constant 0 : i32
    return %c0_i32, %arg0 : i32, i32
  }
}

module attributes {stable_mosaic.version = 11 : i64} {
  func.func @_mm_bias_act_kernel(%arg0: i32, %arg1: memref<24x192xbf16, #tpu.memory_space<vmem>>, %arg2: memref<192x128xbf16, #tpu.memory_space<vmem>>, %arg3: memref<24x1xf32, #tpu.memory_space<vmem>>, %arg4: memref<24x128xbf16, #tpu.memory_space<vmem>>) attributes {dimension_semantics = [#tpu.dimension_semantics<parallel>], iteration_bounds = array<i64: 1>, scalar_prefetch = 0 : i64, scratch_operands = 0 : i64, tpu.core_type = #tpu.core_type<tc>, window_params = [{pipeline_mode = #tpu.pipeline_mode<synchronous>, transform_indices = @transform_0, window_bounds = array<i64: 24, 192>}, {transform_indices = @transform_1, window_bounds = array<i64: 192, 128>}, {pipeline_mode = #tpu.pipeline_mode<synchronous>, transform_indices = @transform_2, window_bounds = array<i64: 24, 1>}, {transform_indices = @transform_3, window_bounds = array<i64: 24, 128>}]} {
    %c0 = arith.constant 0 : index
    %c0_0 = arith.constant 0 : index
    %0 = vector.load %arg1[%c0, %c0_0] : memref<24x192xbf16, #tpu.memory_space<vmem>>, vector<24x192xbf16>
    %c0_1 = arith.constant 0 : index
    %c0_2 = arith.constant 0 : index
    %1 = vector.load %arg2[%c0_1, %c0_2] : memref<192x128xbf16, #tpu.memory_space<vmem>>, vector<192x128xbf16>
    %cst = arith.constant dense<0.000000e+00> : vector<24x128xf32>
    %2 = tpu.matmul %0, %1, %cst {dimension_numbers = #tpu.dot_dimension_numbers<[1], [0], [0], [1], [0, 0, 1, 1], [], []>} : vector<24x192xbf16>, vector<192x128xbf16>, vector<24x128xf32> -> vector<24x128xf32>
    %c0_3 = arith.constant 0 : index
    %c0_4 = arith.constant 0 : index
    %3 = vector.load %arg3[%c0_3, %c0_4] : memref<24x1xf32, #tpu.memory_space<vmem>>, vector<24x1xf32>
    %4 = vector.broadcast %3 : vector<24x1xf32> to vector<24x128xf32>
    %5 = arith.addf %2, %4 : vector<24x128xf32>
    %cst_5 = arith.constant 0.000000e+00 : f32
    %6 = vector.broadcast %cst_5 : f32 to vector<24x128xf32>
    %7 = arith.maximumf %5, %6 : vector<24x128xf32>
    %8 = arith.truncf %7 : vector<24x128xf32> to vector<24x128xbf16>
    %c0_6 = arith.constant 0 : index
    %c0_7 = arith.constant 0 : index
    %9 = vector.load %arg4[%c0_6, %c0_7] : memref<24x128xbf16, #tpu.memory_space<vmem>>, vector<24x128xbf16>
    tpu.vector_store %arg4[%c0_6, %c0_7], %8 {strides = array<i32>} : memref<24x128xbf16, #tpu.memory_space<vmem>>, vector<24x128xbf16>,
    return
  }
  func.func @transform_0(%arg0: i32) -> (i32, i32) {
    %c0_i32 = arith.constant 0 : i32
    %c0_i32_0 = arith.constant 0 : i32
    %c0_i32_1 = arith.constant 0 : i32
    return %c0_i32, %c0_i32_0 : i32, i32
  }
  func.func @transform_1(%arg0: i32) -> (i32, i32) {
    %c0_i32 = arith.constant 0 : i32
    %c0_i32_0 = arith.constant 0 : i32
    return %c0_i32, %arg0 : i32, i32
  }
  func.func @transform_2(%arg0: i32) -> (i32, i32) {
    %c0_i32 = arith.constant 0 : i32
    %c0_i32_0 = arith.constant 0 : i32
    %c0_i32_1 = arith.constant 0 : i32
    return %c0_i32, %c0_i32_0 : i32, i32
  }
  func.func @transform_3(%arg0: i32) -> (i32, i32) {
    %c0_i32 = arith.constant 0 : i32
    %c0_i32_0 = arith.constant 0 : i32
    return %c0_i32, %arg0 : i32, i32
  }
}

module attributes {stable_mosaic.version = 11 : i64} {
  func.func @_mm_bias_act_kernel(%arg0: i32, %arg1: memref<48x384xbf16, #tpu.memory_space<vmem>>, %arg2: memref<384x32xbf16, #tpu.memory_space<vmem>>, %arg3: memref<48x1xf32, #tpu.memory_space<vmem>>, %arg4: memref<48x32xbf16, #tpu.memory_space<vmem>>) attributes {dimension_semantics = [#tpu.dimension_semantics<parallel>], iteration_bounds = array<i64: 1>, scalar_prefetch = 0 : i64, scratch_operands = 0 : i64, tpu.core_type = #tpu.core_type<tc>, window_params = [{pipeline_mode = #tpu.pipeline_mode<synchronous>, transform_indices = @transform_0, window_bounds = array<i64: 48, 384>}, {transform_indices = @transform_1, window_bounds = array<i64: 384, 32>}, {pipeline_mode = #tpu.pipeline_mode<synchronous>, transform_indices = @transform_2, window_bounds = array<i64: 48, 1>}, {transform_indices = @transform_3, window_bounds = array<i64: 48, 32>}]} {
    %c0 = arith.constant 0 : index
    %c0_0 = arith.constant 0 : index
    %0 = vector.load %arg1[%c0, %c0_0] : memref<48x384xbf16, #tpu.memory_space<vmem>>, vector<48x384xbf16>
    %c0_1 = arith.constant 0 : index
    %c0_2 = arith.constant 0 : index
    %1 = vector.load %arg2[%c0_1, %c0_2] : memref<384x32xbf16, #tpu.memory_space<vmem>>, vector<384x32xbf16>
    %cst = arith.constant dense<0.000000e+00> : vector<48x32xf32>
    %2 = tpu.matmul %0, %1, %cst {dimension_numbers = #tpu.dot_dimension_numbers<[1], [0], [0], [1], [0, 0, 1, 1], [], []>} : vector<48x384xbf16>, vector<384x32xbf16>, vector<48x32xf32> -> vector<48x32xf32>
    %c0_3 = arith.constant 0 : index
    %c0_4 = arith.constant 0 : index
    %3 = vector.load %arg3[%c0_3, %c0_4] : memref<48x1xf32, #tpu.memory_space<vmem>>, vector<48x1xf32>
    %4 = vector.broadcast %3 : vector<48x1xf32> to vector<48x32xf32>
    %5 = arith.addf %2, %4 : vector<48x32xf32>
    %cst_5 = arith.constant 0.000000e+00 : f32
    %6 = vector.broadcast %cst_5 : f32 to vector<48x32xf32>
    %7 = arith.maximumf %5, %6 : vector<48x32xf32>
    %8 = arith.truncf %7 : vector<48x32xf32> to vector<48x32xbf16>
    %c0_6 = arith.constant 0 : index
    %c0_7 = arith.constant 0 : index
    %9 = vector.load %arg4[%c0_6, %c0_7] : memref<48x32xbf16, #tpu.memory_space<vmem>>, vector<48x32xbf16>
    tpu.vector_store %arg4[%c0_6, %c0_7], %8 {strides = array<i32>} : memref<48x32xbf16, #tpu.memory_space<vmem>>, vector<48x32xbf16>,
    return
  }
  func.func @transform_0(%arg0: i32) -> (i32, i32) {
    %c0_i32 = arith.constant 0 : i32
    %c0_i32_0 = arith.constant 0 : i32
    %c0_i32_1 = arith.constant 0 : i32
    return %c0_i32, %c0_i32_0 : i32, i32
  }
  func.func @transform_1(%arg0: i32) -> (i32, i32) {
    %c0_i32 = arith.constant 0 : i32
    %c0_i32_0 = arith.constant 0 : i32
    return %c0_i32, %arg0 : i32, i32
  }
  func.func @transform_2(%arg0: i32) -> (i32, i32) {
    %c0_i32 = arith.constant 0 : i32
    %c0_i32_0 = arith.constant 0 : i32
    %c0_i32_1 = arith.constant 0 : i32
    return %c0_i32, %c0_i32_0 : i32, i32
  }
  func.func @transform_3(%arg0: i32) -> (i32, i32) {
    %c0_i32 = arith.constant 0 : i32
    %c0_i32_0 = arith.constant 0 : i32
    return %c0_i32, %arg0 : i32, i32
  }
}

module attributes {stable_mosaic.version = 11 : i64} {
  func.func @_mm_bias_act_kernel(%arg0: i32, %arg1: memref<96x768xbf16, #tpu.memory_space<vmem>>, %arg2: memref<768x8xbf16, #tpu.memory_space<vmem>>, %arg3: memref<96x1xf32, #tpu.memory_space<vmem>>, %arg4: memref<96x8xbf16, #tpu.memory_space<vmem>>) attributes {dimension_semantics = [#tpu.dimension_semantics<parallel>], iteration_bounds = array<i64: 1>, scalar_prefetch = 0 : i64, scratch_operands = 0 : i64, tpu.core_type = #tpu.core_type<tc>, window_params = [{pipeline_mode = #tpu.pipeline_mode<synchronous>, transform_indices = @transform_0, window_bounds = array<i64: 96, 768>}, {transform_indices = @transform_1, window_bounds = array<i64: 768, 8>}, {pipeline_mode = #tpu.pipeline_mode<synchronous>, transform_indices = @transform_2, window_bounds = array<i64: 96, 1>}, {transform_indices = @transform_3, window_bounds = array<i64: 96, 8>}]} {
    %c0 = arith.constant 0 : index
    %c0_0 = arith.constant 0 : index
    %0 = vector.load %arg1[%c0, %c0_0] : memref<96x768xbf16, #tpu.memory_space<vmem>>, vector<96x768xbf16>
    %c0_1 = arith.constant 0 : index
    %c0_2 = arith.constant 0 : index
    %1 = vector.load %arg2[%c0_1, %c0_2] : memref<768x8xbf16, #tpu.memory_space<vmem>>, vector<768x8xbf16>
    %cst = arith.constant dense<0.000000e+00> : vector<96x8xf32>
    %2 = tpu.matmul %0, %1, %cst {dimension_numbers = #tpu.dot_dimension_numbers<[1], [0], [0], [1], [0, 0, 1, 1], [], []>} : vector<96x768xbf16>, vector<768x8xbf16>, vector<96x8xf32> -> vector<96x8xf32>
    %c0_3 = arith.constant 0 : index
    %c0_4 = arith.constant 0 : index
    %3 = vector.load %arg3[%c0_3, %c0_4] : memref<96x1xf32, #tpu.memory_space<vmem>>, vector<96x1xf32>
    %4 = vector.broadcast %3 : vector<96x1xf32> to vector<96x8xf32>
    %5 = arith.addf %2, %4 : vector<96x8xf32>
    %cst_5 = arith.constant 0.000000e+00 : f32
    %6 = vector.broadcast %cst_5 : f32 to vector<96x8xf32>
    %7 = arith.maximumf %5, %6 : vector<96x8xf32>
    %8 = arith.truncf %7 : vector<96x8xf32> to vector<96x8xbf16>
    %c0_6 = arith.constant 0 : index
    %c0_7 = arith.constant 0 : index
    %9 = vector.load %arg4[%c0_6, %c0_7] : memref<96x8xbf16, #tpu.memory_space<vmem>>, vector<96x8xbf16>
    tpu.vector_store %arg4[%c0_6, %c0_7], %8 {strides = array<i32>} : memref<96x8xbf16, #tpu.memory_space<vmem>>, vector<96x8xbf16>,
    return
  }
  func.func @transform_0(%arg0: i32) -> (i32, i32) {
    %c0_i32 = arith.constant 0 : i32
    %c0_i32_0 = arith.constant 0 : i32
    %c0_i32_1 = arith.constant 0 : i32
    return %c0_i32, %c0_i32_0 : i32, i32
  }
  func.func @transform_1(%arg0: i32) -> (i32, i32) {
    %c0_i32 = arith.constant 0 : i32
    %c0_i32_0 = arith.constant 0 : i32
    return %c0_i32, %arg0 : i32, i32
  }
  func.func @transform_2(%arg0: i32) -> (i32, i32) {
    %c0_i32 = arith.constant 0 : i32
    %c0_i32_0 = arith.constant 0 : i32
    %c0_i32_1 = arith.constant 0 : i32
    return %c0_i32, %c0_i32_0 : i32, i32
  }
  func.func @transform_3(%arg0: i32) -> (i32, i32) {
    %c0_i32 = arith.constant 0 : i32
    %c0_i32_0 = arith.constant 0 : i32
    return %c0_i32, %arg0 : i32, i32
  }
}

module attributes {stable_mosaic.version = 11 : i64} {
  func.func @_mm_bias_act_kernel(%arg0: i32, %arg1: memref<192x864xbf16, #tpu.memory_space<vmem>>, %arg2: memref<864x8xbf16, #tpu.memory_space<vmem>>, %arg3: memref<192x1xf32, #tpu.memory_space<vmem>>, %arg4: memref<192x8xbf16, #tpu.memory_space<vmem>>) attributes {dimension_semantics = [#tpu.dimension_semantics<parallel>], iteration_bounds = array<i64: 1>, scalar_prefetch = 0 : i64, scratch_operands = 0 : i64, tpu.core_type = #tpu.core_type<tc>, window_params = [{pipeline_mode = #tpu.pipeline_mode<synchronous>, transform_indices = @transform_0, window_bounds = array<i64: 192, 864>}, {transform_indices = @transform_1, window_bounds = array<i64: 864, 8>}, {pipeline_mode = #tpu.pipeline_mode<synchronous>, transform_indices = @transform_2, window_bounds = array<i64: 192, 1>}, {transform_indices = @transform_3, window_bounds = array<i64: 192, 8>}]} {
    %c0 = arith.constant 0 : index
    %c0_0 = arith.constant 0 : index
    %0 = vector.load %arg1[%c0, %c0_0] : memref<192x864xbf16, #tpu.memory_space<vmem>>, vector<192x864xbf16>
    %c0_1 = arith.constant 0 : index
    %c0_2 = arith.constant 0 : index
    %1 = vector.load %arg2[%c0_1, %c0_2] : memref<864x8xbf16, #tpu.memory_space<vmem>>, vector<864x8xbf16>
    %cst = arith.constant dense<0.000000e+00> : vector<192x8xf32>
    %2 = tpu.matmul %0, %1, %cst {dimension_numbers = #tpu.dot_dimension_numbers<[1], [0], [0], [1], [0, 0, 1, 1], [], []>} : vector<192x864xbf16>, vector<864x8xbf16>, vector<192x8xf32> -> vector<192x8xf32>
    %c0_3 = arith.constant 0 : index
    %c0_4 = arith.constant 0 : index
    %3 = vector.load %arg3[%c0_3, %c0_4] : memref<192x1xf32, #tpu.memory_space<vmem>>, vector<192x1xf32>
    %4 = vector.broadcast %3 : vector<192x1xf32> to vector<192x8xf32>
    %5 = arith.addf %2, %4 : vector<192x8xf32>
    %cst_5 = arith.constant 0.000000e+00 : f32
    %6 = vector.broadcast %cst_5 : f32 to vector<192x8xf32>
    %7 = arith.maximumf %5, %6 : vector<192x8xf32>
    %8 = arith.truncf %7 : vector<192x8xf32> to vector<192x8xbf16>
    %c0_6 = arith.constant 0 : index
    %c0_7 = arith.constant 0 : index
    %9 = vector.load %arg4[%c0_6, %c0_7] : memref<192x8xbf16, #tpu.memory_space<vmem>>, vector<192x8xbf16>
    tpu.vector_store %arg4[%c0_6, %c0_7], %8 {strides = array<i32>} : memref<192x8xbf16, #tpu.memory_space<vmem>>, vector<192x8xbf16>,
    return
  }
  func.func @transform_0(%arg0: i32) -> (i32, i32) {
    %c0_i32 = arith.constant 0 : i32
    %c0_i32_0 = arith.constant 0 : i32
    %c0_i32_1 = arith.constant 0 : i32
    return %c0_i32, %c0_i32_0 : i32, i32
  }
  func.func @transform_1(%arg0: i32) -> (i32, i32) {
    %c0_i32 = arith.constant 0 : i32
    %c0_i32_0 = arith.constant 0 : i32
    return %c0_i32, %arg0 : i32, i32
  }
  func.func @transform_2(%arg0: i32) -> (i32, i32) {
    %c0_i32 = arith.constant 0 : i32
    %c0_i32_0 = arith.constant 0 : i32
    %c0_i32_1 = arith.constant 0 : i32
    return %c0_i32, %c0_i32_0 : i32, i32
  }
  func.func @transform_3(%arg0: i32) -> (i32, i32) {
    %c0_i32 = arith.constant 0 : i32
    %c0_i32_0 = arith.constant 0 : i32
    return %c0_i32, %arg0 : i32, i32
  }
}

module attributes {stable_mosaic.version = 11 : i64} {
  func.func @_mm_bias_act_kernel(%arg0: i32, %arg1: memref<96x432xbf16, #tpu.memory_space<vmem>>, %arg2: memref<432x32xbf16, #tpu.memory_space<vmem>>, %arg3: memref<96x1xf32, #tpu.memory_space<vmem>>, %arg4: memref<96x32xbf16, #tpu.memory_space<vmem>>) attributes {dimension_semantics = [#tpu.dimension_semantics<parallel>], iteration_bounds = array<i64: 1>, scalar_prefetch = 0 : i64, scratch_operands = 0 : i64, tpu.core_type = #tpu.core_type<tc>, window_params = [{pipeline_mode = #tpu.pipeline_mode<synchronous>, transform_indices = @transform_0, window_bounds = array<i64: 96, 432>}, {transform_indices = @transform_1, window_bounds = array<i64: 432, 32>}, {pipeline_mode = #tpu.pipeline_mode<synchronous>, transform_indices = @transform_2, window_bounds = array<i64: 96, 1>}, {transform_indices = @transform_3, window_bounds = array<i64: 96, 32>}]} {
    %c0 = arith.constant 0 : index
    %c0_0 = arith.constant 0 : index
    %0 = vector.load %arg1[%c0, %c0_0] : memref<96x432xbf16, #tpu.memory_space<vmem>>, vector<96x432xbf16>
    %c0_1 = arith.constant 0 : index
    %c0_2 = arith.constant 0 : index
    %1 = vector.load %arg2[%c0_1, %c0_2] : memref<432x32xbf16, #tpu.memory_space<vmem>>, vector<432x32xbf16>
    %cst = arith.constant dense<0.000000e+00> : vector<96x32xf32>
    %2 = tpu.matmul %0, %1, %cst {dimension_numbers = #tpu.dot_dimension_numbers<[1], [0], [0], [1], [0, 0, 1, 1], [], []>} : vector<96x432xbf16>, vector<432x32xbf16>, vector<96x32xf32> -> vector<96x32xf32>
    %c0_3 = arith.constant 0 : index
    %c0_4 = arith.constant 0 : index
    %3 = vector.load %arg3[%c0_3, %c0_4] : memref<96x1xf32, #tpu.memory_space<vmem>>, vector<96x1xf32>
    %4 = vector.broadcast %3 : vector<96x1xf32> to vector<96x32xf32>
    %5 = arith.addf %2, %4 : vector<96x32xf32>
    %cst_5 = arith.constant 0.000000e+00 : f32
    %6 = vector.broadcast %cst_5 : f32 to vector<96x32xf32>
    %7 = arith.maximumf %5, %6 : vector<96x32xf32>
    %8 = arith.truncf %7 : vector<96x32xf32> to vector<96x32xbf16>
    %c0_6 = arith.constant 0 : index
    %c0_7 = arith.constant 0 : index
    %9 = vector.load %arg4[%c0_6, %c0_7] : memref<96x32xbf16, #tpu.memory_space<vmem>>, vector<96x32xbf16>
    tpu.vector_store %arg4[%c0_6, %c0_7], %8 {strides = array<i32>} : memref<96x32xbf16, #tpu.memory_space<vmem>>, vector<96x32xbf16>,
    return
  }
  func.func @transform_0(%arg0: i32) -> (i32, i32) {
    %c0_i32 = arith.constant 0 : i32
    %c0_i32_0 = arith.constant 0 : i32
    %c0_i32_1 = arith.constant 0 : i32
    return %c0_i32, %c0_i32_0 : i32, i32
  }
  func.func @transform_1(%arg0: i32) -> (i32, i32) {
    %c0_i32 = arith.constant 0 : i32
    %c0_i32_0 = arith.constant 0 : i32
    return %c0_i32, %arg0 : i32, i32
  }
  func.func @transform_2(%arg0: i32) -> (i32, i32) {
    %c0_i32 = arith.constant 0 : i32
    %c0_i32_0 = arith.constant 0 : i32
    %c0_i32_1 = arith.constant 0 : i32
    return %c0_i32, %c0_i32_0 : i32, i32
  }
  func.func @transform_3(%arg0: i32) -> (i32, i32) {
    %c0_i32 = arith.constant 0 : i32
    %c0_i32_0 = arith.constant 0 : i32
    return %c0_i32, %arg0 : i32, i32
  }
}

module attributes {stable_mosaic.version = 11 : i64} {
  func.func @_mm_bias_act_kernel(%arg0: i32, %arg1: memref<48x216xbf16, #tpu.memory_space<vmem>>, %arg2: memref<216x128xbf16, #tpu.memory_space<vmem>>, %arg3: memref<48x1xf32, #tpu.memory_space<vmem>>, %arg4: memref<48x128xbf16, #tpu.memory_space<vmem>>) attributes {dimension_semantics = [#tpu.dimension_semantics<parallel>], iteration_bounds = array<i64: 1>, scalar_prefetch = 0 : i64, scratch_operands = 0 : i64, tpu.core_type = #tpu.core_type<tc>, window_params = [{pipeline_mode = #tpu.pipeline_mode<synchronous>, transform_indices = @transform_0, window_bounds = array<i64: 48, 216>}, {transform_indices = @transform_1, window_bounds = array<i64: 216, 128>}, {pipeline_mode = #tpu.pipeline_mode<synchronous>, transform_indices = @transform_2, window_bounds = array<i64: 48, 1>}, {transform_indices = @transform_3, window_bounds = array<i64: 48, 128>}]} {
    %c0 = arith.constant 0 : index
    %c0_0 = arith.constant 0 : index
    %0 = vector.load %arg1[%c0, %c0_0] : memref<48x216xbf16, #tpu.memory_space<vmem>>, vector<48x216xbf16>
    %c0_1 = arith.constant 0 : index
    %c0_2 = arith.constant 0 : index
    %1 = vector.load %arg2[%c0_1, %c0_2] : memref<216x128xbf16, #tpu.memory_space<vmem>>, vector<216x128xbf16>
    %cst = arith.constant dense<0.000000e+00> : vector<48x128xf32>
    %2 = tpu.matmul %0, %1, %cst {dimension_numbers = #tpu.dot_dimension_numbers<[1], [0], [0], [1], [0, 0, 1, 1], [], []>} : vector<48x216xbf16>, vector<216x128xbf16>, vector<48x128xf32> -> vector<48x128xf32>
    %c0_3 = arith.constant 0 : index
    %c0_4 = arith.constant 0 : index
    %3 = vector.load %arg3[%c0_3, %c0_4] : memref<48x1xf32, #tpu.memory_space<vmem>>, vector<48x1xf32>
    %4 = vector.broadcast %3 : vector<48x1xf32> to vector<48x128xf32>
    %5 = arith.addf %2, %4 : vector<48x128xf32>
    %cst_5 = arith.constant 0.000000e+00 : f32
    %6 = vector.broadcast %cst_5 : f32 to vector<48x128xf32>
    %7 = arith.maximumf %5, %6 : vector<48x128xf32>
    %8 = arith.truncf %7 : vector<48x128xf32> to vector<48x128xbf16>
    %c0_6 = arith.constant 0 : index
    %c0_7 = arith.constant 0 : index
    %9 = vector.load %arg4[%c0_6, %c0_7] : memref<48x128xbf16, #tpu.memory_space<vmem>>, vector<48x128xbf16>
    tpu.vector_store %arg4[%c0_6, %c0_7], %8 {strides = array<i32>} : memref<48x128xbf16, #tpu.memory_space<vmem>>, vector<48x128xbf16>,
    return
  }
  func.func @transform_0(%arg0: i32) -> (i32, i32) {
    %c0_i32 = arith.constant 0 : i32
    %c0_i32_0 = arith.constant 0 : i32
    %c0_i32_1 = arith.constant 0 : i32
    return %c0_i32, %c0_i32_0 : i32, i32
  }
  func.func @transform_1(%arg0: i32) -> (i32, i32) {
    %c0_i32 = arith.constant 0 : i32
    %c0_i32_0 = arith.constant 0 : i32
    return %c0_i32, %arg0 : i32, i32
  }
  func.func @transform_2(%arg0: i32) -> (i32, i32) {
    %c0_i32 = arith.constant 0 : i32
    %c0_i32_0 = arith.constant 0 : i32
    %c0_i32_1 = arith.constant 0 : i32
    return %c0_i32, %c0_i32_0 : i32, i32
  }
  func.func @transform_3(%arg0: i32) -> (i32, i32) {
    %c0_i32 = arith.constant 0 : i32
    %c0_i32_0 = arith.constant 0 : i32
    return %c0_i32, %arg0 : i32, i32
  }
}

module attributes {stable_mosaic.version = 11 : i64} {
  func.func @_mm_bias_act_kernel(%arg0: i32, %arg1: memref<12x108xbf16, #tpu.memory_space<vmem>>, %arg2: memref<108x512xbf16, #tpu.memory_space<vmem>>, %arg3: memref<12x1xf32, #tpu.memory_space<vmem>>, %arg4: memref<12x512xf32, #tpu.memory_space<vmem>>) attributes {dimension_semantics = [#tpu.dimension_semantics<parallel>], iteration_bounds = array<i64: 1>, scalar_prefetch = 0 : i64, scratch_operands = 0 : i64, tpu.core_type = #tpu.core_type<tc>, window_params = [{pipeline_mode = #tpu.pipeline_mode<synchronous>, transform_indices = @transform_0, window_bounds = array<i64: 12, 108>}, {transform_indices = @transform_1, window_bounds = array<i64: 108, 512>}, {pipeline_mode = #tpu.pipeline_mode<synchronous>, transform_indices = @transform_2, window_bounds = array<i64: 12, 1>}, {transform_indices = @transform_3, window_bounds = array<i64: 12, 512>}]} {
    %c0 = arith.constant 0 : index
    %c0_0 = arith.constant 0 : index
    %0 = vector.load %arg1[%c0, %c0_0] : memref<12x108xbf16, #tpu.memory_space<vmem>>, vector<12x108xbf16>
    %c0_1 = arith.constant 0 : index
    %c0_2 = arith.constant 0 : index
    %1 = vector.load %arg2[%c0_1, %c0_2] : memref<108x512xbf16, #tpu.memory_space<vmem>>, vector<108x512xbf16>
    %cst = arith.constant dense<0.000000e+00> : vector<12x512xf32>
    %2 = tpu.matmul %0, %1, %cst {dimension_numbers = #tpu.dot_dimension_numbers<[1], [0], [0], [1], [0, 0, 1, 1], [], []>} : vector<12x108xbf16>, vector<108x512xbf16>, vector<12x512xf32> -> vector<12x512xf32>
    %c0_3 = arith.constant 0 : index
    %c0_4 = arith.constant 0 : index
    %3 = vector.load %arg3[%c0_3, %c0_4] : memref<12x1xf32, #tpu.memory_space<vmem>>, vector<12x1xf32>
    %4 = vector.broadcast %3 : vector<12x1xf32> to vector<12x512xf32>
    %5 = arith.addf %2, %4 : vector<12x512xf32>
    %6 = arith.negf %5 : vector<12x512xf32>
    %7 = math.exp %6 : vector<12x512xf32>
    %cst_5 = arith.constant 1.000000e+00 : f32
    %8 = vector.broadcast %cst_5 : f32 to vector<12x512xf32>
    %9 = arith.addf %8, %7 : vector<12x512xf32>
    %10 = arith.divf %8, %9 : vector<12x512xf32>
    %c0_6 = arith.constant 0 : index
    %c0_7 = arith.constant 0 : index
    %11 = vector.load %arg4[%c0_6, %c0_7] : memref<12x512xf32, #tpu.memory_space<vmem>>, vector<12x512xf32>
    tpu.vector_store %arg4[%c0_6, %c0_7], %10 {strides = array<i32>} : memref<12x512xf32, #tpu.memory_space<vmem>>, vector<12x512xf32>,
    return
  }
  func.func @transform_0(%arg0: i32) -> (i32, i32) {
    %c0_i32 = arith.constant 0 : i32
    %c0_i32_0 = arith.constant 0 : i32
    %c0_i32_1 = arith.constant 0 : i32
    return %c0_i32, %c0_i32_0 : i32, i32
  }
  func.func @transform_1(%arg0: i32) -> (i32, i32) {
    %c0_i32 = arith.constant 0 : i32
    %c0_i32_0 = arith.constant 0 : i32
    return %c0_i32, %arg0 : i32, i32
  }
  func.func @transform_2(%arg0: i32) -> (i32, i32) {
    %c0_i32 = arith.constant 0 : i32
    %c0_i32_0 = arith.constant 0 : i32
    %c0_i32_1 = arith.constant 0 : i32
    return %c0_i32, %c0_i32_0 : i32, i32
  }
  func.func @transform_3(%arg0: i32) -> (i32, i32) {
    %c0_i32 = arith.constant 0 : i32
    %c0_i32_0 = arith.constant 0 : i32
    return %c0_i32, %arg0 : i32, i32
  }
}

</mosaic_0001>

<llo_original>
// kernel: autoencoder_forward.8
$region0: #{autoencoder_forward.8}
  #allocation0 [shape = 'u32[]', space=smem, size = 0x4, offset = 0x4, fixed_abs, tag = 'smem constant byte address 0x4 - core index']
  #allocation1 [shape = 'u32[144,128]{1,0:T(1,128)}', space=vmem, size = 0x12000, scoped, tag = 'internal scratch']
  %s0 = inlined_call_operand.vmem [shape: bf16[12,48], index: 0, kind: input, shape index: {}]
  %s1 = inlined_call_operand.vmem [shape: bf16[48,512], index: 1, kind: input, shape index: {}]
  %s2 = inlined_call_operand.vmem [shape: f32[12,1], index: 2, kind: input, shape index: {}]
  %s3 = inlined_call_operand.vmem [shape: bf16[12,512], index: 3, kind: output, shape index: {}]
  %s4 = sld [smem:[#allocation0]]
  $region22: #{autoencoder_forward.8} parent=0
    _
  %s6 = ssub.s32 1, %s4
  %s7 = scalar_select 0, %s6, %s4
  // Predicated region
  $region2: #{autoencoder_forward.8} parent=0 // pred_check
    _
  $region3: #{autoencoder_forward.8} parent=0 // pred_check_branch
    %9 = sbr.rel (0) target = $region5
  $region4: #{autoencoder_forward.8} parent=0 // pred_region
    _
  $region5: #{autoencoder_forward.8} parent=0 // pred_fallthru
    _
  // Predicated region
  $region6: #{autoencoder_forward.8} parent=0 // pred_check
    _
  $region7: #{autoencoder_forward.8} parent=0 // pred_check_branch
    %11 = sbr.rel (0) target = $region9
  $region8: #{autoencoder_forward.8} parent=0 // pred_region
    _
  $region9: #{autoencoder_forward.8} parent=0 // pred_fallthru
    _
  // Predicated region
  $region10: #{autoencoder_forward.8} parent=0 // pred_check
    _
  $region11: #{autoencoder_forward.8} parent=0 // pred_check_branch
    %13 = sbr.rel (0) target = $region13
  $region12: #{autoencoder_forward.8} parent=0 // pred_region
    _
  $region13: #{autoencoder_forward.8} parent=0 // pred_fallthru
    _
  %v15 = vld [vmem:[%s0] sm:$0xf]
  %v16 = vld [vmem:[%s0 + $0x4] sm:$0x3]
  %v17 = vld [vmem:[%s1] sm:$0xff]
  %v18 = vld [vmem:[%s1 + $0x8] sm:$0xff]
  %v19 = vld [vmem:[%s1 + $0x10] sm:$0xff]
  %v20 = vld [vmem:[%s1 + $0x18] sm:$0xff]
  %v21 = vld [vmem:[%s1 + $0x20] sm:$0xff]
  %v22 = vld [vmem:[%s1 + $0x28] sm:$0xff]
  %v23 = vld [vmem:[%s1 + $0x30] sm:$0xff]
  %v24 = vld [vmem:[%s1 + $0x38] sm:$0xff]
  %v25 = vld [vmem:[%s1 + $0x40] sm:$0xff]
  %v26 = vld [vmem:[%s1 + $0x48] sm:$0xff]
  %v27 = vld [vmem:[%s1 + $0x50] sm:$0xff]
  %v28 = vld [vmem:[%s1 + $0x58] sm:$0xff]
  %v29 = vld [vmem:[%s2] sm:$0xff]
  %v30 = vld [vmem:[%s2 + $0x8] sm:$0xf]
  %32 = vset.pattern.permute.xlu0 0
  %33 = vperm.xlu0 %32, %v29
  %v34 = vpop.permute.xlu0 %33
  %37 = vset.pattern.permute.xlu0 0
  %38 = vperm.xlu0 %37, %v30
  %v39 = vpop.permute.xlu0 %38
  %v43 = vunpack.c.l.b16 %v15
  %v44 = vunpack.c.l.b16 %v16
  %v45 = vpack.c.b16 %v44, %v43
  %v58 = vunpack.c.l.b16 %v17
  %v59 = vunpack.c.h.b16 %v17
  %v60 = vunpack.c.l.b16 %v18
  %v61 = vunpack.c.h.b16 %v18
  %v62 = vunpack.c.l.b16 %v19
  %v63 = vunpack.c.h.b16 %v19
  %v64 = vunpack.c.l.b16 %v20
  %v65 = vunpack.c.h.b16 %v20
  %v66 = vunpack.c.l.b16 %v21
  %v67 = vunpack.c.h.b16 %v21
  %v68 = vunpack.c.l.b16 %v22
  %v69 = vunpack.c.h.b16 %v22
  %v70 = vunpack.c.l.b16 %v23
  %v71 = vunpack.c.h.b16 %v23
  %v72 = vunpack.c.l.b16 %v24
  %v73 = vunpack.c.h.b16 %v24
  %v74 = vunpack.c.l.b16 %v25
  %v75 = vunpack.c.h.b16 %v25
  %v76 = vunpack.c.l.b16 %v26
  %v77 = vunpack.c.h.b16 %v26
  %v78 = vunpack.c.l.b16 %v27
  %v79 = vunpack.c.h.b16 %v27
  %v80 = vunpack.c.l.b16 %v28
  %v81 = vunpack.c.h.b16 %v28
  %v82 = vpack.c.b16 %v62, %v58
  %v83 = vpack.c.b16 %v63, %v59
  %v84 = vpack.c.b16 %v64, %v60
  %v85 = vpack.c.b16 %v65, %v61
  %v86 = vpack.c.b16 %v70, %v66
  %v87 = vpack.c.b16 %v71, %v67
  %v88 = vpack.c.b16 %v72, %v68
  %v89 = vpack.c.b16 %v73, %v69
  %v90 = vpack.c.b16 %v78, %v74
  %v91 = vpack.c.b16 %v79, %v75
  %v92 = vpack.c.b16 %v80, %v76
  %v93 = vpack.c.b16 %v81, %v77
  %vm106 = vcmask 392192
  %v108 = vsel %vm106, %v45, 0
  %110 = vmatprep.subr.bf16.mxu0 %v83
  %111 = vmatpush1.bf16.msra.mxu0 %v82
  %112 = vmatprep.subr.bf16.mxu0 %v87
  %113 = vmatpush1.bf16.msra.mxu0 %v86
  %114 = vmatprep.subr.bf16.mxu0 %v91
  %115 = vmatpush1.bf16.msra.mxu0 %v90
  %116 = vmatprep.subr.bf16.mxu0 0
  %117 = vmatpush1.bf16.msra.mxu0 0
  %118 = vmatprep.subr.bf16.mxu0 0
  %119 = vmatpush1.bf16.msra.mxu0 0
  %120 = vmatprep.subr.bf16.mxu0 0
  %121 = vmatpush1.bf16.msra.mxu0 0
  %122 = vmatprep.subr.bf16.mxu0 0
  %123 = vmatpush1.bf16.msra.mxu0 0
  %124 = vmatprep.subr.bf16.mxu0 0
  %125 = vmatpush1.bf16.msra.mxu0 0
  %126 = vmatprep.subr.bf16.mxu0 0
  %127 = vmatpush1.bf16.msra.mxu0 0
  %128 = vmatprep.subr.bf16.mxu0 0
  %129 = vmatpush1.bf16.msra.mxu0 0
  %130 = vmatprep.subr.bf16.mxu0 0
  %131 = vmatpush1.bf16.msra.mxu0 0
  %132 = vmatprep.subr.bf16.mxu0 0
  %133 = vmatpush1.bf16.msra.mxu0 0
  %134 = vmatprep.subr.bf16.mxu0 0
  %135 = vmatpush1.bf16.msra.mxu0 0
  %136 = vmatprep.subr.bf16.mxu0 0
  %137 = vmatpush1.bf16.msra.mxu0 0
  %138 = vmatprep.subr.bf16.mxu0 0
  %139 = vmatpush1.bf16.msra.mxu0 0
  %140 = vmatprep.subr.bf16.mxu0 0
  %141 = vmatpush1.bf16.msra.mxu0 0
  %142 = vmatprep.mubr.bf16.mxu0 0
  %143 = vmatmul.mubr.bf16.gmra.mrb[0].mxu0 %v108
  %v144 = vpop.f32.mrb[0].mxu0
  %v145 = vadd.f32 %v34, %v144
  %v146 = vpop.f32.mrb[0].mxu0
  %v147 = vadd.f32 %v34, %v146
  %v148 = vpop.f32.mrb[0].mxu0
  %v149 = vadd.f32 %v39, %v148
  %v150 = vpop.f32.mrb[0].mxu0
  %v151 = vadd.f32 %v39, %v150
  %152 = vdwg.mxu0
  %153 = vmatprep.subr.bf16.mxu0 %v85
  %154 = vmatpush1.bf16.msra.mxu0 %v84
  %155 = vmatprep.subr.bf16.mxu0 %v89
  %156 = vmatpush1.bf16.msra.mxu0 %v88
  %157 = vmatprep.subr.bf16.mxu0 %v93
  %158 = vmatpush1.bf16.msra.mxu0 %v92
  %159 = vmatprep.subr.bf16.mxu0 0
  %160 = vmatpush1.bf16.msra.mxu0 0
  %161 = vmatprep.subr.bf16.mxu0 0
  %162 = vmatpush1.bf16.msra.mxu0 0
  %163 = vmatprep.subr.bf16.mxu0 0
  %164 = vmatpush1.bf16.msra.mxu0 0
  %165 = vmatprep.subr.bf16.mxu0 0
  %166 = vmatpush1.bf16.msra.mxu0 0
  %167 = vmatprep.subr.bf16.mxu0 0
  %168 = vmatpush1.bf16.msra.mxu0 0
  %169 = vmatprep.subr.bf16.mxu0 0
  %170 = vmatpush1.bf16.msra.mxu0 0
  %171 = vmatprep.subr.bf16.mxu0 0
  %172 = vmatpush1.bf16.msra.mxu0 0
  %173 = vmatprep.subr.bf16.mxu0 0
  %174 = vmatpush1.bf16.msra.mxu0 0
  %175 = vmatprep.subr.bf16.mxu0 0
  %176 = vmatpush1.bf16.msra.mxu0 0
  %177 = vmatprep.subr.bf16.mxu0 0
  %178 = vmatpush1.bf16.msra.mxu0 0
  %179 = vmatprep.subr.bf16.mxu0 0
  %180 = vmatpush1.bf16.msra.mxu0 0
  %181 = vmatprep.subr.bf16.mxu0 0
  %182 = vmatpush1.bf16.msra.mxu0 0
  %183 = vmatprep.subr.bf16.mxu0 0
  %184 = vmatpush1.bf16.msra.mxu0 0
  %185 = vmatprep.mubr.bf16.mxu0 0
  %186 = vmatmul.mubr.bf16.gmra.mrb[0].mxu0 %v108
  %v187 = vpop.f32.mrb[0].mxu0
  %v188 = vadd.f32 %v34, %v187
  %v189 = vpop.f32.mrb[0].mxu0
  %v190 = vadd.f32 %v34, %v189
  %v191 = vpop.f32.mrb[0].mxu0
  %v192 = vadd.f32 %v39, %v191
  %v193 = vpop.f32.mrb[0].mxu0
  %v194 = vadd.f32 %v39, %v193
  %195 = vdwg.mxu0
  %v196 = vmax.f32 %v145, 0.0
  %v197 = vmax.f32 %v147, 0.0
  %v198 = vmax.f32 %v188, 0.0
  %v199 = vmax.f32 %v190, 0.0
  %v200 = vmax.f32 %v149, 0.0
  %v201 = vmax.f32 %v151, 0.0
  %v202 = vmax.f32 %v192, 0.0
  %v203 = vmax.f32 %v194, 0.0
  %v204 = vpack.c.bf16 %v200, %v196
  %v205 = vpack.c.bf16 %v201, %v197
  %v206 = vpack.c.bf16 %v202, %v198
  %v207 = vpack.c.bf16 %v203, %v199
  %v212 = vunpack.c.l.b16 %v204
  %v213 = vunpack.c.l.b16 %v205
  %v214 = vunpack.c.l.b16 %v206
  %v215 = vunpack.c.l.b16 %v207
  %v216 = vunpack.c.h.b16 %v204
  %v217 = vunpack.c.h.b16 %v205
  %v218 = vunpack.c.h.b16 %v206
  %v219 = vunpack.c.h.b16 %v207
  %v220 = vpack.c.b16 %v213, %v212
  %v221 = vpack.c.b16 %v215, %v214
  %v222 = vpack.c.b16 %v217, %v216
  %v223 = vpack.c.b16 %v219, %v218
  %228 = vst [vmem:[%s3] sm:$0xff] %v220
  %229 = vst [vmem:[%s3 + $0x8] sm:$0xff] %v221
  %230 = vst [vmem:[%s3 + $0x10] sm:$0x33] %v222
  %231 = vst [vmem:[%s3 + $0x18] sm:$0x33] %v223
  // Predicated region
  $region14: #{autoencoder_forward.8} parent=0 // pred_check
    _
  $region15: #{autoencoder_forward.8} parent=0 // pred_check_branch
    %233 = sbr.rel (0) target = $region17
  $region16: #{autoencoder_forward.8} parent=0 // pred_region
    _
  $region17: #{autoencoder_forward.8} parent=0 // pred_fallthru
    _
  // Predicated region
  $region18: #{autoencoder_forward.8} parent=0 // pred_check
    _
  $region19: #{autoencoder_forward.8} parent=0 // pred_check_branch
    %235 = sbr.rel (0) target = $region21
  $region20: #{autoencoder_forward.8} parent=0 // pred_region
    _
  $region21: #{autoencoder_forward.8} parent=0 // pred_fallthru
    _

// kernel: autoencoder_forward.9
$region0: #{autoencoder_forward.9}
  #allocation0 [shape = 'u32[]', space=smem, size = 0x4, offset = 0x4, fixed_abs, tag = 'smem constant byte address 0x4 - core index']
  #allocation1 [shape = 'u32[144,128]{1,0:T(1,128)}', space=vmem, size = 0x12000, scoped, tag = 'internal scratch']
  %s0 = inlined_call_operand.vmem [shape: bf16[24,192], index: 0, kind: input, shape index: {}]
  %s1 = inlined_call_operand.vmem [shape: bf16[192,128], index: 1, kind: input, shape index: {}]
  %s2 = inlined_call_operand.vmem [shape: f32[24,1], index: 2, kind: input, shape index: {}]
  %s3 = inlined_call_operand.vmem [shape: bf16[24,128], index: 3, kind: output, shape index: {}]
  %s4 = sld [smem:[#allocation0]]
  $region22: #{autoencoder_forward.9} parent=0
    _
  %s6 = ssub.s32 1, %s4
  %s7 = scalar_select 0, %s6, %s4
  // Predicated region
  $region2: #{autoencoder_forward.9} parent=0 // pred_check
    _
  $region3: #{autoencoder_forward.9} parent=0 // pred_check_branch
    %9 = sbr.rel (0) target = $region5
  $region4: #{autoencoder_forward.9} parent=0 // pred_region
    _
  $region5: #{autoencoder_forward.9} parent=0 // pred_fallthru
    _
  // Predicated region
  $region6: #{autoencoder_forward.9} parent=0 // pred_check
    _
  $region7: #{autoencoder_forward.9} parent=0 // pred_check_branch
    %11 = sbr.rel (0) target = $region9
  $region8: #{autoencoder_forward.9} parent=0 // pred_region
    _
  $region9: #{autoencoder_forward.9} parent=0 // pred_fallthru
    _
  // Predicated region
  $region10: #{autoencoder_forward.9} parent=0 // pred_check
    _
  $region11: #{autoencoder_forward.9} parent=0 // pred_check_branch
    %13 = sbr.rel (0) target = $region13
  $region12: #{autoencoder_forward.9} parent=0 // pred_region
    _
  $region13: #{autoencoder_forward.9} parent=0 // pred_fallthru
    _
  %v15 = vld [vmem:[%s0] sm:$0xff]
  %v16 = vld [vmem:[%s0 + $0x8] sm:$0xff]
  %v17 = vld [vmem:[%s0 + $0x10] sm:$0xff]
  %v18 = vld [vmem:[%s1] sm:$0xf]
  %v19 = vld [vmem:[%s1 + $0x4] sm:$0xf]
  %v20 = vld [vmem:[%s1 + $0x8] sm:$0xf]
  %v21 = vld [vmem:[%s1 + $0xc] sm:$0xf]
  %v22 = vld [vmem:[%s1 + $0x10] sm:$0xf]
  %v23 = vld [vmem:[%s1 + $0x14] sm:$0xf]
  %v24 = vld [vmem:[%s1 + $0x18] sm:$0xf]
  %v25 = vld [vmem:[%s1 + $0x1c] sm:$0xf]
  %v26 = vld [vmem:[%s1 + $0x20] sm:$0xf]
  %v27 = vld [vmem:[%s1 + $0x24] sm:$0xf]
  %v28 = vld [vmem:[%s1 + $0x28] sm:$0xf]
  %v29 = vld [vmem:[%s1 + $0x2c] sm:$0xf]
  %v30 = vld [vmem:[%s1 + $0x30] sm:$0xf]
  %v31 = vld [vmem:[%s1 + $0x34] sm:$0xf]
  %v32 = vld [vmem:[%s1 + $0x38] sm:$0xf]
  %v33 = vld [vmem:[%s1 + $0x3c] sm:$0xf]
  %v34 = vld [vmem:[%s1 + $0x40] sm:$0xf]
  %v35 = vld [vmem:[%s1 + $0x44] sm:$0xf]
  %v36 = vld [vmem:[%s1 + $0x48] sm:$0xf]
  %v37 = vld [vmem:[%s1 + $0x4c] sm:$0xf]
  %v38 = vld [vmem:[%s1 + $0x50] sm:$0xf]
  %v39 = vld [vmem:[%s1 + $0x54] sm:$0xf]
  %v40 = vld [vmem:[%s1 + $0x58] sm:$0xf]
  %v41 = vld [vmem:[%s1 + $0x5c] sm:$0xf]
  %v42 = vld [vmem:[%s2] sm:$0xff]
  %v43 = vld [vmem:[%s2 + $0x8] sm:$0xff]
  %v44 = vld [vmem:[%s2 + $0x10] sm:$0xff]
  %46 = vset.pattern.permute.xlu0 0
  %47 = vperm.xlu0 %46, %v42
  %v48 = vpop.permute.xlu0 %47
  %51 = vset.pattern.permute.xlu0 0
  %52 = vperm.xlu0 %51, %v43
  %v53 = vpop.permute.xlu0 %52
  %56 = vset.pattern.permute.xlu0 0
  %57 = vperm.xlu0 %56, %v44
  %v58 = vpop.permute.xlu0 %57
  %v63 = vunpack.c.l.b16 %v15
  %v64 = vunpack.c.h.b16 %v15
  %v65 = vunpack.c.l.b16 %v16
  %v66 = vunpack.c.h.b16 %v16
  %v67 = vunpack.c.l.b16 %v17
  %v68 = vunpack.c.h.b16 %v17
  %v69 = vpack.c.b16 %v65, %v63
  %v70 = vpack.c.b16 %v66, %v64
  %v71 = vpack.c.b16 %v67, %v67
  %v72 = vpack.c.b16 %v68, %v68
  %v99 = vunpack.c.l.b16 %v18
  %v100 = vunpack.c.l.b16 %v19
  %v101 = vunpack.c.l.b16 %v20
  %v102 = vunpack.c.l.b16 %v21
  %v103 = vunpack.c.l.b16 %v22
  %v104 = vunpack.c.l.b16 %v23
  %v105 = vunpack.c.l.b16 %v24
  %v106 = vunpack.c.l.b16 %v25
  %v107 = vunpack.c.l.b16 %v26
  %v108 = vunpack.c.l.b16 %v27
  %v109 = vunpack.c.l.b16 %v28
  %v110 = vunpack.c.l.b16 %v29
  %v111 = vunpack.c.l.b16 %v30
  %v112 = vunpack.c.l.b16 %v31
  %v113 = vunpack.c.l.b16 %v32
  %v114 = vunpack.c.l.b16 %v33
  %v115 = vunpack.c.l.b16 %v34
  %v116 = vunpack.c.l.b16 %v35
  %v117 = vunpack.c.l.b16 %v36
  %v118 = vunpack.c.l.b16 %v37
  %v119 = vunpack.c.l.b16 %v38
  %v120 = vunpack.c.l.b16 %v39
  %v121 = vunpack.c.l.b16 %v40
  %v122 = vunpack.c.l.b16 %v41
  %v123 = vpack.c.b16 %v100, %v99
  %v124 = vpack.c.b16 %v102, %v101
  %v125 = vpack.c.b16 %v104, %v103
  %v126 = vpack.c.b16 %v106, %v105
  %v127 = vpack.c.b16 %v108, %v107
  %v128 = vpack.c.b16 %v110, %v109
  %v129 = vpack.c.b16 %v112, %v111
  %v130 = vpack.c.b16 %v114, %v113
  %v131 = vpack.c.b16 %v116, %v115
  %v132 = vpack.c.b16 %v118, %v117
  %v133 = vpack.c.b16 %v120, %v119
  %v134 = vpack.c.b16 %v122, %v121
  %vm147 = vcmask 523264
  %v149 = vsel %vm147, %v70, 0
  %v152 = vsel %vm147, %v72, 0
  %154 = vmatprep.subr.bf16.mxu0 0
  %155 = vmatpush1.bf16.msra.mxu0 %v123
  %156 = vmatprep.subr.bf16.mxu0 0
  %157 = vmatpush1.bf16.msra.mxu0 %v124
  %158 = vmatprep.subr.bf16.mxu0 0
  %159 = vmatpush1.bf16.msra.mxu0 %v125
  %160 = vmatprep.subr.bf16.mxu0 0
  %161 = vmatpush1.bf16.msra.mxu0 %v126
  %162 = vmatprep.subr.bf16.mxu0 0
  %163 = vmatpush1.bf16.msra.mxu0 %v127
  %164 = vmatprep.subr.bf16.mxu0 0
  %165 = vmatpush1.bf16.msra.mxu0 %v128
  %166 = vmatprep.subr.bf16.mxu0 0
  %167 = vmatpush1.bf16.msra.mxu0 %v129
  %168 = vmatprep.subr.bf16.mxu0 0
  %169 = vmatpush1.bf16.msra.mxu0 %v130
  %170 = vmatprep.subr.bf16.mxu0 0
  %171 = vmatpush1.bf16.msra.mxu0 %v131
  %172 = vmatprep.subr.bf16.mxu0 0
  %173 = vmatpush1.bf16.msra.mxu0 %v132
  %174 = vmatprep.subr.bf16.mxu0 0
  %175 = vmatpush1.bf16.msra.mxu0 %v133
  %176 = vmatprep.subr.bf16.mxu0 0
  %177 = vmatpush1.bf16.msra.mxu0 %v134
  %178 = vmatprep.subr.bf16.mxu0 0
  %179 = vmatpush1.bf16.msra.mxu0 0
  %180 = vmatprep.subr.bf16.mxu0 0
  %181 = vmatpush1.bf16.msra.mxu0 0
  %182 = vmatprep.subr.bf16.mxu0 0
  %183 = vmatpush1.bf16.msra.mxu0 0
  %184 = vmatprep.subr.bf16.mxu0 0
  %185 = vmatpush1.bf16.msra.mxu0 0
  %186 = vmatprep.mubr.bf16.mxu0 %v149
  %187 = vmatmul.mubr.bf16.gmra.mrb[0].mxu0 %v69
  %v188 = vpop.f32.mrb[0].mxu0
  %v189 = vadd.f32 %v48, %v188
  %v190 = vpop.f32.mrb[0].mxu0
  %v191 = vpop.f32.mrb[0].mxu0
  %v192 = vadd.f32 %v53, %v191
  %v193 = vpop.f32.mrb[0].mxu0
  %194 = vmatprep.mubr.bf16.mxu0 %v152
  %195 = vmatmul.mubr.bf16.gmra.mrb[0].mxu0 %v71
  %v196 = vpop.f32.mrb[0].mxu0
  %v197 = vadd.f32 %v58, %v196
  %v198 = vpop.f32.mrb[0].mxu0
  %v199 = vpop.f32.mrb[0].mxu0
  %v200 = vpop.f32.mrb[0].mxu0
  %201 = vdwg.mxu0
  %v202 = vmax.f32 %v189, 0.0
  %v203 = vmax.f32 %v192, 0.0
  %v204 = vmax.f32 %v197, 0.0
  %v205 = vpack.c.bf16 %v203, %v202
  %v206 = vpack.c.bf16 %v204, %v204
  %v209 = vunpack.c.l.b16 %v205
  %v210 = vunpack.c.h.b16 %v205
  %v211 = vunpack.c.l.b16 %v206
  %v212 = vpack.c.b16 %v209, %v209
  %v213 = vpack.c.b16 %v210, %v210
  %v214 = vpack.c.b16 %v211, %v211
  %218 = vst [vmem:[%s3] sm:$0xf] %v212
  %219 = vst [vmem:[%s3 + $0x4] sm:$0xf] %v213
  %220 = vst [vmem:[%s3 + $0x8] sm:$0xf] %v214
  // Predicated region
  $region14: #{autoencoder_forward.9} parent=0 // pred_check
    _
  $region15: #{autoencoder_forward.9} parent=0 // pred_check_branch
    %222 = sbr.rel (0) target = $region17
  $region16: #{autoencoder_forward.9} parent=0 // pred_region
    _
  $region17: #{autoencoder_forward.9} parent=0 // pred_fallthru
    _
  // Predicated region
  $region18: #{autoencoder_forward.9} parent=0 // pred_check
    _
  $region19: #{autoencoder_forward.9} parent=0 // pred_check_branch
    %224 = sbr.rel (0) target = $region21
  $region20: #{autoencoder_forward.9} parent=0 // pred_region
    _
  $region21: #{autoencoder_forward.9} parent=0 // pred_fallthru
    _

// kernel: autoencoder_forward.10
$region0: #{autoencoder_forward.10}
  #allocation0 [shape = 'u32[]', space=smem, size = 0x4, offset = 0x4, fixed_abs, tag = 'smem constant byte address 0x4 - core index']
  #allocation1 [shape = 'u32[144,128]{1,0:T(1,128)}', space=vmem, size = 0x12000, scoped, tag = 'internal scratch']
  %s0 = inlined_call_operand.vmem [shape: bf16[48,384], index: 0, kind: input, shape index: {}]
  %s1 = inlined_call_operand.vmem [shape: bf16[384,32], index: 1, kind: input, shape index: {}]
  %s2 = inlined_call_operand.vmem [shape: f32[48,1], index: 2, kind: input, shape index: {}]
  %s3 = inlined_call_operand.vmem [shape: bf16[48,32], index: 3, kind: output, shape index: {}]
  %s4 = sld [smem:[#allocation0]]
  $region22: #{autoencoder_forward.10} parent=0
    _
  %s6 = ssub.s32 1, %s4
  %s7 = scalar_select 0, %s6, %s4
  // Predicated region
  $region2: #{autoencoder_forward.10} parent=0 // pred_check
    _
  $region3: #{autoencoder_forward.10} parent=0 // pred_check_branch
    %9 = sbr.rel (0) target = $region5
  $region4: #{autoencoder_forward.10} parent=0 // pred_region
    _
  $region5: #{autoencoder_forward.10} parent=0 // pred_fallthru
    _
  // Predicated region
  $region6: #{autoencoder_forward.10} parent=0 // pred_check
    _
  $region7: #{autoencoder_forward.10} parent=0 // pred_check_branch
    %11 = sbr.rel (0) target = $region9
  $region8: #{autoencoder_forward.10} parent=0 // pred_region
    _
  $region9: #{autoencoder_forward.10} parent=0 // pred_fallthru
    _
  // Predicated region
  $region10: #{autoencoder_forward.10} parent=0 // pred_check
    _
  $region11: #{autoencoder_forward.10} parent=0 // pred_check_branch
    %13 = sbr.rel (0) target = $region13
  $region12: #{autoencoder_forward.10} parent=0 // pred_region
    _
  $region13: #{autoencoder_forward.10} parent=0 // pred_fallthru
    _
  %v15 = vld [vmem:[%s0] sm:$0xff]
  %v16 = vld [vmem:[%s0 + $0x8] sm:$0xf]
  %v17 = vld [vmem:[%s0 + $0xc] sm:$0xff]
  %v18 = vld [vmem:[%s0 + $0x14] sm:$0xf]
  %v19 = vld [vmem:[%s0 + $0x18] sm:$0xff]
  %v20 = vld [vmem:[%s0 + $0x20] sm:$0xf]
  %v21 = vld [vmem:[%s0 + $0x24] sm:$0xff]
  %v22 = vld [vmem:[%s0 + $0x2c] sm:$0xf]
  %v23 = vld [vmem:[%s0 + $0x30] sm:$0xff]
  %v24 = vld [vmem:[%s0 + $0x38] sm:$0xf]
  %v25 = vld [vmem:[%s0 + $0x3c] sm:$0xff]
  %v26 = vld [vmem:[%s0 + $0x44] sm:$0xf]
  %v27 = vld [vmem:[%s1] sm:$0xf]
  %v28 = vld [vmem:[%s1 + $0x4] sm:$0xf]
  %v29 = vld [vmem:[%s1 + $0x8] sm:$0xf]
  %v30 = vld [vmem:[%s1 + $0xc] sm:$0xf]
  %v31 = vld [vmem:[%s1 + $0x10] sm:$0xf]
  %v32 = vld [vmem:[%s1 + $0x14] sm:$0xf]
  %v33 = vld [vmem:[%s1 + $0x18] sm:$0xf]
  %v34 = vld [vmem:[%s1 + $0x1c] sm:$0xf]
  %v35 = vld [vmem:[%s1 + $0x20] sm:$0xf]
  %v36 = vld [vmem:[%s1 + $0x24] sm:$0xf]
  %v37 = vld [vmem:[%s1 + $0x28] sm:$0xf]
  %v38 = vld [vmem:[%s1 + $0x2c] sm:$0xf]
  %v39 = vld [vmem:[%s1 + $0x30] sm:$0xf]
  %v40 = vld [vmem:[%s1 + $0x34] sm:$0xf]
  %v41 = vld [vmem:[%s1 + $0x38] sm:$0xf]
  %v42 = vld [vmem:[%s1 + $0x3c] sm:$0xf]
  %v43 = vld [vmem:[%s1 + $0x40] sm:$0xf]
  %v44 = vld [vmem:[%s1 + $0x44] sm:$0xf]
  %v45 = vld [vmem:[%s1 + $0x48] sm:$0xf]
  %v46 = vld [vmem:[%s1 + $0x4c] sm:$0xf]
  %v47 = vld [vmem:[%s1 + $0x50] sm:$0xf]
  %v48 = vld [vmem:[%s1 + $0x54] sm:$0xf]
  %v49 = vld [vmem:[%s1 + $0x58] sm:$0xf]
  %v50 = vld [vmem:[%s1 + $0x5c] sm:$0xf]
  %v51 = vld [vmem:[%s1 + $0x60] sm:$0xf]
  %v52 = vld [vmem:[%s1 + $0x64] sm:$0xf]
  %v53 = vld [vmem:[%s1 + $0x68] sm:$0xf]
  %v54 = vld [vmem:[%s1 + $0x6c] sm:$0xf]
  %v55 = vld [vmem:[%s1 + $0x70] sm:$0xf]
  %v56 = vld [vmem:[%s1 + $0x74] sm:$0xf]
  %v57 = vld [vmem:[%s1 + $0x78] sm:$0xf]
  %v58 = vld [vmem:[%s1 + $0x7c] sm:$0xf]
  %v59 = vld [vmem:[%s1 + $0x80] sm:$0xf]
  %v60 = vld [vmem:[%s1 + $0x84] sm:$0xf]
  %v61 = vld [vmem:[%s1 + $0x88] sm:$0xf]
  %v62 = vld [vmem:[%s1 + $0x8c] sm:$0xf]
  %v63 = vld [vmem:[%s1 + $0x90] sm:$0xf]
  %v64 = vld [vmem:[%s1 + $0x94] sm:$0xf]
  %v65 = vld [vmem:[%s1 + $0x98] sm:$0xf]
  %v66 = vld [vmem:[%s1 + $0x9c] sm:$0xf]
  %v67 = vld [vmem:[%s1 + $0xa0] sm:$0xf]
  %v68 = vld [vmem:[%s1 + $0xa4] sm:$0xf]
  %v69 = vld [vmem:[%s1 + $0xa8] sm:$0xf]
  %v70 = vld [vmem:[%s1 + $0xac] sm:$0xf]
  %v71 = vld [vmem:[%s1 + $0xb0] sm:$0xf]
  %v72 = vld [vmem:[%s1 + $0xb4] sm:$0xf]
  %v73 = vld [vmem:[%s1 + $0xb8] sm:$0xf]
  %v74 = vld [vmem:[%s1 + $0xbc] sm:$0xf]
  %v75 = vld [vmem:[%s2] sm:$0xff]
  %v76 = vld [vmem:[%s2 + $0x8] sm:$0xff]
  %v77 = vld [vmem:[%s2 + $0x10] sm:$0xff]
  %v78 = vld [vmem:[%s2 + $0x18] sm:$0xff]
  %v79 = vld [vmem:[%s2 + $0x20] sm:$0xff]
  %v80 = vld [vmem:[%s2 + $0x28] sm:$0xff]
  %82 = vset.pattern.permute.xlu0 0
  %83 = vperm.xlu0 %82, %v75
  %v84 = vpop.permute.xlu0 %83
  %87 = vset.pattern.permute.xlu0 0
  %88 = vperm.xlu0 %87, %v76
  %v89 = vpop.permute.xlu0 %88
  %92 = vset.pattern.permute.xlu0 0
  %93 = vperm.xlu0 %92, %v77
  %v94 = vpop.permute.xlu0 %93
  %97 = vset.pattern.permute.xlu0 0
  %98 = vperm.xlu0 %97, %v78
  %v99 = vpop.permute.xlu0 %98
  %102 = vset.pattern.permute.xlu0 0
  %103 = vperm.xlu0 %102, %v79
  %v104 = vpop.permute.xlu0 %103
  %107 = vset.pattern.permute.xlu0 0
  %108 = vperm.xlu0 %107, %v80
  %v109 = vpop.permute.xlu0 %108
  %v123 = vunpack.c.l.b16 %v15
  %v124 = vunpack.c.h.b16 %v15
  %v125 = vunpack.c.l.b16 %v16
  %v126 = vunpack.c.l.b16 %v17
  %v127 = vunpack.c.h.b16 %v17
  %v128 = vunpack.c.l.b16 %v18
  %v129 = vunpack.c.l.b16 %v19
  %v130 = vunpack.c.h.b16 %v19
  %v131 = vunpack.c.l.b16 %v20
  %v132 = vunpack.c.l.b16 %v21
  %v133 = vunpack.c.h.b16 %v21
  %v134 = vunpack.c.l.b16 %v22
  %v135 = vunpack.c.l.b16 %v23
  %v136 = vunpack.c.h.b16 %v23
  %v137 = vunpack.c.l.b16 %v24
  %v138 = vunpack.c.l.b16 %v25
  %v139 = vunpack.c.h.b16 %v25
  %v140 = vunpack.c.l.b16 %v26
  %v141 = vpack.c.b16 %v126, %v123
  %v142 = vpack.c.b16 %v127, %v124
  %v143 = vpack.c.b16 %v128, %v125
  %v144 = vpack.c.b16 %v132, %v129
  %v145 = vpack.c.b16 %v133, %v130
  %v146 = vpack.c.b16 %v134, %v131
  %v147 = vpack.c.b16 %v138, %v135
  %v148 = vpack.c.b16 %v139, %v136
  %v149 = vpack.c.b16 %v140, %v137
  %v207 = vunpack.c.l.b16 %v27
  %v208 = vunpack.c.l.b16 %v28
  %v209 = vunpack.c.l.b16 %v29
  %v210 = vunpack.c.l.b16 %v30
  %v211 = vunpack.c.l.b16 %v31
  %v212 = vunpack.c.l.b16 %v32
  %v213 = vunpack.c.l.b16 %v33
  %v214 = vunpack.c.l.b16 %v34
  %v215 = vunpack.c.l.b16 %v35
  %v216 = vunpack.c.l.b16 %v36
  %v217 = vunpack.c.l.b16 %v37
  %v218 = vunpack.c.l.b16 %v38
  %v219 = vunpack.c.l.b16 %v39
  %v220 = vunpack.c.l.b16 %v40
  %v221 = vunpack.c.l.b16 %v41
  %v222 = vunpack.c.l.b16 %v42
  %v223 = vunpack.c.l.b16 %v43
  %v224 = vunpack.c.l.b16 %v44
  %v225 = vunpack.c.l.b16 %v45
  %v226 = vunpack.c.l.b16 %v46
  %v227 = vunpack.c.l.b16 %v47
  %v228 = vunpack.c.l.b16 %v48
  %v229 = vunpack.c.l.b16 %v49
  %v230 = vunpack.c.l.b16 %v50
  %v231 = vunpack.c.l.b16 %v51
  %v232 = vunpack.c.l.b16 %v52
  %v233 = vunpack.c.l.b16 %v53
  %v234 = vunpack.c.l.b16 %v54
  %v235 = vunpack.c.l.b16 %v55
  %v236 = vunpack.c.l.b16 %v56
  %v237 = vunpack.c.l.b16 %v57
  %v238 = vunpack.c.l.b16 %v58
  %v239 = vunpack.c.l.b16 %v59
  %v240 = vunpack.c.l.b16 %v60
  %v241 = vunpack.c.l.b16 %v61
  %v242 = vunpack.c.l.b16 %v62
  %v243 = vunpack.c.l.b16 %v63
  %v244 = vunpack.c.l.b16 %v64
  %v245 = vunpack.c.l.b16 %v65
  %v246 = vunpack.c.l.b16 %v66
  %v247 = vunpack.c.l.b16 %v67
  %v248 = vunpack.c.l.b16 %v68
  %v249 = vunpack.c.l.b16 %v69
  %v250 = vunpack.c.l.b16 %v70
  %v251 = vunpack.c.l.b16 %v71
  %v252 = vunpack.c.l.b16 %v72
  %v253 = vunpack.c.l.b16 %v73
  %v254 = vunpack.c.l.b16 %v74
  %v255 = vpack.c.b16 %v208, %v207
  %v256 = vpack.c.b16 %v210, %v209
  %v257 = vpack.c.b16 %v212, %v211
  %v258 = vpack.c.b16 %v214, %v213
  %v259 = vpack.c.b16 %v216, %v215
  %v260 = vpack.c.b16 %v218, %v217
  %v261 = vpack.c.b16 %v220, %v219
  %v262 = vpack.c.b16 %v222, %v221
  %v263 = vpack.c.b16 %v224, %v223
  %v264 = vpack.c.b16 %v226, %v225
  %v265 = vpack.c.b16 %v228, %v227
  %v266 = vpack.c.b16 %v230, %v229
  %v267 = vpack.c.b16 %v232, %v231
  %v268 = vpack.c.b16 %v234, %v233
  %v269 = vpack.c.b16 %v236, %v235
  %v270 = vpack.c.b16 %v238, %v237
  %v271 = vpack.c.b16 %v240, %v239
  %v272 = vpack.c.b16 %v242, %v241
  %v273 = vpack.c.b16 %v244, %v243
  %v274 = vpack.c.b16 %v246, %v245
  %v275 = vpack.c.b16 %v248, %v247
  %v276 = vpack.c.b16 %v250, %v249
  %v277 = vpack.c.b16 %v252, %v251
  %v278 = vpack.c.b16 %v254, %v253
  %303 = vmatprep.subr.bf16.mxu0 0
  %304 = vmatpush1.bf16.msra.mxu0 %v255
  %305 = vmatprep.subr.bf16.mxu0 0
  %306 = vmatpush1.bf16.msra.mxu0 %v256
  %307 = vmatprep.subr.bf16.mxu0 0
  %308 = vmatpush1.bf16.msra.mxu0 %v257
  %309 = vmatprep.subr.bf16.mxu0 0
  %310 = vmatpush1.bf16.msra.mxu0 %v258
  %311 = vmatprep.subr.bf16.mxu0 0
  %312 = vmatpush1.bf16.msra.mxu0 %v259
  %313 = vmatprep.subr.bf16.mxu0 0
  %314 = vmatpush1.bf16.msra.mxu0 %v260
  %315 = vmatprep.subr.bf16.mxu0 0
  %316 = vmatpush1.bf16.msra.mxu0 %v261
  %317 = vmatprep.subr.bf16.mxu0 0
  %318 = vmatpush1.bf16.msra.mxu0 %v262
  %319 = vmatprep.subr.bf16.mxu0 0
  %320 = vmatpush1.bf16.msra.mxu0 %v263
  %321 = vmatprep.subr.bf16.mxu0 0
  %322 = vmatpush1.bf16.msra.mxu0 %v264
  %323 = vmatprep.subr.bf16.mxu0 0
  %324 = vmatpush1.bf16.msra.mxu0 %v265
  %325 = vmatprep.subr.bf16.mxu0 0
  %326 = vmatpush1.bf16.msra.mxu0 %v266
  %327 = vmatprep.subr.bf16.mxu0 0
  %328 = vmatpush1.bf16.msra.mxu0 %v267
  %329 = vmatprep.subr.bf16.mxu0 0
  %330 = vmatpush1.bf16.msra.mxu0 %v268
  %331 = vmatprep.subr.bf16.mxu0 0
  %332 = vmatpush1.bf16.msra.mxu0 %v269
  %333 = vmatprep.subr.bf16.mxu0 0
  %334 = vmatpush1.bf16.msra.mxu0 %v270
  %335 = vmatprep.mubr.bf16.mxu0 %v142
  %336 = vmatmul.mubr.bf16.gmra.mrb[0].mxu0 %v141
  %v337 = vpop.f32.mrb[0].mxu0
  %v338 = vadd.f32 %v84, %v337
  %v339 = vpop.f32.mrb[0].mxu0
  %v340 = vpop.f32.mrb[0].mxu0
  %v341 = vadd.f32 %v89, %v340
  %v342 = vpop.f32.mrb[0].mxu0
  %343 = vmatprep.mubr.bf16.mxu0 %v145
  %344 = vmatmul.mubr.bf16.gmra.mrb[0].mxu0 %v144
  %v345 = vpop.f32.mrb[0].mxu0
  %v346 = vadd.f32 %v94, %v345
  %v347 = vpop.f32.mrb[0].mxu0
  %v348 = vpop.f32.mrb[0].mxu0
  %v349 = vadd.f32 %v99, %v348
  %v350 = vpop.f32.mrb[0].mxu0
  %351 = vmatprep.mubr.bf16.mxu0 %v148
  %352 = vmatmul.mubr.bf16.gmra.mrb[0].mxu0 %v147
  %v353 = vpop.f32.mrb[0].mxu0
  %v354 = vadd.f32 %v104, %v353
  %v355 = vpop.f32.mrb[0].mxu0
  %v356 = vpop.f32.mrb[0].mxu0
  %v357 = vadd.f32 %v109, %v356
  %v358 = vpop.f32.mrb[0].mxu0
  %359 = vdwg.mxu0
  %360 = vmatprep.subr.bf16.mxu0 0
  %361 = vmatpush1.bf16.msra.mxu0 %v271
  %362 = vmatprep.subr.bf16.mxu0 0
  %363 = vmatpush1.bf16.msra.mxu0 %v272
  %364 = vmatprep.subr.bf16.mxu0 0
  %365 = vmatpush1.bf16.msra.mxu0 %v273
  %366 = vmatprep.subr.bf16.mxu0 0
  %367 = vmatpush1.bf16.msra.mxu0 %v274
  %368 = vmatprep.subr.bf16.mxu0 0
  %369 = vmatpush1.bf16.msra.mxu0 %v275
  %370 = vmatprep.subr.bf16.mxu0 0
  %371 = vmatpush1.bf16.msra.mxu0 %v276
  %372 = vmatprep.subr.bf16.mxu0 0
  %373 = vmatpush1.bf16.msra.mxu0 %v277
  %374 = vmatprep.subr.bf16.mxu0 0
  %375 = vmatpush1.bf16.msra.mxu0 %v278
  %376 = vmatprep.subr.bf16.mxu0 0
  %377 = vmatpush1.bf16.msra.mxu0 0
  %378 = vmatprep.subr.bf16.mxu0 0
  %379 = vmatpush1.bf16.msra.mxu0 0
  %380 = vmatprep.subr.bf16.mxu0 0
  %381 = vmatpush1.bf16.msra.mxu0 0
  %382 = vmatprep.subr.bf16.mxu0 0
  %383 = vmatpush1.bf16.msra.mxu0 0
  %384 = vmatprep.subr.bf16.mxu0 0
  %385 = vmatpush1.bf16.msra.mxu0 0
  %386 = vmatprep.subr.bf16.mxu0 0
  %387 = vmatpush1.bf16.msra.mxu0 0
  %388 = vmatprep.subr.bf16.mxu0 0
  %389 = vmatpush1.bf16.msra.mxu0 0
  %390 = vmatprep.subr.bf16.mxu0 0
  %391 = vmatpush1.bf16.msra.mxu0 0
  %392 = vmatprep.mubr.bf16.mxu0 0
  %393 = vmatmul.mubr.bf16.gmra.mrb[0].mxu0 %v143
  %v394 = vpop.f32.mrb[0].mxu0
  %v395 = vadd.f32 %v338, %v394
  %v396 = vpop.f32.mrb[0].mxu0
  %v397 = vpop.f32.mrb[0].mxu0
  %v398 = vadd.f32 %v341, %v397
  %v399 = vpop.f32.mrb[0].mxu0
  %400 = vmatprep.mubr.bf16.mxu0 0
  %401 = vmatmul.mubr.bf16.gmra.mrb[0].mxu0 %v146
  %v402 = vpop.f32.mrb[0].mxu0
  %v403 = vadd.f32 %v346, %v402
  %v404 = vpop.f32.mrb[0].mxu0
  %v405 = vpop.f32.mrb[0].mxu0
  %v406 = vadd.f32 %v349, %v405
  %v407 = vpop.f32.mrb[0].mxu0
  %408 = vmatprep.mubr.bf16.mxu0 0
  %409 = vmatmul.mubr.bf16.gmra.mrb[0].mxu0 %v149
  %v410 = vpop.f32.mrb[0].mxu0
  %v411 = vadd.f32 %v354, %v410
  %v412 = vpop.f32.mrb[0].mxu0
  %v413 = vpop.f32.mrb[0].mxu0
  %v414 = vadd.f32 %v357, %v413
  %v415 = vpop.f32.mrb[0].mxu0
  %416 = vdwg.mxu0
  %v417 = vmax.f32 %v395, 0.0
  %v418 = vmax.f32 %v398, 0.0
  %v419 = vmax.f32 %v403, 0.0
  %v420 = vmax.f32 %v406, 0.0
  %v421 = vmax.f32 %v411, 0.0
  %v422 = vmax.f32 %v414, 0.0
  %v423 = vpack.c.bf16 %v418, %v417
  %v424 = vpack.c.bf16 %v420, %v419
  %v425 = vpack.c.bf16 %v422, %v421
  %v429 = vunpack.c.l.b16 %v423
  %v430 = vunpack.c.h.b16 %v423
  %v431 = vunpack.c.l.b16 %v424
  %v432 = vunpack.c.h.b16 %v424
  %v433 = vunpack.c.l.b16 %v425
  %v434 = vunpack.c.h.b16 %v425
  %v435 = vpack.c.b16 %v429, %v429
  %v436 = vpack.c.b16 %v430, %v430
  %v437 = vpack.c.b16 %v431, %v431
  %v438 = vpack.c.b16 %v432, %v432
  %v439 = vpack.c.b16 %v433, %v433
  %v440 = vpack.c.b16 %v434, %v434
  %vm447 = vcmask 257024
  %448 = vst.msk [vmem:[%s3] sm:$0xf] %vm447, %v435
  %449 = vst.msk [vmem:[%s3 + $0x4] sm:$0xf] %vm447, %v436
  %450 = vst.msk [vmem:[%s3 + $0x8] sm:$0xf] %vm447, %v437
  %451 = vst.msk [vmem:[%s3 + $0xc] sm:$0xf] %vm447, %v438
  %452 = vst.msk [vmem:[%s3 + $0x10] sm:$0xf] %vm447, %v439
  %453 = vst.msk [vmem:[%s3 + $0x14] sm:$0xf] %vm447, %v440
  // Predicated region
  $region14: #{autoencoder_forward.10} parent=0 // pred_check
    _
  $region15: #{autoencoder_forward.10} parent=0 // pred_check_branch
    %455 = sbr.rel (0) target = $region17
  $region16: #{autoencoder_forward.10} parent=0 // pred_region
    _
  $region17: #{autoencoder_forward.10} parent=0 // pred_fallthru
    _
  // Predicated region
  $region18: #{autoencoder_forward.10} parent=0 // pred_check
    _
  $region19: #{autoencoder_forward.10} parent=0 // pred_check_branch
    %457 = sbr.rel (0) target = $region21
  $region20: #{autoencoder_forward.10} parent=0 // pred_region
    _
  $region21: #{autoencoder_forward.10} parent=0 // pred_fallthru
    _

// kernel: autoencoder_forward.11
$region0: #{autoencoder_forward.11}
  #allocation0 [shape = 'u32[]', space=smem, size = 0x4, offset = 0x4, fixed_abs, tag = 'smem constant byte address 0x4 - core index']
  #allocation1 [shape = 'u32[144,128]{1,0:T(1,128)}', space=vmem, size = 0x12000, scoped, tag = 'internal scratch']
  %s0 = inlined_call_operand.vmem [shape: bf16[96,768], index: 0, kind: input, shape index: {}]
  %s1 = inlined_call_operand.vmem [shape: bf16[768,8], index: 1, kind: input, shape index: {}]
  %s2 = inlined_call_operand.vmem [shape: f32[96,1], index: 2, kind: input, shape index: {}]
  %s3 = inlined_call_operand.vmem [shape: bf16[96,8], index: 3, kind: output, shape index: {}]
  %s4 = sld [smem:[#allocation0]]
  $region22: #{autoencoder_forward.11} parent=0
    _
  %s6 = ssub.s32 1, %s4
  %s7 = scalar_select 0, %s6, %s4
  // Predicated region
  $region2: #{autoencoder_forward.11} parent=0 // pred_check
    _
  $region3: #{autoencoder_forward.11} parent=0 // pred_check_branch
    %9 = sbr.rel (0) target = $region5
  $region4: #{autoencoder_forward.11} parent=0 // pred_region
    _
  $region5: #{autoencoder_forward.11} parent=0 // pred_fallthru
    _
  // Predicated region
  $region6: #{autoencoder_forward.11} parent=0 // pred_check
    _
  $region7: #{autoencoder_forward.11} parent=0 // pred_check_branch
    %11 = sbr.rel (0) target = $region9
  $region8: #{autoencoder_forward.11} parent=0 // pred_region
    _
  $region9: #{autoencoder_forward.11} parent=0 // pred_fallthru
    _
  // Predicated region
  $region10: #{autoencoder_forward.11} parent=0 // pred_check
    _
  $region11: #{autoencoder_forward.11} parent=0 // pred_check_branch
    %13 = sbr.rel (0) target = $region13
  $region12: #{autoencoder_forward.11} parent=0 // pred_region
    _
  $region13: #{autoencoder_forward.11} parent=0 // pred_fallthru
    _
  %v15 = vld [vmem:[%s0] sm:$0xff]
  %v16 = vld [vmem:[%s0 + $0x8] sm:$0xff]
  %v17 = vld [vmem:[%s0 + $0x10] sm:$0xff]
  %v18 = vld [vmem:[%s0 + $0x18] sm:$0xff]
  %v19 = vld [vmem:[%s0 + $0x20] sm:$0xff]
  %v20 = vld [vmem:[%s0 + $0x28] sm:$0xff]
  %v21 = vld [vmem:[%s0 + $0x30] sm:$0xff]
  %v22 = vld [vmem:[%s0 + $0x38] sm:$0xff]
  %v23 = vld [vmem:[%s0 + $0x40] sm:$0xff]
  %v24 = vld [vmem:[%s0 + $0x48] sm:$0xff]
  %v25 = vld [vmem:[%s0 + $0x50] sm:$0xff]
  %v26 = vld [vmem:[%s0 + $0x58] sm:$0xff]
  %v27 = vld [vmem:[%s0 + $0x60] sm:$0xff]
  %v28 = vld [vmem:[%s0 + $0x68] sm:$0xff]
  %v29 = vld [vmem:[%s0 + $0x70] sm:$0xff]
  %v30 = vld [vmem:[%s0 + $0x78] sm:$0xff]
  %v31 = vld [vmem:[%s0 + $0x80] sm:$0xff]
  %v32 = vld [vmem:[%s0 + $0x88] sm:$0xff]
  %v33 = vld [vmem:[%s0 + $0x90] sm:$0xff]
  %v34 = vld [vmem:[%s0 + $0x98] sm:$0xff]
  %v35 = vld [vmem:[%s0 + $0xa0] sm:$0xff]
  %v36 = vld [vmem:[%s0 + $0xa8] sm:$0xff]
  %v37 = vld [vmem:[%s0 + $0xb0] sm:$0xff]
  %v38 = vld [vmem:[%s0 + $0xb8] sm:$0xff]
  %v39 = vld [vmem:[%s0 + $0xc0] sm:$0xff]
  %v40 = vld [vmem:[%s0 + $0xc8] sm:$0xff]
  %v41 = vld [vmem:[%s0 + $0xd0] sm:$0xff]
  %v42 = vld [vmem:[%s0 + $0xd8] sm:$0xff]
  %v43 = vld [vmem:[%s0 + $0xe0] sm:$0xff]
  %v44 = vld [vmem:[%s0 + $0xe8] sm:$0xff]
  %v45 = vld [vmem:[%s0 + $0xf0] sm:$0xff]
  %v46 = vld [vmem:[%s0 + $0xf8] sm:$0xff]
  %v47 = vld [vmem:[%s0 + $0x100] sm:$0xff]
  %v48 = vld [vmem:[%s0 + $0x108] sm:$0xff]
  %v49 = vld [vmem:[%s0 + $0x110] sm:$0xff]
  %v50 = vld [vmem:[%s0 + $0x118] sm:$0xff]
  %v51 = vld [vmem:[%s1] sm:$0xf]
  %v52 = vld [vmem:[%s1 + $0x4] sm:$0xf]
  %v53 = vld [vmem:[%s1 + $0x8] sm:$0xf]
  %v54 = vld [vmem:[%s1 + $0xc] sm:$0xf]
  %v55 = vld [vmem:[%s1 + $0x10] sm:$0xf]
  %v56 = vld [vmem:[%s1 + $0x14] sm:$0xf]
  %v57 = vld [vmem:[%s1 + $0x18] sm:$0xf]
  %v58 = vld [vmem:[%s1 + $0x1c] sm:$0xf]
  %v59 = vld [vmem:[%s1 + $0x20] sm:$0xf]
  %v60 = vld [vmem:[%s1 + $0x24] sm:$0xf]
  %v61 = vld [vmem:[%s1 + $0x28] sm:$0xf]
  %v62 = vld [vmem:[%s1 + $0x2c] sm:$0xf]
  %v63 = vld [vmem:[%s1 + $0x30] sm:$0xf]
  %v64 = vld [vmem:[%s1 + $0x34] sm:$0xf]
  %v65 = vld [vmem:[%s1 + $0x38] sm:$0xf]
  %v66 = vld [vmem:[%s1 + $0x3c] sm:$0xf]
  %v67 = vld [vmem:[%s1 + $0x40] sm:$0xf]
  %v68 = vld [vmem:[%s1 + $0x44] sm:$0xf]
  %v69 = vld [vmem:[%s1 + $0x48] sm:$0xf]
  %v70 = vld [vmem:[%s1 + $0x4c] sm:$0xf]
  %v71 = vld [vmem:[%s1 + $0x50] sm:$0xf]
  %v72 = vld [vmem:[%s1 + $0x54] sm:$0xf]
  %v73 = vld [vmem:[%s1 + $0x58] sm:$0xf]
  %v74 = vld [vmem:[%s1 + $0x5c] sm:$0xf]
  %v75 = vld [vmem:[%s1 + $0x60] sm:$0xf]
  %v76 = vld [vmem:[%s1 + $0x64] sm:$0xf]
  %v77 = vld [vmem:[%s1 + $0x68] sm:$0xf]
  %v78 = vld [vmem:[%s1 + $0x6c] sm:$0xf]
  %v79 = vld [vmem:[%s1 + $0x70] sm:$0xf]
  %v80 = vld [vmem:[%s1 + $0x74] sm:$0xf]
  %v81 = vld [vmem:[%s1 + $0x78] sm:$0xf]
  %v82 = vld [vmem:[%s1 + $0x7c] sm:$0xf]
  %v83 = vld [vmem:[%s1 + $0x80] sm:$0xf]
  %v84 = vld [vmem:[%s1 + $0x84] sm:$0xf]
  %v85 = vld [vmem:[%s1 + $0x88] sm:$0xf]
  %v86 = vld [vmem:[%s1 + $0x8c] sm:$0xf]
  %v87 = vld [vmem:[%s1 + $0x90] sm:$0xf]
  %v88 = vld [vmem:[%s1 + $0x94] sm:$0xf]
  %v89 = vld [vmem:[%s1 + $0x98] sm:$0xf]
  %v90 = vld [vmem:[%s1 + $0x9c] sm:$0xf]
  %v91 = vld [vmem:[%s1 + $0xa0] sm:$0xf]
  %v92 = vld [vmem:[%s1 + $0xa4] sm:$0xf]
  %v93 = vld [vmem:[%s1 + $0xa8] sm:$0xf]
  %v94 = vld [vmem:[%s1 + $0xac] sm:$0xf]
  %v95 = vld [vmem:[%s1 + $0xb0] sm:$0xf]
  %v96 = vld [vmem:[%s1 + $0xb4] sm:$0xf]
  %v97 = vld [vmem:[%s1 + $0xb8] sm:$0xf]
  %v98 = vld [vmem:[%s1 + $0xbc] sm:$0xf]
  %v99 = vld [vmem:[%s1 + $0xc0] sm:$0xf]
  %v100 = vld [vmem:[%s1 + $0xc4] sm:$0xf]
  %v101 = vld [vmem:[%s1 + $0xc8] sm:$0xf]
  %v102 = vld [vmem:[%s1 + $0xcc] sm:$0xf]
  %v103 = vld [vmem:[%s1 + $0xd0] sm:$0xf]
  %v104 = vld [vmem:[%s1 + $0xd4] sm:$0xf]
  %v105 = vld [vmem:[%s1 + $0xd8] sm:$0xf]
  %v106 = vld [vmem:[%s1 + $0xdc] sm:$0xf]
  %v107 = vld [vmem:[%s1 + $0xe0] sm:$0xf]
  %v108 = vld [vmem:[%s1 + $0xe4] sm:$0xf]
  %v109 = vld [vmem:[%s1 + $0xe8] sm:$0xf]
  %v110 = vld [vmem:[%s1 + $0xec] sm:$0xf]
  %v111 = vld [vmem:[%s1 + $0xf0] sm:$0xf]
  %v112 = vld [vmem:[%s1 + $0xf4] sm:$0xf]
  %v113 = vld [vmem:[%s1 + $0xf8] sm:$0xf]
  %v114 = vld [vmem:[%s1 + $0xfc] sm:$0xf]
  %v115 = vld [vmem:[%s1 + $0x100] sm:$0xf]
  %v116 = vld [vmem:[%s1 + $0x104] sm:$0xf]
  %v117 = vld [vmem:[%s1 + $0x108] sm:$0xf]
  %v118 = vld [vmem:[%s1 + $0x10c] sm:$0xf]
  %v119 = vld [vmem:[%s1 + $0x110] sm:$0xf]
  %v120 = vld [vmem:[%s1 + $0x114] sm:$0xf]
  %v121 = vld [vmem:[%s1 + $0x118] sm:$0xf]
  %v122 = vld [vmem:[%s1 + $0x11c] sm:$0xf]
  %v123 = vld [vmem:[%s1 + $0x120] sm:$0xf]
  %v124 = vld [vmem:[%s1 + $0x124] sm:$0xf]
  %v125 = vld [vmem:[%s1 + $0x128] sm:$0xf]
  %v126 = vld [vmem:[%s1 + $0x12c] sm:$0xf]
  %v127 = vld [vmem:[%s1 + $0x130] sm:$0xf]
  %v128 = vld [vmem:[%s1 + $0x134] sm:$0xf]
  %v129 = vld [vmem:[%s1 + $0x138] sm:$0xf]
  %v130 = vld [vmem:[%s1 + $0x13c] sm:$0xf]
  %v131 = vld [vmem:[%s1 + $0x140] sm:$0xf]
  %v132 = vld [vmem:[%s1 + $0x144] sm:$0xf]
  %v133 = vld [vmem:[%s1 + $0x148] sm:$0xf]
  %v134 = vld [vmem:[%s1 + $0x14c] sm:$0xf]
  %v135 = vld [vmem:[%s1 + $0x150] sm:$0xf]
  %v136 = vld [vmem:[%s1 + $0x154] sm:$0xf]
  %v137 = vld [vmem:[%s1 + $0x158] sm:$0xf]
  %v138 = vld [vmem:[%s1 + $0x15c] sm:$0xf]
  %v139 = vld [vmem:[%s1 + $0x160] sm:$0xf]
  %v140 = vld [vmem:[%s1 + $0x164] sm:$0xf]
  %v141 = vld [vmem:[%s1 + $0x168] sm:$0xf]
  %v142 = vld [vmem:[%s1 + $0x16c] sm:$0xf]
  %v143 = vld [vmem:[%s1 + $0x170] sm:$0xf]
  %v144 = vld [vmem:[%s1 + $0x174] sm:$0xf]
  %v145 = vld [vmem:[%s1 + $0x178] sm:$0xf]
  %v146 = vld [vmem:[%s1 + $0x17c] sm:$0xf]
  %v147 = vld [vmem:[%s2] sm:$0xff]
  %v148 = vld [vmem:[%s2 + $0x8] sm:$0xff]
  %v149 = vld [vmem:[%s2 + $0x10] sm:$0xff]
  %v150 = vld [vmem:[%s2 + $0x18] sm:$0xff]
  %v151 = vld [vmem:[%s2 + $0x20] sm:$0xff]
  %v152 = vld [vmem:[%s2 + $0x28] sm:$0xff]
  %v153 = vld [vmem:[%s2 + $0x30] sm:$0xff]
  %v154 = vld [vmem:[%s2 + $0x38] sm:$0xff]
  %v155 = vld [vmem:[%s2 + $0x40] sm:$0xff]
  %v156 = vld [vmem:[%s2 + $0x48] sm:$0xff]
  %v157 = vld [vmem:[%s2 + $0x50] sm:$0xff]
  %v158 = vld [vmem:[%s2 + $0x58] sm:$0xff]
  %160 = vset.pattern.permute.xlu0 0
  %161 = vperm.xlu0 %160, %v147
  %v162 = vpop.permute.xlu0 %161
  %165 = vset.pattern.permute.xlu0 0
  %166 = vperm.xlu0 %165, %v148
  %v167 = vpop.permute.xlu0 %166
  %170 = vset.pattern.permute.xlu0 0
  %171 = vperm.xlu0 %170, %v149
  %v172 = vpop.permute.xlu0 %171
  %175 = vset.pattern.permute.xlu0 0
  %176 = vperm.xlu0 %175, %v150
  %v177 = vpop.permute.xlu0 %176
  %180 = vset.pattern.permute.xlu0 0
  %181 = vperm.xlu0 %180, %v151
  %v182 = vpop.permute.xlu0 %181
  %185 = vset.pattern.permute.xlu0 0
  %186 = vperm.xlu0 %185, %v152
  %v187 = vpop.permute.xlu0 %186
  %190 = vset.pattern.permute.xlu0 0
  %191 = vperm.xlu0 %190, %v153
  %v192 = vpop.permute.xlu0 %191
  %195 = vset.pattern.permute.xlu0 0
  %196 = vperm.xlu0 %195, %v154
  %v197 = vpop.permute.xlu0 %196
  %200 = vset.pattern.permute.xlu0 0
  %201 = vperm.xlu0 %200, %v155
  %v202 = vpop.permute.xlu0 %201
  %205 = vset.pattern.permute.xlu0 0
  %206 = vperm.xlu0 %205, %v156
  %v207 = vpop.permute.xlu0 %206
  %210 = vset.pattern.permute.xlu0 0
  %211 = vperm.xlu0 %210, %v157
  %v212 = vpop.permute.xlu0 %211
  %215 = vset.pattern.permute.xlu0 0
  %216 = vperm.xlu0 %215, %v158
  %v217 = vpop.permute.xlu0 %216
  %v255 = vunpack.c.l.b16 %v15
  %v256 = vunpack.c.h.b16 %v15
  %v257 = vunpack.c.l.b16 %v16
  %v258 = vunpack.c.h.b16 %v16
  %v259 = vunpack.c.l.b16 %v17
  %v260 = vunpack.c.h.b16 %v17
  %v261 = vunpack.c.l.b16 %v18
  %v262 = vunpack.c.h.b16 %v18
  %v263 = vunpack.c.l.b16 %v19
  %v264 = vunpack.c.h.b16 %v19
  %v265 = vunpack.c.l.b16 %v20
  %v266 = vunpack.c.h.b16 %v20
  %v267 = vunpack.c.l.b16 %v21
  %v268 = vunpack.c.h.b16 %v21
  %v269 = vunpack.c.l.b16 %v22
  %v270 = vunpack.c.h.b16 %v22
  %v271 = vunpack.c.l.b16 %v23
  %v272 = vunpack.c.h.b16 %v23
  %v273 = vunpack.c.l.b16 %v24
  %v274 = vunpack.c.h.b16 %v24
  %v275 = vunpack.c.l.b16 %v25
  %v276 = vunpack.c.h.b16 %v25
  %v277 = vunpack.c.l.b16 %v26
  %v278 = vunpack.c.h.b16 %v26
  %v279 = vunpack.c.l.b16 %v27
  %v280 = vunpack.c.h.b16 %v27
  %v281 = vunpack.c.l.b16 %v28
  %v282 = vunpack.c.h.b16 %v28
  %v283 = vunpack.c.l.b16 %v29
  %v284 = vunpack.c.h.b16 %v29
  %v285 = vunpack.c.l.b16 %v30
  %v286 = vunpack.c.h.b16 %v30
  %v287 = vunpack.c.l.b16 %v31
  %v288 = vunpack.c.h.b16 %v31
  %v289 = vunpack.c.l.b16 %v32
  %v290 = vunpack.c.h.b16 %v32
  %v291 = vunpack.c.l.b16 %v33
  %v292 = vunpack.c.h.b16 %v33
  %v293 = vunpack.c.l.b16 %v34
  %v294 = vunpack.c.h.b16 %v34
  %v295 = vunpack.c.l.b16 %v35
  %v296 = vunpack.c.h.b16 %v35
  %v297 = vunpack.c.l.b16 %v36
  %v298 = vunpack.c.h.b16 %v36
  %v299 = vunpack.c.l.b16 %v37
  %v300 = vunpack.c.h.b16 %v37
  %v301 = vunpack.c.l.b16 %v38
  %v302 = vunpack.c.h.b16 %v38
  %v303 = vunpack.c.l.b16 %v39
  %v304 = vunpack.c.h.b16 %v39
  %v305 = vunpack.c.l.b16 %v40
  %v306 = vunpack.c.h.b16 %v40
  %v307 = vunpack.c.l.b16 %v41
  %v308 = vunpack.c.h.b16 %v41
  %v309 = vunpack.c.l.b16 %v42
  %v310 = vunpack.c.h.b16 %v42
  %v311 = vunpack.c.l.b16 %v43
  %v312 = vunpack.c.h.b16 %v43
  %v313 = vunpack.c.l.b16 %v44
  %v314 = vunpack.c.h.b16 %v44
  %v315 = vunpack.c.l.b16 %v45
  %v316 = vunpack.c.h.b16 %v45
  %v317 = vunpack.c.l.b16 %v46
  %v318 = vunpack.c.h.b16 %v46
  %v319 = vunpack.c.l.b16 %v47
  %v320 = vunpack.c.h.b16 %v47
  %v321 = vunpack.c.l.b16 %v48
  %v322 = vunpack.c.h.b16 %v48
  %v323 = vunpack.c.l.b16 %v49
  %v324 = vunpack.c.h.b16 %v49
  %v325 = vunpack.c.l.b16 %v50
  %v326 = vunpack.c.h.b16 %v50
  %v327 = vpack.c.b16 %v261, %v255
  %v328 = vpack.c.b16 %v262, %v256
  %v329 = vpack.c.b16 %v263, %v257
  %v330 = vpack.c.b16 %v264, %v258
  %v331 = vpack.c.b16 %v265, %v259
  %v332 = vpack.c.b16 %v266, %v260
  %v333 = vpack.c.b16 %v273, %v267
  %v334 = vpack.c.b16 %v274, %v268
  %v335 = vpack.c.b16 %v275, %v269
  %v336 = vpack.c.b16 %v276, %v270
  %v337 = vpack.c.b16 %v277, %v271
  %v338 = vpack.c.b16 %v278, %v272
  %v339 = vpack.c.b16 %v285, %v279
  %v340 = vpack.c.b16 %v286, %v280
  %v341 = vpack.c.b16 %v287, %v281
  %v342 = vpack.c.b16 %v288, %v282
  %v343 = vpack.c.b16 %v289, %v283
  %v344 = vpack.c.b16 %v290, %v284
  %v345 = vpack.c.b16 %v297, %v291
  %v346 = vpack.c.b16 %v298, %v292
  %v347 = vpack.c.b16 %v299, %v293
  %v348 = vpack.c.b16 %v300, %v294
  %v349 = vpack.c.b16 %v301, %v295
  %v350 = vpack.c.b16 %v302, %v296
  %v351 = vpack.c.b16 %v309, %v303
  %v352 = vpack.c.b16 %v310, %v304
  %v353 = vpack.c.b16 %v311, %v305
  %v354 = vpack.c.b16 %v312, %v306
  %v355 = vpack.c.b16 %v313, %v307
  %v356 = vpack.c.b16 %v314, %v308
  %v357 = vpack.c.b16 %v321, %v315
  %v358 = vpack.c.b16 %v322, %v316
  %v359 = vpack.c.b16 %v323, %v317
  %v360 = vpack.c.b16 %v324, %v318
  %v361 = vpack.c.b16 %v325, %v319
  %v362 = vpack.c.b16 %v326, %v320
  %v495 = vunpack.c.l.b16 %v51
  %v496 = vunpack.c.l.b16 %v52
  %v497 = vunpack.c.l.b16 %v53
  %v498 = vunpack.c.l.b16 %v54
  %v499 = vunpack.c.l.b16 %v55
  %v500 = vunpack.c.l.b16 %v56
  %v501 = vunpack.c.l.b16 %v57
  %v502 = vunpack.c.l.b16 %v58
  %v503 = vunpack.c.l.b16 %v59
  %v504 = vunpack.c.l.b16 %v60
  %v505 = vunpack.c.l.b16 %v61
  %v506 = vunpack.c.l.b16 %v62
  %v507 = vunpack.c.l.b16 %v63
  %v508 = vunpack.c.l.b16 %v64
  %v509 = vunpack.c.l.b16 %v65
  %v510 = vunpack.c.l.b16 %v66
  %v511 = vunpack.c.l.b16 %v67
  %v512 = vunpack.c.l.b16 %v68
  %v513 = vunpack.c.l.b16 %v69
  %v514 = vunpack.c.l.b16 %v70
  %v515 = vunpack.c.l.b16 %v71
  %v516 = vunpack.c.l.b16 %v72
  %v517 = vunpack.c.l.b16 %v73
  %v518 = vunpack.c.l.b16 %v74
  %v519 = vunpack.c.l.b16 %v75
  %v520 = vunpack.c.l.b16 %v76
  %v521 = vunpack.c.l.b16 %v77
  %v522 = vunpack.c.l.b16 %v78
  %v523 = vunpack.c.l.b16 %v79
  %v524 = vunpack.c.l.b16 %v80
  %v525 = vunpack.c.l.b16 %v81
  %v526 = vunpack.c.l.b16 %v82
  %v527 = vunpack.c.l.b16 %v83
  %v528 = vunpack.c.l.b16 %v84
  %v529 = vunpack.c.l.b16 %v85
  %v530 = vunpack.c.l.b16 %v86
  %v531 = vunpack.c.l.b16 %v87
  %v532 = vunpack.c.l.b16 %v88
  %v533 = vunpack.c.l.b16 %v89
  %v534 = vunpack.c.l.b16 %v90
  %v535 = vunpack.c.l.b16 %v91
  %v536 = vunpack.c.l.b16 %v92
  %v537 = vunpack.c.l.b16 %v93
  %v538 = vunpack.c.l.b16 %v94
  %v539 = vunpack.c.l.b16 %v95
  %v540 = vunpack.c.l.b16 %v96
  %v541 = vunpack.c.l.b16 %v97
  %v542 = vunpack.c.l.b16 %v98
  %v543 = vunpack.c.l.b16 %v99
  %v544 = vunpack.c.l.b16 %v100
  %v545 = vunpack.c.l.b16 %v101
  %v546 = vunpack.c.l.b16 %v102
  %v547 = vunpack.c.l.b16 %v103
  %v548 = vunpack.c.l.b16 %v104
  %v549 = vunpack.c.l.b16 %v105
  %v550 = vunpack.c.l.b16 %v106
  %v551 = vunpack.c.l.b16 %v107
  %v552 = vunpack.c.l.b16 %v108
  %v553 = vunpack.c.l.b16 %v109
  %v554 = vunpack.c.l.b16 %v110
  %v555 = vunpack.c.l.b16 %v111
  %v556 = vunpack.c.l.b16 %v112
  %v557 = vunpack.c.l.b16 %v113
  %v558 = vunpack.c.l.b16 %v114
  %v559 = vunpack.c.l.b16 %v115
  %v560 = vunpack.c.l.b16 %v116
  %v561 = vunpack.c.l.b16 %v117
  %v562 = vunpack.c.l.b16 %v118
  %v563 = vunpack.c.l.b16 %v119
  %v564 = vunpack.c.l.b16 %v120
  %v565 = vunpack.c.l.b16 %v121
  %v566 = vunpack.c.l.b16 %v122
  %v567 = vunpack.c.l.b16 %v123
  %v568 = vunpack.c.l.b16 %v124
  %v569 = vunpack.c.l.b16 %v125
  %v570 = vunpack.c.l.b16 %v126
  %v571 = vunpack.c.l.b16 %v127
  %v572 = vunpack.c.l.b16 %v128
  %v573 = vunpack.c.l.b16 %v129
  %v574 = vunpack.c.l.b16 %v130
  %v575 = vunpack.c.l.b16 %v131
  %v576 = vunpack.c.l.b16 %v132
  %v577 = vunpack.c.l.b16 %v133
  %v578 = vunpack.c.l.b16 %v134
  %v579 = vunpack.c.l.b16 %v135
  %v580 = vunpack.c.l.b16 %v136
  %v581 = vunpack.c.l.b16 %v137
  %v582 = vunpack.c.l.b16 %v138
  %v583 = vunpack.c.l.b16 %v139
  %v584 = vunpack.c.l.b16 %v140
  %v585 = vunpack.c.l.b16 %v141
  %v586 = vunpack.c.l.b16 %v142
  %v587 = vunpack.c.l.b16 %v143
  %v588 = vunpack.c.l.b16 %v144
  %v589 = vunpack.c.l.b16 %v145
  %v590 = vunpack.c.l.b16 %v146
  %v591 = vpack.c.b16 %v496, %v495
  %v592 = vpack.c.b16 %v498, %v497
  %v593 = vpack.c.b16 %v500, %v499
  %v594 = vpack.c.b16 %v502, %v501
  %v595 = vpack.c.b16 %v504, %v503
  %v596 = vpack.c.b16 %v506, %v505
  %v597 = vpack.c.b16 %v508, %v507
  %v598 = vpack.c.b16 %v510, %v509
  %v599 = vpack.c.b16 %v512, %v511
  %v600 = vpack.c.b16 %v514, %v513
  %v601 = vpack.c.b16 %v516, %v515
  %v602 = vpack.c.b16 %v518, %v517
  %v603 = vpack.c.b16 %v520, %v519
  %v604 = vpack.c.b16 %v522, %v521
  %v605 = vpack.c.b16 %v524, %v523
  %v606 = vpack.c.b16 %v526, %v525
  %v607 = vpack.c.b16 %v528, %v527
  %v608 = vpack.c.b16 %v530, %v529
  %v609 = vpack.c.b16 %v532, %v531
  %v610 = vpack.c.b16 %v534, %v533
  %v611 = vpack.c.b16 %v536, %v535
  %v612 = vpack.c.b16 %v538, %v537
  %v613 = vpack.c.b16 %v540, %v539
  %v614 = vpack.c.b16 %v542, %v541
  %v615 = vpack.c.b16 %v544, %v543
  %v616 = vpack.c.b16 %v546, %v545
  %v617 = vpack.c.b16 %v548, %v547
  %v618 = vpack.c.b16 %v550, %v549
  %v619 = vpack.c.b16 %v552, %v551
  %v620 = vpack.c.b16 %v554, %v553
  %v621 = vpack.c.b16 %v556, %v555
  %v622 = vpack.c.b16 %v558, %v557
  %v623 = vpack.c.b16 %v560, %v559
  %v624 = vpack.c.b16 %v562, %v561
  %v625 = vpack.c.b16 %v564, %v563
  %v626 = vpack.c.b16 %v566, %v565
  %v627 = vpack.c.b16 %v568, %v567
  %v628 = vpack.c.b16 %v570, %v569
  %v629 = vpack.c.b16 %v572, %v571
  %v630 = vpack.c.b16 %v574, %v573
  %v631 = vpack.c.b16 %v576, %v575
  %v632 = vpack.c.b16 %v578, %v577
  %v633 = vpack.c.b16 %v580, %v579
  %v634 = vpack.c.b16 %v582, %v581
  %v635 = vpack.c.b16 %v584, %v583
  %v636 = vpack.c.b16 %v586, %v585
  %v637 = vpack.c.b16 %v588, %v587
  %v638 = vpack.c.b16 %v590, %v589
  %687 = vmatprep.subr.bf16.mxu0 0
  %688 = vmatpush1.bf16.msra.mxu0 %v591
  %689 = vmatprep.subr.bf16.mxu0 0
  %690 = vmatpush1.bf16.msra.mxu0 %v592
  %691 = vmatprep.subr.bf16.mxu0 0
  %692 = vmatpush1.bf16.msra.mxu0 %v593
  %693 = vmatprep.subr.bf16.mxu0 0
  %694 = vmatpush1.bf16.msra.mxu0 %v594
  %695 = vmatprep.subr.bf16.mxu0 0
  %696 = vmatpush1.bf16.msra.mxu0 %v595
  %697 = vmatprep.subr.bf16.mxu0 0
  %698 = vmatpush1.bf16.msra.mxu0 %v596
  %699 = vmatprep.subr.bf16.mxu0 0
  %700 = vmatpush1.bf16.msra.mxu0 %v597
  %701 = vmatprep.subr.bf16.mxu0 0
  %702 = vmatpush1.bf16.msra.mxu0 %v598
  %703 = vmatprep.subr.bf16.mxu0 0
  %704 = vmatpush1.bf16.msra.mxu0 %v599
  %705 = vmatprep.subr.bf16.mxu0 0
  %706 = vmatpush1.bf16.msra.mxu0 %v600
  %707 = vmatprep.subr.bf16.mxu0 0
  %708 = vmatpush1.bf16.msra.mxu0 %v601
  %709 = vmatprep.subr.bf16.mxu0 0
  %710 = vmatpush1.bf16.msra.mxu0 %v602
  %711 = vmatprep.subr.bf16.mxu0 0
  %712 = vmatpush1.bf16.msra.mxu0 %v603
  %713 = vmatprep.subr.bf16.mxu0 0
  %714 = vmatpush1.bf16.msra.mxu0 %v604
  %715 = vmatprep.subr.bf16.mxu0 0
  %716 = vmatpush1.bf16.msra.mxu0 %v605
  %717 = vmatprep.subr.bf16.mxu0 0
  %718 = vmatpush1.bf16.msra.mxu0 %v606
  %719 = vmatprep.mubr.bf16.mxu0 %v328
  %720 = vmatmul.mubr.bf16.gmra.mrb[0].mxu0 %v327
  %v721 = vpop.f32.mrb[0].mxu0
  %v722 = vadd.f32 %v162, %v721
  %v723 = vpop.f32.mrb[0].mxu0
  %v724 = vpop.f32.mrb[0].mxu0
  %v725 = vadd.f32 %v167, %v724
  %v726 = vpop.f32.mrb[0].mxu0
  %727 = vmatprep.mubr.bf16.mxu0 %v334
  %728 = vmatmul.mubr.bf16.gmra.mrb[0].mxu0 %v333
  %v729 = vpop.f32.mrb[0].mxu0
  %v730 = vadd.f32 %v172, %v729
  %v731 = vpop.f32.mrb[0].mxu0
  %v732 = vpop.f32.mrb[0].mxu0
  %v733 = vadd.f32 %v177, %v732
  %v734 = vpop.f32.mrb[0].mxu0
  %735 = vmatprep.mubr.bf16.mxu0 %v340
  %736 = vmatmul.mubr.bf16.gmra.mrb[0].mxu0 %v339
  %v737 = vpop.f32.mrb[0].mxu0
  %v738 = vadd.f32 %v182, %v737
  %v739 = vpop.f32.mrb[0].mxu0
  %v740 = vpop.f32.mrb[0].mxu0
  %v741 = vadd.f32 %v187, %v740
  %v742 = vpop.f32.mrb[0].mxu0
  %743 = vmatprep.mubr.bf16.mxu0 %v346
  %744 = vmatmul.mubr.bf16.gmra.mrb[0].mxu0 %v345
  %v745 = vpop.f32.mrb[0].mxu0
  %v746 = vadd.f32 %v192, %v745
  %v747 = vpop.f32.mrb[0].mxu0
  %v748 = vpop.f32.mrb[0].mxu0
  %v749 = vadd.f32 %v197, %v748
  %v750 = vpop.f32.mrb[0].mxu0
  %751 = vmatprep.mubr.bf16.mxu0 %v352
  %752 = vmatmul.mubr.bf16.gmra.mrb[0].mxu0 %v351
  %v753 = vpop.f32.mrb[0].mxu0
  %v754 = vadd.f32 %v202, %v753
  %v755 = vpop.f32.mrb[0].mxu0
  %v756 = vpop.f32.mrb[0].mxu0
  %v757 = vadd.f32 %v207, %v756
  %v758 = vpop.f32.mrb[0].mxu0
  %759 = vmatprep.mubr.bf16.mxu0 %v358
  %760 = vmatmul.mubr.bf16.gmra.mrb[0].mxu0 %v357
  %v761 = vpop.f32.mrb[0].mxu0
  %v762 = vadd.f32 %v212, %v761
  %v763 = vpop.f32.mrb[0].mxu0
  %v764 = vpop.f32.mrb[0].mxu0
  %v765 = vadd.f32 %v217, %v764
  %v766 = vpop.f32.mrb[0].mxu0
  %767 = vdwg.mxu0
  %768 = vmatprep.subr.bf16.mxu0 0
  %769 = vmatpush1.bf16.msra.mxu0 %v607
  %770 = vmatprep.subr.bf16.mxu0 0
  %771 = vmatpush1.bf16.msra.mxu0 %v608
  %772 = vmatprep.subr.bf16.mxu0 0
  %773 = vmatpush1.bf16.msra.mxu0 %v609
  %774 = vmatprep.subr.bf16.mxu0 0
  %775 = vmatpush1.bf16.msra.mxu0 %v610
  %776 = vmatprep.subr.bf16.mxu0 0
  %777 = vmatpush1.bf16.msra.mxu0 %v611
  %778 = vmatprep.subr.bf16.mxu0 0
  %779 = vmatpush1.bf16.msra.mxu0 %v612
  %780 = vmatprep.subr.bf16.mxu0 0
  %781 = vmatpush1.bf16.msra.mxu0 %v613
  %782 = vmatprep.subr.bf16.mxu0 0
  %783 = vmatpush1.bf16.msra.mxu0 %v614
  %784 = vmatprep.subr.bf16.mxu0 0
  %785 = vmatpush1.bf16.msra.mxu0 %v615
  %786 = vmatprep.subr.bf16.mxu0 0
  %787 = vmatpush1.bf16.msra.mxu0 %v616
  %788 = vmatprep.subr.bf16.mxu0 0
  %789 = vmatpush1.bf16.msra.mxu0 %v617
  %790 = vmatprep.subr.bf16.mxu0 0
  %791 = vmatpush1.bf16.msra.mxu0 %v618
  %792 = vmatprep.subr.bf16.mxu0 0
  %793 = vmatpush1.bf16.msra.mxu0 %v619
  %794 = vmatprep.subr.bf16.mxu0 0
  %795 = vmatpush1.bf16.msra.mxu0 %v620
  %796 = vmatprep.subr.bf16.mxu0 0
  %797 = vmatpush1.bf16.msra.mxu0 %v621
  %798 = vmatprep.subr.bf16.mxu0 0
  %799 = vmatpush1.bf16.msra.mxu0 %v622
  %800 = vmatprep.mubr.bf16.mxu0 %v330
  %801 = vmatmul.mubr.bf16.gmra.mrb[0].mxu0 %v329
  %v802 = vpop.f32.mrb[0].mxu0
  %v803 = vadd.f32 %v722, %v802
  %v804 = vpop.f32.mrb[0].mxu0
  %v805 = vpop.f32.mrb[0].mxu0
  %v806 = vadd.f32 %v725, %v805
  %v807 = vpop.f32.mrb[0].mxu0
  %808 = vmatprep.mubr.bf16.mxu0 %v336
  %809 = vmatmul.mubr.bf16.gmra.mrb[0].mxu0 %v335
  %v810 = vpop.f32.mrb[0].mxu0
  %v811 = vadd.f32 %v730, %v810
  %v812 = vpop.f32.mrb[0].mxu0
  %v813 = vpop.f32.mrb[0].mxu0
  %v814 = vadd.f32 %v733, %v813
  %v815 = vpop.f32.mrb[0].mxu0
  %816 = vmatprep.mubr.bf16.mxu0 %v342
  %817 = vmatmul.mubr.bf16.gmra.mrb[0].mxu0 %v341
  %v818 = vpop.f32.mrb[0].mxu0
  %v819 = vadd.f32 %v738, %v818
  %v820 = vpop.f32.mrb[0].mxu0
  %v821 = vpop.f32.mrb[0].mxu0
  %v822 = vadd.f32 %v741, %v821
  %v823 = vpop.f32.mrb[0].mxu0
  %824 = vmatprep.mubr.bf16.mxu0 %v348
  %825 = vmatmul.mubr.bf16.gmra.mrb[0].mxu0 %v347
  %v826 = vpop.f32.mrb[0].mxu0
  %v827 = vadd.f32 %v746, %v826
  %v828 = vpop.f32.mrb[0].mxu0
  %v829 = vpop.f32.mrb[0].mxu0
  %v830 = vadd.f32 %v749, %v829
  %v831 = vpop.f32.mrb[0].mxu0
  %832 = vmatprep.mubr.bf16.mxu0 %v354
  %833 = vmatmul.mubr.bf16.gmra.mrb[0].mxu0 %v353
  %v834 = vpop.f32.mrb[0].mxu0
  %v835 = vadd.f32 %v754, %v834
  %v836 = vpop.f32.mrb[0].mxu0
  %v837 = vpop.f32.mrb[0].mxu0
  %v838 = vadd.f32 %v757, %v837
  %v839 = vpop.f32.mrb[0].mxu0
  %840 = vmatprep.mubr.bf16.mxu0 %v360
  %841 = vmatmul.mubr.bf16.gmra.mrb[0].mxu0 %v359
  %v842 = vpop.f32.mrb[0].mxu0
  %v843 = vadd.f32 %v762, %v842
  %v844 = vpop.f32.mrb[0].mxu0
  %v845 = vpop.f32.mrb[0].mxu0
  %v846 = vadd.f32 %v765, %v845
  %v847 = vpop.f32.mrb[0].mxu0
  %848 = vdwg.mxu0
  %849 = vmatprep.subr.bf16.mxu0 0
  %850 = vmatpush1.bf16.msra.mxu0 %v623
  %851 = vmatprep.subr.bf16.mxu0 0
  %852 = vmatpush1.bf16.msra.mxu0 %v624
  %853 = vmatprep.subr.bf16.mxu0 0
  %854 = vmatpush1.bf16.msra.mxu0 %v625
  %855 = vmatprep.subr.bf16.mxu0 0
  %856 = vmatpush1.bf16.msra.mxu0 %v626
  %857 = vmatprep.subr.bf16.mxu0 0
  %858 = vmatpush1.bf16.msra.mxu0 %v627
  %859 = vmatprep.subr.bf16.mxu0 0
  %860 = vmatpush1.bf16.msra.mxu0 %v628
  %861 = vmatprep.subr.bf16.mxu0 0
  %862 = vmatpush1.bf16.msra.mxu0 %v629
  %863 = vmatprep.subr.bf16.mxu0 0
  %864 = vmatpush1.bf16.msra.mxu0 %v630
  %865 = vmatprep.subr.bf16.mxu0 0
  %866 = vmatpush1.bf16.msra.mxu0 %v631
  %867 = vmatprep.subr.bf16.mxu0 0
  %868 = vmatpush1.bf16.msra.mxu0 %v632
  %869 = vmatprep.subr.bf16.mxu0 0
  %870 = vmatpush1.bf16.msra.mxu0 %v633
  %871 = vmatprep.subr.bf16.mxu0 0
  %872 = vmatpush1.bf16.msra.mxu0 %v634
  %873 = vmatprep.subr.bf16.mxu0 0
  %874 = vmatpush1.bf16.msra.mxu0 %v635
  %875 = vmatprep.subr.bf16.mxu0 0
  %876 = vmatpush1.bf16.msra.mxu0 %v636
  %877 = vmatprep.subr.bf16.mxu0 0
  %878 = vmatpush1.bf16.msra.mxu0 %v637
  %879 = vmatprep.subr.bf16.mxu0 0
  %880 = vmatpush1.bf16.msra.mxu0 %v638
  %881 = vmatprep.mubr.bf16.mxu0 %v332
  %882 = vmatmul.mubr.bf16.gmra.mrb[0].mxu0 %v331
  %v883 = vpop.f32.mrb[0].mxu0
  %v884 = vadd.f32 %v803, %v883
  %v885 = vpop.f32.mrb[0].mxu0
  %v886 = vpop.f32.mrb[0].mxu0
  %v887 = vadd.f32 %v806, %v886
  %v888 = vpop.f32.mrb[0].mxu0
  %889 = vmatprep.mubr.bf16.mxu0 %v338
  %890 = vmatmul.mubr.bf16.gmra.mrb[0].mxu0 %v337
  %v891 = vpop.f32.mrb[0].mxu0
  %v892 = vadd.f32 %v811, %v891
  %v893 = vpop.f32.mrb[0].mxu0
  %v894 = vpop.f32.mrb[0].mxu0
  %v895 = vadd.f32 %v814, %v894
  %v896 = vpop.f32.mrb[0].mxu0
  %897 = vmatprep.mubr.bf16.mxu0 %v344
  %898 = vmatmul.mubr.bf16.gmra.mrb[0].mxu0 %v343
  %v899 = vpop.f32.mrb[0].mxu0
  %v900 = vadd.f32 %v819, %v899
  %v901 = vpop.f32.mrb[0].mxu0
  %v902 = vpop.f32.mrb[0].mxu0
  %v903 = vadd.f32 %v822, %v902
  %v904 = vpop.f32.mrb[0].mxu0
  %905 = vmatprep.mubr.bf16.mxu0 %v350
  %906 = vmatmul.mubr.bf16.gmra.mrb[0].mxu0 %v349
  %v907 = vpop.f32.mrb[0].mxu0
  %v908 = vadd.f32 %v827, %v907
  %v909 = vpop.f32.mrb[0].mxu0
  %v910 = vpop.f32.mrb[0].mxu0
  %v911 = vadd.f32 %v830, %v910
  %v912 = vpop.f32.mrb[0].mxu0
  %913 = vmatprep.mubr.bf16.mxu0 %v356
  %914 = vmatmul.mubr.bf16.gmra.mrb[0].mxu0 %v355
  %v915 = vpop.f32.mrb[0].mxu0
  %v916 = vadd.f32 %v835, %v915
  %v917 = vpop.f32.mrb[0].mxu0
  %v918 = vpop.f32.mrb[0].mxu0
  %v919 = vadd.f32 %v838, %v918
  %v920 = vpop.f32.mrb[0].mxu0
  %921 = vmatprep.mubr.bf16.mxu0 %v362
  %922 = vmatmul.mubr.bf16.gmra.mrb[0].mxu0 %v361
  %v923 = vpop.f32.mrb[0].mxu0
  %v924 = vadd.f32 %v843, %v923
  %v925 = vpop.f32.mrb[0].mxu0
  %v926 = vpop.f32.mrb[0].mxu0
  %v927 = vadd.f32 %v846, %v926
  %v928 = vpop.f32.mrb[0].mxu0
  %929 = vdwg.mxu0
  %v930 = vmax.f32 %v884, 0.0
  %v931 = vmax.f32 %v887, 0.0
  %v932 = vmax.f32 %v892, 0.0
  %v933 = vmax.f32 %v895, 0.0
  %v934 = vmax.f32 %v900, 0.0
  %v935 = vmax.f32 %v903, 0.0
  %v936 = vmax.f32 %v908, 0.0
  %v937 = vmax.f32 %v911, 0.0
  %v938 = vmax.f32 %v916, 0.0
  %v939 = vmax.f32 %v919, 0.0
  %v940 = vmax.f32 %v924, 0.0
  %v941 = vmax.f32 %v927, 0.0
  %v942 = vpack.c.bf16 %v931, %v930
  %v943 = vpack.c.bf16 %v933, %v932
  %v944 = vpack.c.bf16 %v935, %v934
  %v945 = vpack.c.bf16 %v937, %v936
  %v946 = vpack.c.bf16 %v939, %v938
  %v947 = vpack.c.bf16 %v941, %v940
  %v954 = vunpack.c.l.b16 %v942
  %v955 = vunpack.c.h.b16 %v942
  %v956 = vunpack.c.l.b16 %v943
  %v957 = vunpack.c.h.b16 %v943
  %v958 = vunpack.c.l.b16 %v944
  %v959 = vunpack.c.h.b16 %v944
  %v960 = vunpack.c.l.b16 %v945
  %v961 = vunpack.c.h.b16 %v945
  %v962 = vunpack.c.l.b16 %v946
  %v963 = vunpack.c.h.b16 %v946
  %v964 = vunpack.c.l.b16 %v947
  %v965 = vunpack.c.h.b16 %v947
  %v966 = vpack.c.b16 %v954, %v954
  %v967 = vpack.c.b16 %v955, %v955
  %v968 = vpack.c.b16 %v956, %v956
  %v969 = vpack.c.b16 %v957, %v957
  %v970 = vpack.c.b16 %v958, %v958
  %v971 = vpack.c.b16 %v959, %v959
  %v972 = vpack.c.b16 %v960, %v960
  %v973 = vpack.c.b16 %v961, %v961
  %v974 = vpack.c.b16 %v962, %v962
  %v975 = vpack.c.b16 %v963, %v963
  %v976 = vpack.c.b16 %v964, %v964
  %v977 = vpack.c.b16 %v965, %v965
  %vm990 = vcmask 60416
  %991 = vst.msk [vmem:[%s3] sm:$0xf] %vm990, %v966
  %992 = vst.msk [vmem:[%s3 + $0x4] sm:$0xf] %vm990, %v967
  %993 = vst.msk [vmem:[%s3 + $0x8] sm:$0xf] %vm990, %v968
  %994 = vst.msk [vmem:[%s3 + $0xc] sm:$0xf] %vm990, %v969
  %995 = vst.msk [vmem:[%s3 + $0x10] sm:$0xf] %vm990, %v970
  %996 = vst.msk [vmem:[%s3 + $0x14] sm:$0xf] %vm990, %v971
  %997 = vst.msk [vmem:[%s3 + $0x18] sm:$0xf] %vm990, %v972
  %998 = vst.msk [vmem:[%s3 + $0x1c] sm:$0xf] %vm990, %v973
  %999 = vst.msk [vmem:[%s3 + $0x20] sm:$0xf] %vm990, %v974
  %1000 = vst.msk [vmem:[%s3 + $0x24] sm:$0xf] %vm990, %v975
  %1001 = vst.msk [vmem:[%s3 + $0x28] sm:$0xf] %vm990, %v976
  %1002 = vst.msk [vmem:[%s3 + $0x2c] sm:$0xf] %vm990, %v977
  // Predicated region
  $region14: #{autoencoder_forward.11} parent=0 // pred_check
    _
  $region15: #{autoencoder_forward.11} parent=0 // pred_check_branch
    %1004 = sbr.rel (0) target = $region17
  $region16: #{autoencoder_forward.11} parent=0 // pred_region
    _
  $region17: #{autoencoder_forward.11} parent=0 // pred_fallthru
    _
  // Predicated region
  $region18: #{autoencoder_forward.11} parent=0 // pred_check
    _
  $region19: #{autoencoder_forward.11} parent=0 // pred_check_branch
    %1006 = sbr.rel (0) target = $region21
  $region20: #{autoencoder_forward.11} parent=0 // pred_region
    _
  $region21: #{autoencoder_forward.11} parent=0 // pred_fallthru
    _

// kernel: autoencoder_forward.12
$region0: #{autoencoder_forward.12}
  #allocation0 [shape = 'u32[]', space=smem, size = 0x4, offset = 0x4, fixed_abs, tag = 'smem constant byte address 0x4 - core index']
  #allocation1 [shape = 'u32[144,128]{1,0:T(1,128)}', space=vmem, size = 0x12000, scoped, tag = 'internal scratch']
  %s0 = inlined_call_operand.vmem [shape: bf16[192,864], index: 0, kind: input, shape index: {}]
  %s1 = inlined_call_operand.vmem [shape: bf16[864,8], index: 1, kind: input, shape index: {}]
  %s2 = inlined_call_operand.vmem [shape: f32[192,1], index: 2, kind: input, shape index: {}]
  %s3 = inlined_call_operand.vmem [shape: bf16[192,8], index: 3, kind: output, shape index: {}]
  %s4 = sld [smem:[#allocation0]]
  $region22: #{autoencoder_forward.12} parent=0
    _
  %s6 = ssub.s32 1, %s4
  %s7 = scalar_select 0, %s6, %s4
  // Predicated region
  $region2: #{autoencoder_forward.12} parent=0 // pred_check
    _
  $region3: #{autoencoder_forward.12} parent=0 // pred_check_branch
    %9 = sbr.rel (0) target = $region5
  $region4: #{autoencoder_forward.12} parent=0 // pred_region
    _
  $region5: #{autoencoder_forward.12} parent=0 // pred_fallthru
    _
  // Predicated region
  $region6: #{autoencoder_forward.12} parent=0 // pred_check
    _
  $region7: #{autoencoder_forward.12} parent=0 // pred_check_branch
    %11 = sbr.rel (0) target = $region9
  $region8: #{autoencoder_forward.12} parent=0 // pred_region
    _
  $region9: #{autoencoder_forward.12} parent=0 // pred_fallthru
    _
  // Predicated region
  $region10: #{autoencoder_forward.12} parent=0 // pred_check
    _
  $region11: #{autoencoder_forward.12} parent=0 // pred_check_branch
    %13 = sbr.rel (0) target = $region13
  $region12: #{autoencoder_forward.12} parent=0 // pred_region
    _
  $region13: #{autoencoder_forward.12} parent=0 // pred_fallthru
    _
  %v15 = vld [vmem:[%s0] sm:$0xff]
  %v16 = vld [vmem:[%s0 + $0x8] sm:$0xff]
  %v17 = vld [vmem:[%s0 + $0x10] sm:$0xff]
  %v18 = vld [vmem:[%s0 + $0x18] sm:$0xf]
  %v19 = vld [vmem:[%s0 + $0x1c] sm:$0xff]
  %v20 = vld [vmem:[%s0 + $0x24] sm:$0xff]
  %v21 = vld [vmem:[%s0 + $0x2c] sm:$0xff]
  %v22 = vld [vmem:[%s0 + $0x34] sm:$0xf]
  %v23 = vld [vmem:[%s0 + $0x38] sm:$0xff]
  %v24 = vld [vmem:[%s0 + $0x40] sm:$0xff]
  %v25 = vld [vmem:[%s0 + $0x48] sm:$0xff]
  %v26 = vld [vmem:[%s0 + $0x50] sm:$0xf]
  %v27 = vld [vmem:[%s0 + $0x54] sm:$0xff]
  %v28 = vld [vmem:[%s0 + $0x5c] sm:$0xff]
  %v29 = vld [vmem:[%s0 + $0x64] sm:$0xff]
  %v30 = vld [vmem:[%s0 + $0x6c] sm:$0xf]
  %v31 = vld [vmem:[%s0 + $0x70] sm:$0xff]
  %v32 = vld [vmem:[%s0 + $0x78] sm:$0xff]
  %v33 = vld [vmem:[%s0 + $0x80] sm:$0xff]
  %v34 = vld [vmem:[%s0 + $0x88] sm:$0xf]
  %v35 = vld [vmem:[%s0 + $0x8c] sm:$0xff]
  %v36 = vld [vmem:[%s0 + $0x94] sm:$0xff]
  %v37 = vld [vmem:[%s0 + $0x9c] sm:$0xff]
  %v38 = vld [vmem:[%s0 + $0xa4] sm:$0xf]
  %v39 = vld [vmem:[%s0 + $0xa8] sm:$0xff]
  %v40 = vld [vmem:[%s0 + $0xb0] sm:$0xff]
  %v41 = vld [vmem:[%s0 + $0xb8] sm:$0xff]
  %v42 = vld [vmem:[%s0 + $0xc0] sm:$0xf]
  %v43 = vld [vmem:[%s0 + $0xc4] sm:$0xff]
  %v44 = vld [vmem:[%s0 + $0xcc] sm:$0xff]
  %v45 = vld [vmem:[%s0 + $0xd4] sm:$0xff]
  %v46 = vld [vmem:[%s0 + $0xdc] sm:$0xf]
  %v47 = vld [vmem:[%s0 + $0xe0] sm:$0xff]
  %v48 = vld [vmem:[%s0 + $0xe8] sm:$0xff]
  %v49 = vld [vmem:[%s0 + $0xf0] sm:$0xff]
  %v50 = vld [vmem:[%s0 + $0xf8] sm:$0xf]
  %v51 = vld [vmem:[%s0 + $0xfc] sm:$0xff]
  %v52 = vld [vmem:[%s0 + $0x104] sm:$0xff]
  %v53 = vld [vmem:[%s0 + $0x10c] sm:$0xff]
  %v54 = vld [vmem:[%s0 + $0x114] sm:$0xf]
  %v55 = vld [vmem:[%s0 + $0x118] sm:$0xff]
  %v56 = vld [vmem:[%s0 + $0x120] sm:$0xff]
  %v57 = vld [vmem:[%s0 + $0x128] sm:$0xff]
  %v58 = vld [vmem:[%s0 + $0x130] sm:$0xf]
  %v59 = vld [vmem:[%s0 + $0x134] sm:$0xff]
  %v60 = vld [vmem:[%s0 + $0x13c] sm:$0xff]
  %v61 = vld [vmem:[%s0 + $0x144] sm:$0xff]
  %v62 = vld [vmem:[%s0 + $0x14c] sm:$0xf]
  %v63 = vld [vmem:[%s0 + $0x150] sm:$0xff]
  %v64 = vld [vmem:[%s0 + $0x158] sm:$0xff]
  %v65 = vld [vmem:[%s0 + $0x160] sm:$0xff]
  %v66 = vld [vmem:[%s0 + $0x168] sm:$0xf]
  %v67 = vld [vmem:[%s0 + $0x16c] sm:$0xff]
  %v68 = vld [vmem:[%s0 + $0x174] sm:$0xff]
  %v69 = vld [vmem:[%s0 + $0x17c] sm:$0xff]
  %v70 = vld [vmem:[%s0 + $0x184] sm:$0xf]
  %v71 = vld [vmem:[%s0 + $0x188] sm:$0xff]
  %v72 = vld [vmem:[%s0 + $0x190] sm:$0xff]
  %v73 = vld [vmem:[%s0 + $0x198] sm:$0xff]
  %v74 = vld [vmem:[%s0 + $0x1a0] sm:$0xf]
  %v75 = vld [vmem:[%s0 + $0x1a4] sm:$0xff]
  %v76 = vld [vmem:[%s0 + $0x1ac] sm:$0xff]
  %v77 = vld [vmem:[%s0 + $0x1b4] sm:$0xff]
  %v78 = vld [vmem:[%s0 + $0x1bc] sm:$0xf]
  %v79 = vld [vmem:[%s0 + $0x1c0] sm:$0xff]
  %v80 = vld [vmem:[%s0 + $0x1c8] sm:$0xff]
  %v81 = vld [vmem:[%s0 + $0x1d0] sm:$0xff]
  %v82 = vld [vmem:[%s0 + $0x1d8] sm:$0xf]
  %v83 = vld [vmem:[%s0 + $0x1dc] sm:$0xff]
  %v84 = vld [vmem:[%s0 + $0x1e4] sm:$0xff]
  %v85 = vld [vmem:[%s0 + $0x1ec] sm:$0xff]
  %v86 = vld [vmem:[%s0 + $0x1f4] sm:$0xf]
  %v87 = vld [vmem:[%s0 + $0x1f8] sm:$0xff]
  %v88 = vld [vmem:[%s0 + $0x200] sm:$0xff]
  %v89 = vld [vmem:[%s0 + $0x208] sm:$0xff]
  %v90 = vld [vmem:[%s0 + $0x210] sm:$0xf]
  %v91 = vld [vmem:[%s0 + $0x214] sm:$0xff]
  %v92 = vld [vmem:[%s0 + $0x21c] sm:$0xff]
  %v93 = vld [vmem:[%s0 + $0x224] sm:$0xff]
  %v94 = vld [vmem:[%s0 + $0x22c] sm:$0xf]
  %v95 = vld [vmem:[%s0 + $0x230] sm:$0xff]
  %v96 = vld [vmem:[%s0 + $0x238] sm:$0xff]
  %v97 = vld [vmem:[%s0 + $0x240] sm:$0xff]
  %v98 = vld [vmem:[%s0 + $0x248] sm:$0xf]
  %v99 = vld [vmem:[%s0 + $0x24c] sm:$0xff]
  %v100 = vld [vmem:[%s0 + $0x254] sm:$0xff]
  %v101 = vld [vmem:[%s0 + $0x25c] sm:$0xff]
  %v102 = vld [vmem:[%s0 + $0x264] sm:$0xf]
  %v103 = vld [vmem:[%s0 + $0x268] sm:$0xff]
  %v104 = vld [vmem:[%s0 + $0x270] sm:$0xff]
  %v105 = vld [vmem:[%s0 + $0x278] sm:$0xff]
  %v106 = vld [vmem:[%s0 + $0x280] sm:$0xf]
  %v107 = vld [vmem:[%s0 + $0x284] sm:$0xff]
  %v108 = vld [vmem:[%s0 + $0x28c] sm:$0xff]
  %v109 = vld [vmem:[%s0 + $0x294] sm:$0xff]
  %v110 = vld [vmem:[%s0 + $0x29c] sm:$0xf]
  %v111 = vld [vmem:[%s1] sm:$0xf]
  %v112 = vld [vmem:[%s1 + $0x4] sm:$0xf]
  %v113 = vld [vmem:[%s1 + $0x8] sm:$0xf]
  %v114 = vld [vmem:[%s1 + $0xc] sm:$0xf]
  %v115 = vld [vmem:[%s1 + $0x10] sm:$0xf]
  %v116 = vld [vmem:[%s1 + $0x14] sm:$0xf]
  %v117 = vld [vmem:[%s1 + $0x18] sm:$0xf]
  %v118 = vld [vmem:[%s1 + $0x1c] sm:$0xf]
  %v119 = vld [vmem:[%s1 + $0x20] sm:$0xf]
  %v120 = vld [vmem:[%s1 + $0x24] sm:$0xf]
  %v121 = vld [vmem:[%s1 + $0x28] sm:$0xf]
  %v122 = vld [vmem:[%s1 + $0x2c] sm:$0xf]
  %v123 = vld [vmem:[%s1 + $0x30] sm:$0xf]
  %v124 = vld [vmem:[%s1 + $0x34] sm:$0xf]
  %v125 = vld [vmem:[%s1 + $0x38] sm:$0xf]
  %v126 = vld [vmem:[%s1 + $0x3c] sm:$0xf]
  %v127 = vld [vmem:[%s1 + $0x40] sm:$0xf]
  %v128 = vld [vmem:[%s1 + $0x44] sm:$0xf]
  %v129 = vld [vmem:[%s1 + $0x48] sm:$0xf]
  %v130 = vld [vmem:[%s1 + $0x4c] sm:$0xf]
  %v131 = vld [vmem:[%s1 + $0x50] sm:$0xf]
  %v132 = vld [vmem:[%s1 + $0x54] sm:$0xf]
  %v133 = vld [vmem:[%s1 + $0x58] sm:$0xf]
  %v134 = vld [vmem:[%s1 + $0x5c] sm:$0xf]
  %v135 = vld [vmem:[%s1 + $0x60] sm:$0xf]
  %v136 = vld [vmem:[%s1 + $0x64] sm:$0xf]
  %v137 = vld [vmem:[%s1 + $0x68] sm:$0xf]
  %v138 = vld [vmem:[%s1 + $0x6c] sm:$0xf]
  %v139 = vld [vmem:[%s1 + $0x70] sm:$0xf]
  %v140 = vld [vmem:[%s1 + $0x74] sm:$0xf]
  %v141 = vld [vmem:[%s1 + $0x78] sm:$0xf]
  %v142 = vld [vmem:[%s1 + $0x7c] sm:$0xf]
  %v143 = vld [vmem:[%s1 + $0x80] sm:$0xf]
  %v144 = vld [vmem:[%s1 + $0x84] sm:$0xf]
  %v145 = vld [vmem:[%s1 + $0x88] sm:$0xf]
  %v146 = vld [vmem:[%s1 + $0x8c] sm:$0xf]
  %v147 = vld [vmem:[%s1 + $0x90] sm:$0xf]
  %v148 = vld [vmem:[%s1 + $0x94] sm:$0xf]
  %v149 = vld [vmem:[%s1 + $0x98] sm:$0xf]
  %v150 = vld [vmem:[%s1 + $0x9c] sm:$0xf]
  %v151 = vld [vmem:[%s1 + $0xa0] sm:$0xf]
  %v152 = vld [vmem:[%s1 + $0xa4] sm:$0xf]
  %v153 = vld [vmem:[%s1 + $0xa8] sm:$0xf]
  %v154 = vld [vmem:[%s1 + $0xac] sm:$0xf]
  %v155 = vld [vmem:[%s1 + $0xb0] sm:$0xf]
  %v156 = vld [vmem:[%s1 + $0xb4] sm:$0xf]
  %v157 = vld [vmem:[%s1 + $0xb8] sm:$0xf]
  %v158 = vld [vmem:[%s1 + $0xbc] sm:$0xf]
  %v159 = vld [vmem:[%s1 + $0xc0] sm:$0xf]
  %v160 = vld [vmem:[%s1 + $0xc4] sm:$0xf]
  %v161 = vld [vmem:[%s1 + $0xc8] sm:$0xf]
  %v162 = vld [vmem:[%s1 + $0xcc] sm:$0xf]
  %v163 = vld [vmem:[%s1 + $0xd0] sm:$0xf]
  %v164 = vld [vmem:[%s1 + $0xd4] sm:$0xf]
  %v165 = vld [vmem:[%s1 + $0xd8] sm:$0xf]
  %v166 = vld [vmem:[%s1 + $0xdc] sm:$0xf]
  %v167 = vld [vmem:[%s1 + $0xe0] sm:$0xf]
  %v168 = vld [vmem:[%s1 + $0xe4] sm:$0xf]
  %v169 = vld [vmem:[%s1 + $0xe8] sm:$0xf]
  %v170 = vld [vmem:[%s1 + $0xec] sm:$0xf]
  %v171 = vld [vmem:[%s1 + $0xf0] sm:$0xf]
  %v172 = vld [vmem:[%s1 + $0xf4] sm:$0xf]
  %v173 = vld [vmem:[%s1 + $0xf8] sm:$0xf]
  %v174 = vld [vmem:[%s1 + $0xfc] sm:$0xf]
  %v175 = vld [vmem:[%s1 + $0x100] sm:$0xf]
  %v176 = vld [vmem:[%s1 + $0x104] sm:$0xf]
  %v177 = vld [vmem:[%s1 + $0x108] sm:$0xf]
  %v178 = vld [vmem:[%s1 + $0x10c] sm:$0xf]
  %v179 = vld [vmem:[%s1 + $0x110] sm:$0xf]
  %v180 = vld [vmem:[%s1 + $0x114] sm:$0xf]
  %v181 = vld [vmem:[%s1 + $0x118] sm:$0xf]
  %v182 = vld [vmem:[%s1 + $0x11c] sm:$0xf]
  %v183 = vld [vmem:[%s1 + $0x120] sm:$0xf]
  %v184 = vld [vmem:[%s1 + $0x124] sm:$0xf]
  %v185 = vld [vmem:[%s1 + $0x128] sm:$0xf]
  %v186 = vld [vmem:[%s1 + $0x12c] sm:$0xf]
  %v187 = vld [vmem:[%s1 + $0x130] sm:$0xf]
  %v188 = vld [vmem:[%s1 + $0x134] sm:$0xf]
  %v189 = vld [vmem:[%s1 + $0x138] sm:$0xf]
  %v190 = vld [vmem:[%s1 + $0x13c] sm:$0xf]
  %v191 = vld [vmem:[%s1 + $0x140] sm:$0xf]
  %v192 = vld [vmem:[%s1 + $0x144] sm:$0xf]
  %v193 = vld [vmem:[%s1 + $0x148] sm:$0xf]
  %v194 = vld [vmem:[%s1 + $0x14c] sm:$0xf]
  %v195 = vld [vmem:[%s1 + $0x150] sm:$0xf]
  %v196 = vld [vmem:[%s1 + $0x154] sm:$0xf]
  %v197 = vld [vmem:[%s1 + $0x158] sm:$0xf]
  %v198 = vld [vmem:[%s1 + $0x15c] sm:$0xf]
  %v199 = vld [vmem:[%s1 + $0x160] sm:$0xf]
  %v200 = vld [vmem:[%s1 + $0x164] sm:$0xf]
  %v201 = vld [vmem:[%s1 + $0x168] sm:$0xf]
  %v202 = vld [vmem:[%s1 + $0x16c] sm:$0xf]
  %v203 = vld [vmem:[%s1 + $0x170] sm:$0xf]
  %v204 = vld [vmem:[%s1 + $0x174] sm:$0xf]
  %v205 = vld [vmem:[%s1 + $0x178] sm:$0xf]
  %v206 = vld [vmem:[%s1 + $0x17c] sm:$0xf]
  %v207 = vld [vmem:[%s1 + $0x180] sm:$0xf]
  %v208 = vld [vmem:[%s1 + $0x184] sm:$0xf]
  %v209 = vld [vmem:[%s1 + $0x188] sm:$0xf]
  %v210 = vld [vmem:[%s1 + $0x18c] sm:$0xf]
  %v211 = vld [vmem:[%s1 + $0x190] sm:$0xf]
  %v212 = vld [vmem:[%s1 + $0x194] sm:$0xf]
  %v213 = vld [vmem:[%s1 + $0x198] sm:$0xf]
  %v214 = vld [vmem:[%s1 + $0x19c] sm:$0xf]
  %v215 = vld [vmem:[%s1 + $0x1a0] sm:$0xf]
  %v216 = vld [vmem:[%s1 + $0x1a4] sm:$0xf]
  %v217 = vld [vmem:[%s1 + $0x1a8] sm:$0xf]
  %v218 = vld [vmem:[%s1 + $0x1ac] sm:$0xf]
  %v219 = vld [vmem:[%s2] sm:$0xff]
  %v220 = vld [vmem:[%s2 + $0x8] sm:$0xff]
  %v221 = vld [vmem:[%s2 + $0x10] sm:$0xff]
  %v222 = vld [vmem:[%s2 + $0x18] sm:$0xff]
  %v223 = vld [vmem:[%s2 + $0x20] sm:$0xff]
  %v224 = vld [vmem:[%s2 + $0x28] sm:$0xff]
  %v225 = vld [vmem:[%s2 + $0x30] sm:$0xff]
  %v226 = vld [vmem:[%s2 + $0x38] sm:$0xff]
  %v227 = vld [vmem:[%s2 + $0x40] sm:$0xff]
  %v228 = vld [vmem:[%s2 + $0x48] sm:$0xff]
  %v229 = vld [vmem:[%s2 + $0x50] sm:$0xff]
  %v230 = vld [vmem:[%s2 + $0x58] sm:$0xff]
  %v231 = vld [vmem:[%s2 + $0x60] sm:$0xff]
  %v232 = vld [vmem:[%s2 + $0x68] sm:$0xff]
  %v233 = vld [vmem:[%s2 + $0x70] sm:$0xff]
  %v234 = vld [vmem:[%s2 + $0x78] sm:$0xff]
  %v235 = vld [vmem:[%s2 + $0x80] sm:$0xff]
  %v236 = vld [vmem:[%s2 + $0x88] sm:$0xff]
  %v237 = vld [vmem:[%s2 + $0x90] sm:$0xff]
  %v238 = vld [vmem:[%s2 + $0x98] sm:$0xff]
  %v239 = vld [vmem:[%s2 + $0xa0] sm:$0xff]
  %v240 = vld [vmem:[%s2 + $0xa8] sm:$0xff]
  %v241 = vld [vmem:[%s2 + $0xb0] sm:$0xff]
  %v242 = vld [vmem:[%s2 + $0xb8] sm:$0xff]
  %244 = vset.pattern.permute.xlu0 0
  %245 = vperm.xlu0 %244, %v219
  %v246 = vpop.permute.xlu0 %245
  %249 = vset.pattern.permute.xlu0 0
  %250 = vperm.xlu0 %249, %v220
  %v251 = vpop.permute.xlu0 %250
  %254 = vset.pattern.permute.xlu0 0
  %255 = vperm.xlu0 %254, %v221
  %v256 = vpop.permute.xlu0 %255
  %259 = vset.pattern.permute.xlu0 0
  %260 = vperm.xlu0 %259, %v222
  %v261 = vpop.permute.xlu0 %260
  %264 = vset.pattern.permute.xlu0 0
  %265 = vperm.xlu0 %264, %v223
  %v266 = vpop.permute.xlu0 %265
  %269 = vset.pattern.permute.xlu0 0
  %270 = vperm.xlu0 %269, %v224
  %v271 = vpop.permute.xlu0 %270
  %274 = vset.pattern.permute.xlu0 0
  %275 = vperm.xlu0 %274, %v225
  %v276 = vpop.permute.xlu0 %275
  %279 = vset.pattern.permute.xlu0 0
  %280 = vperm.xlu0 %279, %v226
  %v281 = vpop.permute.xlu0 %280
  %284 = vset.pattern.permute.xlu0 0
  %285 = vperm.xlu0 %284, %v227
  %v286 = vpop.permute.xlu0 %285
  %289 = vset.pattern.permute.xlu0 0
  %290 = vperm.xlu0 %289, %v228
  %v291 = vpop.permute.xlu0 %290
  %294 = vset.pattern.permute.xlu0 0
  %295 = vperm.xlu0 %294, %v229
  %v296 = vpop.permute.xlu0 %295
  %299 = vset.pattern.permute.xlu0 0
  %300 = vperm.xlu0 %299, %v230
  %v301 = vpop.permute.xlu0 %300
  %304 = vset.pattern.permute.xlu0 0
  %305 = vperm.xlu0 %304, %v231
  %v306 = vpop.permute.xlu0 %305
  %309 = vset.pattern.permute.xlu0 0
  %310 = vperm.xlu0 %309, %v232
  %v311 = vpop.permute.xlu0 %310
  %314 = vset.pattern.permute.xlu0 0
  %315 = vperm.xlu0 %314, %v233
  %v316 = vpop.permute.xlu0 %315
  %319 = vset.pattern.permute.xlu0 0
  %320 = vperm.xlu0 %319, %v234
  %v321 = vpop.permute.xlu0 %320
  %324 = vset.pattern.permute.xlu0 0
  %325 = vperm.xlu0 %324, %v235
  %v326 = vpop.permute.xlu0 %325
  %329 = vset.pattern.permute.xlu0 0
  %330 = vperm.xlu0 %329, %v236
  %v331 = vpop.permute.xlu0 %330
  %334 = vset.pattern.permute.xlu0 0
  %335 = vperm.xlu0 %334, %v237
  %v336 = vpop.permute.xlu0 %335
  %339 = vset.pattern.permute.xlu0 0
  %340 = vperm.xlu0 %339, %v238
  %v341 = vpop.permute.xlu0 %340
  %344 = vset.pattern.permute.xlu0 0
  %345 = vperm.xlu0 %344, %v239
  %v346 = vpop.permute.xlu0 %345
  %349 = vset.pattern.permute.xlu0 0
  %350 = vperm.xlu0 %349, %v240
  %v351 = vpop.permute.xlu0 %350
  %354 = vset.pattern.permute.xlu0 0
  %355 = vperm.xlu0 %354, %v241
  %v356 = vpop.permute.xlu0 %355
  %359 = vset.pattern.permute.xlu0 0
  %360 = vperm.xlu0 %359, %v242
  %v361 = vpop.permute.xlu0 %360
  %v459 = vunpack.c.l.b16 %v15
  %v460 = vunpack.c.h.b16 %v15
  %v461 = vunpack.c.l.b16 %v16
  %v462 = vunpack.c.h.b16 %v16
  %v463 = vunpack.c.l.b16 %v17
  %v464 = vunpack.c.h.b16 %v17
  %v465 = vunpack.c.l.b16 %v18
  %v466 = vunpack.c.l.b16 %v19
  %v467 = vunpack.c.h.b16 %v19
  %v468 = vunpack.c.l.b16 %v20
  %v469 = vunpack.c.h.b16 %v20
  %v470 = vunpack.c.l.b16 %v21
  %v471 = vunpack.c.h.b16 %v21
  %v472 = vunpack.c.l.b16 %v22
  %v473 = vunpack.c.l.b16 %v23
  %v474 = vunpack.c.h.b16 %v23
  %v475 = vunpack.c.l.b16 %v24
  %v476 = vunpack.c.h.b16 %v24
  %v477 = vunpack.c.l.b16 %v25
  %v478 = vunpack.c.h.b16 %v25
  %v479 = vunpack.c.l.b16 %v26
  %v480 = vunpack.c.l.b16 %v27
  %v481 = vunpack.c.h.b16 %v27
  %v482 = vunpack.c.l.b16 %v28
  %v483 = vunpack.c.h.b16 %v28
  %v484 = vunpack.c.l.b16 %v29
  %v485 = vunpack.c.h.b16 %v29
  %v486 = vunpack.c.l.b16 %v30
  %v487 = vunpack.c.l.b16 %v31
  %v488 = vunpack.c.h.b16 %v31
  %v489 = vunpack.c.l.b16 %v32
  %v490 = vunpack.c.h.b16 %v32
  %v491 = vunpack.c.l.b16 %v33
  %v492 = vunpack.c.h.b16 %v33
  %v493 = vunpack.c.l.b16 %v34
  %v494 = vunpack.c.l.b16 %v35
  %v495 = vunpack.c.h.b16 %v35
  %v496 = vunpack.c.l.b16 %v36
  %v497 = vunpack.c.h.b16 %v36
  %v498 = vunpack.c.l.b16 %v37
  %v499 = vunpack.c.h.b16 %v37
  %v500 = vunpack.c.l.b16 %v38
  %v501 = vunpack.c.l.b16 %v39
  %v502 = vunpack.c.h.b16 %v39
  %v503 = vunpack.c.l.b16 %v40
  %v504 = vunpack.c.h.b16 %v40
  %v505 = vunpack.c.l.b16 %v41
  %v506 = vunpack.c.h.b16 %v41
  %v507 = vunpack.c.l.b16 %v42
  %v508 = vunpack.c.l.b16 %v43
  %v509 = vunpack.c.h.b16 %v43
  %v510 = vunpack.c.l.b16 %v44
  %v511 = vunpack.c.h.b16 %v44
  %v512 = vunpack.c.l.b16 %v45
  %v513 = vunpack.c.h.b16 %v45
  %v514 = vunpack.c.l.b16 %v46
  %v515 = vunpack.c.l.b16 %v47
  %v516 = vunpack.c.h.b16 %v47
  %v517 = vunpack.c.l.b16 %v48
  %v518 = vunpack.c.h.b16 %v48
  %v519 = vunpack.c.l.b16 %v49
  %v520 = vunpack.c.h.b16 %v49
  %v521 = vunpack.c.l.b16 %v50
  %v522 = vunpack.c.l.b16 %v51
  %v523 = vunpack.c.h.b16 %v51
  %v524 = vunpack.c.l.b16 %v52
  %v525 = vunpack.c.h.b16 %v52
  %v526 = vunpack.c.l.b16 %v53
  %v527 = vunpack.c.h.b16 %v53
  %v528 = vunpack.c.l.b16 %v54
  %v529 = vunpack.c.l.b16 %v55
  %v530 = vunpack.c.h.b16 %v55
  %v531 = vunpack.c.l.b16 %v56
  %v532 = vunpack.c.h.b16 %v56
  %v533 = vunpack.c.l.b16 %v57
  %v534 = vunpack.c.h.b16 %v57
  %v535 = vunpack.c.l.b16 %v58
  %v536 = vunpack.c.l.b16 %v59
  %v537 = vunpack.c.h.b16 %v59
  %v538 = vunpack.c.l.b16 %v60
  %v539 = vunpack.c.h.b16 %v60
  %v540 = vunpack.c.l.b16 %v61
  %v541 = vunpack.c.h.b16 %v61
  %v542 = vunpack.c.l.b16 %v62
  %v543 = vunpack.c.l.b16 %v63
  %v544 = vunpack.c.h.b16 %v63
  %v545 = vunpack.c.l.b16 %v64
  %v546 = vunpack.c.h.b16 %v64
  %v547 = vunpack.c.l.b16 %v65
  %v548 = vunpack.c.h.b16 %v65
  %v549 = vunpack.c.l.b16 %v66
  %v550 = vunpack.c.l.b16 %v67
  %v551 = vunpack.c.h.b16 %v67
  %v552 = vunpack.c.l.b16 %v68
  %v553 = vunpack.c.h.b16 %v68
  %v554 = vunpack.c.l.b16 %v69
  %v555 = vunpack.c.h.b16 %v69
  %v556 = vunpack.c.l.b16 %v70
  %v557 = vunpack.c.l.b16 %v71
  %v558 = vunpack.c.h.b16 %v71
  %v559 = vunpack.c.l.b16 %v72
  %v560 = vunpack.c.h.b16 %v72
  %v561 = vunpack.c.l.b16 %v73
  %v562 = vunpack.c.h.b16 %v73
  %v563 = vunpack.c.l.b16 %v74
  %v564 = vunpack.c.l.b16 %v75
  %v565 = vunpack.c.h.b16 %v75
  %v566 = vunpack.c.l.b16 %v76
  %v567 = vunpack.c.h.b16 %v76
  %v568 = vunpack.c.l.b16 %v77
  %v569 = vunpack.c.h.b16 %v77
  %v570 = vunpack.c.l.b16 %v78
  %v571 = vunpack.c.l.b16 %v79
  %v572 = vunpack.c.h.b16 %v79
  %v573 = vunpack.c.l.b16 %v80
  %v574 = vunpack.c.h.b16 %v80
  %v575 = vunpack.c.l.b16 %v81
  %v576 = vunpack.c.h.b16 %v81
  %v577 = vunpack.c.l.b16 %v82
  %v578 = vunpack.c.l.b16 %v83
  %v579 = vunpack.c.h.b16 %v83
  %v580 = vunpack.c.l.b16 %v84
  %v581 = vunpack.c.h.b16 %v84
  %v582 = vunpack.c.l.b16 %v85
  %v583 = vunpack.c.h.b16 %v85
  %v584 = vunpack.c.l.b16 %v86
  %v585 = vunpack.c.l.b16 %v87
  %v586 = vunpack.c.h.b16 %v87
  %v587 = vunpack.c.l.b16 %v88
  %v588 = vunpack.c.h.b16 %v88
  %v589 = vunpack.c.l.b16 %v89
  %v590 = vunpack.c.h.b16 %v89
  %v591 = vunpack.c.l.b16 %v90
  %v592 = vunpack.c.l.b16 %v91
  %v593 = vunpack.c.h.b16 %v91
  %v594 = vunpack.c.l.b16 %v92
  %v595 = vunpack.c.h.b16 %v92
  %v596 = vunpack.c.l.b16 %v93
  %v597 = vunpack.c.h.b16 %v93
  %v598 = vunpack.c.l.b16 %v94
  %v599 = vunpack.c.l.b16 %v95
  %v600 = vunpack.c.h.b16 %v95
  %v601 = vunpack.c.l.b16 %v96
  %v602 = vunpack.c.h.b16 %v96
  %v603 = vunpack.c.l.b16 %v97
  %v604 = vunpack.c.h.b16 %v97
  %v605 = vunpack.c.l.b16 %v98
  %v606 = vunpack.c.l.b16 %v99
  %v607 = vunpack.c.h.b16 %v99
  %v608 = vunpack.c.l.b16 %v100
  %v609 = vunpack.c.h.b16 %v100
  %v610 = vunpack.c.l.b16 %v101
  %v611 = vunpack.c.h.b16 %v101
  %v612 = vunpack.c.l.b16 %v102
  %v613 = vunpack.c.l.b16 %v103
  %v614 = vunpack.c.h.b16 %v103
  %v615 = vunpack.c.l.b16 %v104
  %v616 = vunpack.c.h.b16 %v104
  %v617 = vunpack.c.l.b16 %v105
  %v618 = vunpack.c.h.b16 %v105
  %v619 = vunpack.c.l.b16 %v106
  %v620 = vunpack.c.l.b16 %v107
  %v621 = vunpack.c.h.b16 %v107
  %v622 = vunpack.c.l.b16 %v108
  %v623 = vunpack.c.h.b16 %v108
  %v624 = vunpack.c.l.b16 %v109
  %v625 = vunpack.c.h.b16 %v109
  %v626 = vunpack.c.l.b16 %v110
  %v627 = vpack.c.b16 %v466, %v459
  %v628 = vpack.c.b16 %v467, %v460
  %v629 = vpack.c.b16 %v468, %v461
  %v630 = vpack.c.b16 %v469, %v462
  %v631 = vpack.c.b16 %v470, %v463
  %v632 = vpack.c.b16 %v471, %v464
  %v633 = vpack.c.b16 %v472, %v465
  %v634 = vpack.c.b16 %v480, %v473
  %v635 = vpack.c.b16 %v481, %v474
  %v636 = vpack.c.b16 %v482, %v475
  %v637 = vpack.c.b16 %v483, %v476
  %v638 = vpack.c.b16 %v484, %v477
  %v639 = vpack.c.b16 %v485, %v478
  %v640 = vpack.c.b16 %v486, %v479
  %v641 = vpack.c.b16 %v494, %v487
  %v642 = vpack.c.b16 %v495, %v488
  %v643 = vpack.c.b16 %v496, %v489
  %v644 = vpack.c.b16 %v497, %v490
  %v645 = vpack.c.b16 %v498, %v491
  %v646 = vpack.c.b16 %v499, %v492
  %v647 = vpack.c.b16 %v500, %v493
  %v648 = vpack.c.b16 %v508, %v501
  %v649 = vpack.c.b16 %v509, %v502
  %v650 = vpack.c.b16 %v510, %v503
  %v651 = vpack.c.b16 %v511, %v504
  %v652 = vpack.c.b16 %v512, %v505
  %v653 = vpack.c.b16 %v513, %v506
  %v654 = vpack.c.b16 %v514, %v507
  %v655 = vpack.c.b16 %v522, %v515
  %v656 = vpack.c.b16 %v523, %v516
  %v657 = vpack.c.b16 %v524, %v517
  %v658 = vpack.c.b16 %v525, %v518
  %v659 = vpack.c.b16 %v526, %v519
  %v660 = vpack.c.b16 %v527, %v520
  %v661 = vpack.c.b16 %v528, %v521
  %v662 = vpack.c.b16 %v536, %v529
  %v663 = vpack.c.b16 %v537, %v530
  %v664 = vpack.c.b16 %v538, %v531
  %v665 = vpack.c.b16 %v539, %v532
  %v666 = vpack.c.b16 %v540, %v533
  %v667 = vpack.c.b16 %v541, %v534
  %v668 = vpack.c.b16 %v542, %v535
  %v669 = vpack.c.b16 %v550, %v543
  %v670 = vpack.c.b16 %v551, %v544
  %v671 = vpack.c.b16 %v552, %v545
  %v672 = vpack.c.b16 %v553, %v546
  %v673 = vpack.c.b16 %v554, %v547
  %v674 = vpack.c.b16 %v555, %v548
  %v675 = vpack.c.b16 %v556, %v549
  %v676 = vpack.c.b16 %v564, %v557
  %v677 = vpack.c.b16 %v565, %v558
  %v678 = vpack.c.b16 %v566, %v559
  %v679 = vpack.c.b16 %v567, %v560
  %v680 = vpack.c.b16 %v568, %v561
  %v681 = vpack.c.b16 %v569, %v562
  %v682 = vpack.c.b16 %v570, %v563
  %v683 = vpack.c.b16 %v578, %v571
  %v684 = vpack.c.b16 %v579, %v572
  %v685 = vpack.c.b16 %v580, %v573
  %v686 = vpack.c.b16 %v581, %v574
  %v687 = vpack.c.b16 %v582, %v575
  %v688 = vpack.c.b16 %v583, %v576
  %v689 = vpack.c.b16 %v584, %v577
  %v690 = vpack.c.b16 %v592, %v585
  %v691 = vpack.c.b16 %v593, %v586
  %v692 = vpack.c.b16 %v594, %v587
  %v693 = vpack.c.b16 %v595, %v588
  %v694 = vpack.c.b16 %v596, %v589
  %v695 = vpack.c.b16 %v597, %v590
  %v696 = vpack.c.b16 %v598, %v591
  %v697 = vpack.c.b16 %v606, %v599
  %v698 = vpack.c.b16 %v607, %v600
  %v699 = vpack.c.b16 %v608, %v601
  %v700 = vpack.c.b16 %v609, %v602
  %v701 = vpack.c.b16 %v610, %v603
  %v702 = vpack.c.b16 %v611, %v604
  %v703 = vpack.c.b16 %v612, %v605
  %v704 = vpack.c.b16 %v620, %v613
  %v705 = vpack.c.b16 %v621, %v614
  %v706 = vpack.c.b16 %v622, %v615
  %v707 = vpack.c.b16 %v623, %v616
  %v708 = vpack.c.b16 %v624, %v617
  %v709 = vpack.c.b16 %v625, %v618
  %v710 = vpack.c.b16 %v626, %v619
  %v891 = vunpack.c.l.b16 %v111
  %v892 = vunpack.c.l.b16 %v112
  %v893 = vunpack.c.l.b16 %v113
  %v894 = vunpack.c.l.b16 %v114
  %v895 = vunpack.c.l.b16 %v115
  %v896 = vunpack.c.l.b16 %v116
  %v897 = vunpack.c.l.b16 %v117
  %v898 = vunpack.c.l.b16 %v118
  %v899 = vunpack.c.l.b16 %v119
  %v900 = vunpack.c.l.b16 %v120
  %v901 = vunpack.c.l.b16 %v121
  %v902 = vunpack.c.l.b16 %v122
  %v903 = vunpack.c.l.b16 %v123
  %v904 = vunpack.c.l.b16 %v124
  %v905 = vunpack.c.l.b16 %v125
  %v906 = vunpack.c.l.b16 %v126
  %v907 = vunpack.c.l.b16 %v127
  %v908 = vunpack.c.l.b16 %v128
  %v909 = vunpack.c.l.b16 %v129
  %v910 = vunpack.c.l.b16 %v130
  %v911 = vunpack.c.l.b16 %v131
  %v912 = vunpack.c.l.b16 %v132
  %v913 = vunpack.c.l.b16 %v133
  %v914 = vunpack.c.l.b16 %v134
  %v915 = vunpack.c.l.b16 %v135
  %v916 = vunpack.c.l.b16 %v136
  %v917 = vunpack.c.l.b16 %v137
  %v918 = vunpack.c.l.b16 %v138
  %v919 = vunpack.c.l.b16 %v139
  %v920 = vunpack.c.l.b16 %v140
  %v921 = vunpack.c.l.b16 %v141
  %v922 = vunpack.c.l.b16 %v142
  %v923 = vunpack.c.l.b16 %v143
  %v924 = vunpack.c.l.b16 %v144
  %v925 = vunpack.c.l.b16 %v145
  %v926 = vunpack.c.l.b16 %v146
  %v927 = vunpack.c.l.b16 %v147
  %v928 = vunpack.c.l.b16 %v148
  %v929 = vunpack.c.l.b16 %v149
  %v930 = vunpack.c.l.b16 %v150
  %v931 = vunpack.c.l.b16 %v151
  %v932 = vunpack.c.l.b16 %v152
  %v933 = vunpack.c.l.b16 %v153
  %v934 = vunpack.c.l.b16 %v154
  %v935 = vunpack.c.l.b16 %v155
  %v936 = vunpack.c.l.b16 %v156
  %v937 = vunpack.c.l.b16 %v157
  %v938 = vunpack.c.l.b16 %v158
  %v939 = vunpack.c.l.b16 %v159
  %v940 = vunpack.c.l.b16 %v160
  %v941 = vunpack.c.l.b16 %v161
  %v942 = vunpack.c.l.b16 %v162
  %v943 = vunpack.c.l.b16 %v163
  %v944 = vunpack.c.l.b16 %v164
  %v945 = vunpack.c.l.b16 %v165
  %v946 = vunpack.c.l.b16 %v166
  %v947 = vunpack.c.l.b16 %v167
  %v948 = vunpack.c.l.b16 %v168
  %v949 = vunpack.c.l.b16 %v169
  %v950 = vunpack.c.l.b16 %v170
  %v951 = vunpack.c.l.b16 %v171
  %v952 = vunpack.c.l.b16 %v172
  %v953 = vunpack.c.l.b16 %v173
  %v954 = vunpack.c.l.b16 %v174
  %v955 = vunpack.c.l.b16 %v175
  %v956 = vunpack.c.l.b16 %v176
  %v957 = vunpack.c.l.b16 %v177
  %v958 = vunpack.c.l.b16 %v178
  %v959 = vunpack.c.l.b16 %v179
  %v960 = vunpack.c.l.b16 %v180
  %v961 = vunpack.c.l.b16 %v181
  %v962 = vunpack.c.l.b16 %v182
  %v963 = vunpack.c.l.b16 %v183
  %v964 = vunpack.c.l.b16 %v184
  %v965 = vunpack.c.l.b16 %v185
  %v966 = vunpack.c.l.b16 %v186
  %v967 = vunpack.c.l.b16 %v187
  %v968 = vunpack.c.l.b16 %v188
  %v969 = vunpack.c.l.b16 %v189
  %v970 = vunpack.c.l.b16 %v190
  %v971 = vunpack.c.l.b16 %v191
  %v972 = vunpack.c.l.b16 %v192
  %v973 = vunpack.c.l.b16 %v193
  %v974 = vunpack.c.l.b16 %v194
  %v975 = vunpack.c.l.b16 %v195
  %v976 = vunpack.c.l.b16 %v196
  %v977 = vunpack.c.l.b16 %v197
  %v978 = vunpack.c.l.b16 %v198
  %v979 = vunpack.c.l.b16 %v199
  %v980 = vunpack.c.l.b16 %v200
  %v981 = vunpack.c.l.b16 %v201
  %v982 = vunpack.c.l.b16 %v202
  %v983 = vunpack.c.l.b16 %v203
  %v984 = vunpack.c.l.b16 %v204
  %v985 = vunpack.c.l.b16 %v205
  %v986 = vunpack.c.l.b16 %v206
  %v987 = vunpack.c.l.b16 %v207
  %v988 = vunpack.c.l.b16 %v208
  %v989 = vunpack.c.l.b16 %v209
  %v990 = vunpack.c.l.b16 %v210
  %v991 = vunpack.c.l.b16 %v211
  %v992 = vunpack.c.l.b16 %v212
  %v993 = vunpack.c.l.b16 %v213
  %v994 = vunpack.c.l.b16 %v214
  %v995 = vunpack.c.l.b16 %v215
  %v996 = vunpack.c.l.b16 %v216
  %v997 = vunpack.c.l.b16 %v217
  %v998 = vunpack.c.l.b16 %v218
  %v999 = vpack.c.b16 %v892, %v891
  %v1000 = vpack.c.b16 %v894, %v893
  %v1001 = vpack.c.b16 %v896, %v895
  %v1002 = vpack.c.b16 %v898, %v897
  %v1003 = vpack.c.b16 %v900, %v899
  %v1004 = vpack.c.b16 %v902, %v901
  %v1005 = vpack.c.b16 %v904, %v903
  %v1006 = vpack.c.b16 %v906, %v905
  %v1007 = vpack.c.b16 %v908, %v907
  %v1008 = vpack.c.b16 %v910, %v909
  %v1009 = vpack.c.b16 %v912, %v911
  %v1010 = vpack.c.b16 %v914, %v913
  %v1011 = vpack.c.b16 %v916, %v915
  %v1012 = vpack.c.b16 %v918, %v917
  %v1013 = vpack.c.b16 %v920, %v919
  %v1014 = vpack.c.b16 %v922, %v921
  %v1015 = vpack.c.b16 %v924, %v923
  %v1016 = vpack.c.b16 %v926, %v925
  %v1017 = vpack.c.b16 %v928, %v927
  %v1018 = vpack.c.b16 %v930, %v929
  %v1019 = vpack.c.b16 %v932, %v931
  %v1020 = vpack.c.b16 %v934, %v933
  %v1021 = vpack.c.b16 %v936, %v935
  %v1022 = vpack.c.b16 %v938, %v937
  %v1023 = vpack.c.b16 %v940, %v939
  %v1024 = vpack.c.b16 %v942, %v941
  %v1025 = vpack.c.b16 %v944, %v943
  %v1026 = vpack.c.b16 %v946, %v945
  %v1027 = vpack.c.b16 %v948, %v947
  %v1028 = vpack.c.b16 %v950, %v949
  %v1029 = vpack.c.b16 %v952, %v951
  %v1030 = vpack.c.b16 %v954, %v953
  %v1031 = vpack.c.b16 %v956, %v955
  %v1032 = vpack.c.b16 %v958, %v957
  %v1033 = vpack.c.b16 %v960, %v959
  %v1034 = vpack.c.b16 %v962, %v961
  %v1035 = vpack.c.b16 %v964, %v963
  %v1036 = vpack.c.b16 %v966, %v965
  %v1037 = vpack.c.b16 %v968, %v967
  %v1038 = vpack.c.b16 %v970, %v969
  %v1039 = vpack.c.b16 %v972, %v971
  %v1040 = vpack.c.b16 %v974, %v973
  %v1041 = vpack.c.b16 %v976, %v975
  %v1042 = vpack.c.b16 %v978, %v977
  %v1043 = vpack.c.b16 %v980, %v979
  %v1044 = vpack.c.b16 %v982, %v981
  %v1045 = vpack.c.b16 %v984, %v983
  %v1046 = vpack.c.b16 %v986, %v985
  %v1047 = vpack.c.b16 %v988, %v987
  %v1048 = vpack.c.b16 %v990, %v989
  %v1049 = vpack.c.b16 %v992, %v991
  %v1050 = vpack.c.b16 %v994, %v993
  %v1051 = vpack.c.b16 %v996, %v995
  %v1052 = vpack.c.b16 %v998, %v997
  %vm1107 = vcmask 785408
  %v1109 = vsel %vm1107, %v633, 0
  %v1112 = vsel %vm1107, %v640, 0
  %v1115 = vsel %vm1107, %v647, 0
  %v1118 = vsel %vm1107, %v654, 0
  %v1121 = vsel %vm1107, %v661, 0
  %v1124 = vsel %vm1107, %v668, 0
  %v1127 = vsel %vm1107, %v675, 0
  %v1130 = vsel %vm1107, %v682, 0
  %v1133 = vsel %vm1107, %v689, 0
  %v1136 = vsel %vm1107, %v696, 0
  %v1139 = vsel %vm1107, %v703, 0
  %v1142 = vsel %vm1107, %v710, 0
  %1144 = vmatprep.subr.bf16.mxu0 0
  %1145 = vmatpush1.bf16.msra.mxu0 %v999
  %1146 = vmatprep.subr.bf16.mxu0 0
  %1147 = vmatpush1.bf16.msra.mxu0 %v1000
  %1148 = vmatprep.subr.bf16.mxu0 0
  %1149 = vmatpush1.bf16.msra.mxu0 %v1001
  %1150 = vmatprep.subr.bf16.mxu0 0
  %1151 = vmatpush1.bf16.msra.mxu0 %v1002
  %1152 = vmatprep.subr.bf16.mxu0 0
  %1153 = vmatpush1.bf16.msra.mxu0 %v1003
  %1154 = vmatprep.subr.bf16.mxu0 0
  %1155 = vmatpush1.bf16.msra.mxu0 %v1004
  %1156 = vmatprep.subr.bf16.mxu0 0
  %1157 = vmatpush1.bf16.msra.mxu0 %v1005
  %1158 = vmatprep.subr.bf16.mxu0 0
  %1159 = vmatpush1.bf16.msra.mxu0 %v1006
  %1160 = vmatprep.subr.bf16.mxu0 0
  %1161 = vmatpush1.bf16.msra.mxu0 %v1007
  %1162 = vmatprep.subr.bf16.mxu0 0
  %1163 = vmatpush1.bf16.msra.mxu0 %v1008
  %1164 = vmatprep.subr.bf16.mxu0 0
  %1165 = vmatpush1.bf16.msra.mxu0 %v1009
  %1166 = vmatprep.subr.bf16.mxu0 0
  %1167 = vmatpush1.bf16.msra.mxu0 %v1010
  %1168 = vmatprep.subr.bf16.mxu0 0
  %1169 = vmatpush1.bf16.msra.mxu0 %v1011
  %1170 = vmatprep.subr.bf16.mxu0 0
  %1171 = vmatpush1.bf16.msra.mxu0 %v1012
  %1172 = vmatprep.subr.bf16.mxu0 0
  %1173 = vmatpush1.bf16.msra.mxu0 %v1013
  %1174 = vmatprep.subr.bf16.mxu0 0
  %1175 = vmatpush1.bf16.msra.mxu0 %v1014
  %1176 = vmatprep.mubr.bf16.mxu0 %v628
  %1177 = vmatmul.mubr.bf16.gmra.mrb[0].mxu0 %v627
  %v1178 = vpop.f32.mrb[0].mxu0
  %v1179 = vadd.f32 %v246, %v1178
  %v1180 = vpop.f32.mrb[0].mxu0
  %v1181 = vpop.f32.mrb[0].mxu0
  %v1182 = vadd.f32 %v251, %v1181
  %v1183 = vpop.f32.mrb[0].mxu0
  %1184 = vmatprep.mubr.bf16.mxu0 %v635
  %1185 = vmatmul.mubr.bf16.gmra.mrb[0].mxu0 %v634
  %v1186 = vpop.f32.mrb[0].mxu0
  %v1187 = vadd.f32 %v256, %v1186
  %v1188 = vpop.f32.mrb[0].mxu0
  %v1189 = vpop.f32.mrb[0].mxu0
  %v1190 = vadd.f32 %v261, %v1189
  %v1191 = vpop.f32.mrb[0].mxu0
  %1192 = vmatprep.mubr.bf16.mxu0 %v642
  %1193 = vmatmul.mubr.bf16.gmra.mrb[0].mxu0 %v641
  %v1194 = vpop.f32.mrb[0].mxu0
  %v1195 = vadd.f32 %v266, %v1194
  %v1196 = vpop.f32.mrb[0].mxu0
  %v1197 = vpop.f32.mrb[0].mxu0
  %v1198 = vadd.f32 %v271, %v1197
  %v1199 = vpop.f32.mrb[0].mxu0
  %1200 = vmatprep.mubr.bf16.mxu0 %v649
  %1201 = vmatmul.mubr.bf16.gmra.mrb[0].mxu0 %v648
  %v1202 = vpop.f32.mrb[0].mxu0
  %v1203 = vadd.f32 %v276, %v1202
  %v1204 = vpop.f32.mrb[0].mxu0
  %v1205 = vpop.f32.mrb[0].mxu0
  %v1206 = vadd.f32 %v281, %v1205
  %v1207 = vpop.f32.mrb[0].mxu0
  %1208 = vmatprep.mubr.bf16.mxu0 %v656
  %1209 = vmatmul.mubr.bf16.gmra.mrb[0].mxu0 %v655
  %v1210 = vpop.f32.mrb[0].mxu0
  %v1211 = vadd.f32 %v286, %v1210
  %v1212 = vpop.f32.mrb[0].mxu0
  %v1213 = vpop.f32.mrb[0].mxu0
  %v1214 = vadd.f32 %v291, %v1213
  %v1215 = vpop.f32.mrb[0].mxu0
  %1216 = vmatprep.mubr.bf16.mxu0 %v663
  %1217 = vmatmul.mubr.bf16.gmra.mrb[0].mxu0 %v662
  %v1218 = vpop.f32.mrb[0].mxu0
  %v1219 = vadd.f32 %v296, %v1218
  %v1220 = vpop.f32.mrb[0].mxu0
  %v1221 = vpop.f32.mrb[0].mxu0
  %v1222 = vadd.f32 %v301, %v1221
  %v1223 = vpop.f32.mrb[0].mxu0
  %1224 = vmatprep.mubr.bf16.mxu0 %v670
  %1225 = vmatmul.mubr.bf16.gmra.mrb[0].mxu0 %v669
  %v1226 = vpop.f32.mrb[0].mxu0
  %v1227 = vadd.f32 %v306, %v1226
  %v1228 = vpop.f32.mrb[0].mxu0
  %v1229 = vpop.f32.mrb[0].mxu0
  %v1230 = vadd.f32 %v311, %v1229
  %v1231 = vpop.f32.mrb[0].mxu0
  %1232 = vmatprep.mubr.bf16.mxu0 %v677
  %1233 = vmatmul.mubr.bf16.gmra.mrb[0].mxu0 %v676
  %v1234 = vpop.f32.mrb[0].mxu0
  %v1235 = vadd.f32 %v316, %v1234
  %v1236 = vpop.f32.mrb[0].mxu0
  %v1237 = vpop.f32.mrb[0].mxu0
  %v1238 = vadd.f32 %v321, %v1237
  %v1239 = vpop.f32.mrb[0].mxu0
  %1240 = vmatprep.mubr.bf16.mxu0 %v684
  %1241 = vmatmul.mubr.bf16.gmra.mrb[0].mxu0 %v683
  %v1242 = vpop.f32.mrb[0].mxu0
  %v1243 = vadd.f32 %v326, %v1242
  %v1244 = vpop.f32.mrb[0].mxu0
  %v1245 = vpop.f32.mrb[0].mxu0
  %v1246 = vadd.f32 %v331, %v1245
  %v1247 = vpop.f32.mrb[0].mxu0
  %1248 = vmatprep.mubr.bf16.mxu0 %v691
  %1249 = vmatmul.mubr.bf16.gmra.mrb[0].mxu0 %v690
  %v1250 = vpop.f32.mrb[0].mxu0
  %v1251 = vadd.f32 %v336, %v1250
  %v1252 = vpop.f32.mrb[0].mxu0
  %v1253 = vpop.f32.mrb[0].mxu0
  %v1254 = vadd.f32 %v341, %v1253
  %v1255 = vpop.f32.mrb[0].mxu0
  %1256 = vmatprep.mubr.bf16.mxu0 %v698
  %1257 = vmatmul.mubr.bf16.gmra.mrb[0].mxu0 %v697
  %v1258 = vpop.f32.mrb[0].mxu0
  %v1259 = vadd.f32 %v346, %v1258
  %v1260 = vpop.f32.mrb[0].mxu0
  %v1261 = vpop.f32.mrb[0].mxu0
  %v1262 = vadd.f32 %v351, %v1261
  %v1263 = vpop.f32.mrb[0].mxu0
  %1264 = vmatprep.mubr.bf16.mxu0 %v705
  %1265 = vmatmul.mubr.bf16.gmra.mrb[0].mxu0 %v704
  %v1266 = vpop.f32.mrb[0].mxu0
  %v1267 = vadd.f32 %v356, %v1266
  %v1268 = vpop.f32.mrb[0].mxu0
  %v1269 = vpop.f32.mrb[0].mxu0
  %v1270 = vadd.f32 %v361, %v1269
  %v1271 = vpop.f32.mrb[0].mxu0
  %1272 = vdwg.mxu0
  %1273 = vmatprep.subr.bf16.mxu0 0
  %1274 = vmatpush1.bf16.msra.mxu0 %v1015
  %1275 = vmatprep.subr.bf16.mxu0 0
  %1276 = vmatpush1.bf16.msra.mxu0 %v1016
  %1277 = vmatprep.subr.bf16.mxu0 0
  %1278 = vmatpush1.bf16.msra.mxu0 %v1017
  %1279 = vmatprep.subr.bf16.mxu0 0
  %1280 = vmatpush1.bf16.msra.mxu0 %v1018
  %1281 = vmatprep.subr.bf16.mxu0 0
  %1282 = vmatpush1.bf16.msra.mxu0 %v1019
  %1283 = vmatprep.subr.bf16.mxu0 0
  %1284 = vmatpush1.bf16.msra.mxu0 %v1020
  %1285 = vmatprep.subr.bf16.mxu0 0
  %1286 = vmatpush1.bf16.msra.mxu0 %v1021
  %1287 = vmatprep.subr.bf16.mxu0 0
  %1288 = vmatpush1.bf16.msra.mxu0 %v1022
  %1289 = vmatprep.subr.bf16.mxu0 0
  %1290 = vmatpush1.bf16.msra.mxu0 %v1023
  %1291 = vmatprep.subr.bf16.mxu0 0
  %1292 = vmatpush1.bf16.msra.mxu0 %v1024
  %1293 = vmatprep.subr.bf16.mxu0 0
  %1294 = vmatpush1.bf16.msra.mxu0 %v1025
  %1295 = vmatprep.subr.bf16.mxu0 0
  %1296 = vmatpush1.bf16.msra.mxu0 %v1026
  %1297 = vmatprep.subr.bf16.mxu0 0
  %1298 = vmatpush1.bf16.msra.mxu0 %v1027
  %1299 = vmatprep.subr.bf16.mxu0 0
  %1300 = vmatpush1.bf16.msra.mxu0 %v1028
  %1301 = vmatprep.subr.bf16.mxu0 0
  %1302 = vmatpush1.bf16.msra.mxu0 %v1029
  %1303 = vmatprep.subr.bf16.mxu0 0
  %1304 = vmatpush1.bf16.msra.mxu0 %v1030
  %1305 = vmatprep.mubr.bf16.mxu0 %v630
  %1306 = vmatmul.mubr.bf16.gmra.mrb[0].mxu0 %v629
  %v1307 = vpop.f32.mrb[0].mxu0
  %v1308 = vadd.f32 %v1179, %v1307
  %v1309 = vpop.f32.mrb[0].mxu0
  %v1310 = vpop.f32.mrb[0].mxu0
  %v1311 = vadd.f32 %v1182, %v1310
  %v1312 = vpop.f32.mrb[0].mxu0
  %1313 = vmatprep.mubr.bf16.mxu0 %v637
  %1314 = vmatmul.mubr.bf16.gmra.mrb[0].mxu0 %v636
  %v1315 = vpop.f32.mrb[0].mxu0
  %v1316 = vadd.f32 %v1187, %v1315
  %v1317 = vpop.f32.mrb[0].mxu0
  %v1318 = vpop.f32.mrb[0].mxu0
  %v1319 = vadd.f32 %v1190, %v1318
  %v1320 = vpop.f32.mrb[0].mxu0
  %1321 = vmatprep.mubr.bf16.mxu0 %v644
  %1322 = vmatmul.mubr.bf16.gmra.mrb[0].mxu0 %v643
  %v1323 = vpop.f32.mrb[0].mxu0
  %v1324 = vadd.f32 %v1195, %v1323
  %v1325 = vpop.f32.mrb[0].mxu0
  %v1326 = vpop.f32.mrb[0].mxu0
  %v1327 = vadd.f32 %v1198, %v1326
  %v1328 = vpop.f32.mrb[0].mxu0
  %1329 = vmatprep.mubr.bf16.mxu0 %v651
  %1330 = vmatmul.mubr.bf16.gmra.mrb[0].mxu0 %v650
  %v1331 = vpop.f32.mrb[0].mxu0
  %v1332 = vadd.f32 %v1203, %v1331
  %v1333 = vpop.f32.mrb[0].mxu0
  %v1334 = vpop.f32.mrb[0].mxu0
  %v1335 = vadd.f32 %v1206, %v1334
  %v1336 = vpop.f32.mrb[0].mxu0
  %1337 = vmatprep.mubr.bf16.mxu0 %v658
  %1338 = vmatmul.mubr.bf16.gmra.mrb[0].mxu0 %v657
  %v1339 = vpop.f32.mrb[0].mxu0
  %v1340 = vadd.f32 %v1211, %v1339
  %v1341 = vpop.f32.mrb[0].mxu0
  %v1342 = vpop.f32.mrb[0].mxu0
  %v1343 = vadd.f32 %v1214, %v1342
  %v1344 = vpop.f32.mrb[0].mxu0
  %1345 = vmatprep.mubr.bf16.mxu0 %v665
  %1346 = vmatmul.mubr.bf16.gmra.mrb[0].mxu0 %v664
  %v1347 = vpop.f32.mrb[0].mxu0
  %v1348 = vadd.f32 %v1219, %v1347
  %v1349 = vpop.f32.mrb[0].mxu0
  %v1350 = vpop.f32.mrb[0].mxu0
  %v1351 = vadd.f32 %v1222, %v1350
  %v1352 = vpop.f32.mrb[0].mxu0
  %1353 = vmatprep.mubr.bf16.mxu0 %v672
  %1354 = vmatmul.mubr.bf16.gmra.mrb[0].mxu0 %v671
  %v1355 = vpop.f32.mrb[0].mxu0
  %v1356 = vadd.f32 %v1227, %v1355
  %v1357 = vpop.f32.mrb[0].mxu0
  %v1358 = vpop.f32.mrb[0].mxu0
  %v1359 = vadd.f32 %v1230, %v1358
  %v1360 = vpop.f32.mrb[0].mxu0
  %1361 = vmatprep.mubr.bf16.mxu0 %v679
  %1362 = vmatmul.mubr.bf16.gmra.mrb[0].mxu0 %v678
  %v1363 = vpop.f32.mrb[0].mxu0
  %v1364 = vadd.f32 %v1235, %v1363
  %v1365 = vpop.f32.mrb[0].mxu0
  %v1366 = vpop.f32.mrb[0].mxu0
  %v1367 = vadd.f32 %v1238, %v1366
  %v1368 = vpop.f32.mrb[0].mxu0
  %1369 = vmatprep.mubr.bf16.mxu0 %v686
  %1370 = vmatmul.mubr.bf16.gmra.mrb[0].mxu0 %v685
  %v1371 = vpop.f32.mrb[0].mxu0
  %v1372 = vadd.f32 %v1243, %v1371
  %v1373 = vpop.f32.mrb[0].mxu0
  %v1374 = vpop.f32.mrb[0].mxu0
  %v1375 = vadd.f32 %v1246, %v1374
  %v1376 = vpop.f32.mrb[0].mxu0
  %1377 = vmatprep.mubr.bf16.mxu0 %v693
  %1378 = vmatmul.mubr.bf16.gmra.mrb[0].mxu0 %v692
  %v1379 = vpop.f32.mrb[0].mxu0
  %v1380 = vadd.f32 %v1251, %v1379
  %v1381 = vpop.f32.mrb[0].mxu0
  %v1382 = vpop.f32.mrb[0].mxu0
  %v1383 = vadd.f32 %v1254, %v1382
  %v1384 = vpop.f32.mrb[0].mxu0
  %1385 = vmatprep.mubr.bf16.mxu0 %v700
  %1386 = vmatmul.mubr.bf16.gmra.mrb[0].mxu0 %v699
  %v1387 = vpop.f32.mrb[0].mxu0
  %v1388 = vadd.f32 %v1259, %v1387
  %v1389 = vpop.f32.mrb[0].mxu0
  %v1390 = vpop.f32.mrb[0].mxu0
  %v1391 = vadd.f32 %v1262, %v1390
  %v1392 = vpop.f32.mrb[0].mxu0
  %1393 = vmatprep.mubr.bf16.mxu0 %v707
  %1394 = vmatmul.mubr.bf16.gmra.mrb[0].mxu0 %v706
  %v1395 = vpop.f32.mrb[0].mxu0
  %v1396 = vadd.f32 %v1267, %v1395
  %v1397 = vpop.f32.mrb[0].mxu0
  %v1398 = vpop.f32.mrb[0].mxu0
  %v1399 = vadd.f32 %v1270, %v1398
  %v1400 = vpop.f32.mrb[0].mxu0
  %1401 = vdwg.mxu0
  %1402 = vmatprep.subr.bf16.mxu0 0
  %1403 = vmatpush1.bf16.msra.mxu0 %v1031
  %1404 = vmatprep.subr.bf16.mxu0 0
  %1405 = vmatpush1.bf16.msra.mxu0 %v1032
  %1406 = vmatprep.subr.bf16.mxu0 0
  %1407 = vmatpush1.bf16.msra.mxu0 %v1033
  %1408 = vmatprep.subr.bf16.mxu0 0
  %1409 = vmatpush1.bf16.msra.mxu0 %v1034
  %1410 = vmatprep.subr.bf16.mxu0 0
  %1411 = vmatpush1.bf16.msra.mxu0 %v1035
  %1412 = vmatprep.subr.bf16.mxu0 0
  %1413 = vmatpush1.bf16.msra.mxu0 %v1036
  %1414 = vmatprep.subr.bf16.mxu0 0
  %1415 = vmatpush1.bf16.msra.mxu0 %v1037
  %1416 = vmatprep.subr.bf16.mxu0 0
  %1417 = vmatpush1.bf16.msra.mxu0 %v1038
  %1418 = vmatprep.subr.bf16.mxu0 0
  %1419 = vmatpush1.bf16.msra.mxu0 %v1039
  %1420 = vmatprep.subr.bf16.mxu0 0
  %1421 = vmatpush1.bf16.msra.mxu0 %v1040
  %1422 = vmatprep.subr.bf16.mxu0 0
  %1423 = vmatpush1.bf16.msra.mxu0 %v1041
  %1424 = vmatprep.subr.bf16.mxu0 0
  %1425 = vmatpush1.bf16.msra.mxu0 %v1042
  %1426 = vmatprep.subr.bf16.mxu0 0
  %1427 = vmatpush1.bf16.msra.mxu0 %v1043
  %1428 = vmatprep.subr.bf16.mxu0 0
  %1429 = vmatpush1.bf16.msra.mxu0 %v1044
  %1430 = vmatprep.subr.bf16.mxu0 0
  %1431 = vmatpush1.bf16.msra.mxu0 %v1045
  %1432 = vmatprep.subr.bf16.mxu0 0
  %1433 = vmatpush1.bf16.msra.mxu0 %v1046
  %1434 = vmatprep.mubr.bf16.mxu0 %v632
  %1435 = vmatmul.mubr.bf16.gmra.mrb[0].mxu0 %v631
  %v1436 = vpop.f32.mrb[0].mxu0
  %v1437 = vadd.f32 %v1308, %v1436
  %v1438 = vpop.f32.mrb[0].mxu0
  %v1439 = vpop.f32.mrb[0].mxu0
  %v1440 = vadd.f32 %v1311, %v1439
  %v1441 = vpop.f32.mrb[0].mxu0
  %1442 = vmatprep.mubr.bf16.mxu0 %v639
  %1443 = vmatmul.mubr.bf16.gmra.mrb[0].mxu0 %v638
  %v1444 = vpop.f32.mrb[0].mxu0
  %v1445 = vadd.f32 %v1316, %v1444
  %v1446 = vpop.f32.mrb[0].mxu0
  %v1447 = vpop.f32.mrb[0].mxu0
  %v1448 = vadd.f32 %v1319, %v1447
  %v1449 = vpop.f32.mrb[0].mxu0
  %1450 = vmatprep.mubr.bf16.mxu0 %v646
  %1451 = vmatmul.mubr.bf16.gmra.mrb[0].mxu0 %v645
  %v1452 = vpop.f32.mrb[0].mxu0
  %v1453 = vadd.f32 %v1324, %v1452
  %v1454 = vpop.f32.mrb[0].mxu0
  %v1455 = vpop.f32.mrb[0].mxu0
  %v1456 = vadd.f32 %v1327, %v1455
  %v1457 = vpop.f32.mrb[0].mxu0
  %1458 = vmatprep.mubr.bf16.mxu0 %v653
  %1459 = vmatmul.mubr.bf16.gmra.mrb[0].mxu0 %v652
  %v1460 = vpop.f32.mrb[0].mxu0
  %v1461 = vadd.f32 %v1332, %v1460
  %v1462 = vpop.f32.mrb[0].mxu0
  %v1463 = vpop.f32.mrb[0].mxu0
  %v1464 = vadd.f32 %v1335, %v1463
  %v1465 = vpop.f32.mrb[0].mxu0
  %1466 = vmatprep.mubr.bf16.mxu0 %v660
  %1467 = vmatmul.mubr.bf16.gmra.mrb[0].mxu0 %v659
  %v1468 = vpop.f32.mrb[0].mxu0
  %v1469 = vadd.f32 %v1340, %v1468
  %v1470 = vpop.f32.mrb[0].mxu0
  %v1471 = vpop.f32.mrb[0].mxu0
  %v1472 = vadd.f32 %v1343, %v1471
  %v1473 = vpop.f32.mrb[0].mxu0
  %1474 = vmatprep.mubr.bf16.mxu0 %v667
  %1475 = vmatmul.mubr.bf16.gmra.mrb[0].mxu0 %v666
  %v1476 = vpop.f32.mrb[0].mxu0
  %v1477 = vadd.f32 %v1348, %v1476
  %v1478 = vpop.f32.mrb[0].mxu0
  %v1479 = vpop.f32.mrb[0].mxu0
  %v1480 = vadd.f32 %v1351, %v1479
  %v1481 = vpop.f32.mrb[0].mxu0
  %1482 = vmatprep.mubr.bf16.mxu0 %v674
  %1483 = vmatmul.mubr.bf16.gmra.mrb[0].mxu0 %v673
  %v1484 = vpop.f32.mrb[0].mxu0
  %v1485 = vadd.f32 %v1356, %v1484
  %v1486 = vpop.f32.mrb[0].mxu0
  %v1487 = vpop.f32.mrb[0].mxu0
  %v1488 = vadd.f32 %v1359, %v1487
  %v1489 = vpop.f32.mrb[0].mxu0
  %1490 = vmatprep.mubr.bf16.mxu0 %v681
  %1491 = vmatmul.mubr.bf16.gmra.mrb[0].mxu0 %v680
  %v1492 = vpop.f32.mrb[0].mxu0
  %v1493 = vadd.f32 %v1364, %v1492
  %v1494 = vpop.f32.mrb[0].mxu0
  %v1495 = vpop.f32.mrb[0].mxu0
  %v1496 = vadd.f32 %v1367, %v1495
  %v1497 = vpop.f32.mrb[0].mxu0
  %1498 = vmatprep.mubr.bf16.mxu0 %v688
  %1499 = vmatmul.mubr.bf16.gmra.mrb[0].mxu0 %v687
  %v1500 = vpop.f32.mrb[0].mxu0
  %v1501 = vadd.f32 %v1372, %v1500
  %v1502 = vpop.f32.mrb[0].mxu0
  %v1503 = vpop.f32.mrb[0].mxu0
  %v1504 = vadd.f32 %v1375, %v1503
  %v1505 = vpop.f32.mrb[0].mxu0
  %1506 = vmatprep.mubr.bf16.mxu0 %v695
  %1507 = vmatmul.mubr.bf16.gmra.mrb[0].mxu0 %v694
  %v1508 = vpop.f32.mrb[0].mxu0
  %v1509 = vadd.f32 %v1380, %v1508
  %v1510 = vpop.f32.mrb[0].mxu0
  %v1511 = vpop.f32.mrb[0].mxu0
  %v1512 = vadd.f32 %v1383, %v1511
  %v1513 = vpop.f32.mrb[0].mxu0
  %1514 = vmatprep.mubr.bf16.mxu0 %v702
  %1515 = vmatmul.mubr.bf16.gmra.mrb[0].mxu0 %v701
  %v1516 = vpop.f32.mrb[0].mxu0
  %v1517 = vadd.f32 %v1388, %v1516
  %v1518 = vpop.f32.mrb[0].mxu0
  %v1519 = vpop.f32.mrb[0].mxu0
  %v1520 = vadd.f32 %v1391, %v1519
  %v1521 = vpop.f32.mrb[0].mxu0
  %1522 = vmatprep.mubr.bf16.mxu0 %v709
  %1523 = vmatmul.mubr.bf16.gmra.mrb[0].mxu0 %v708
  %v1524 = vpop.f32.mrb[0].mxu0
  %v1525 = vadd.f32 %v1396, %v1524
  %v1526 = vpop.f32.mrb[0].mxu0
  %v1527 = vpop.f32.mrb[0].mxu0
  %v1528 = vadd.f32 %v1399, %v1527
  %v1529 = vpop.f32.mrb[0].mxu0
  %1530 = vdwg.mxu0
  %1531 = vmatprep.subr.bf16.mxu0 0
  %1532 = vmatpush1.bf16.msra.mxu0 %v1047
  %1533 = vmatprep.subr.bf16.mxu0 0
  %1534 = vmatpush1.bf16.msra.mxu0 %v1048
  %1535 = vmatprep.subr.bf16.mxu0 0
  %1536 = vmatpush1.bf16.msra.mxu0 %v1049
  %1537 = vmatprep.subr.bf16.mxu0 0
  %1538 = vmatpush1.bf16.msra.mxu0 %v1050
  %1539 = vmatprep.subr.bf16.mxu0 0
  %1540 = vmatpush1.bf16.msra.mxu0 %v1051
  %1541 = vmatprep.subr.bf16.mxu0 0
  %1542 = vmatpush1.bf16.msra.mxu0 %v1052
  %1543 = vmatprep.subr.bf16.mxu0 0
  %1544 = vmatpush1.bf16.msra.mxu0 0
  %1545 = vmatprep.subr.bf16.mxu0 0
  %1546 = vmatpush1.bf16.msra.mxu0 0
  %1547 = vmatprep.subr.bf16.mxu0 0
  %1548 = vmatpush1.bf16.msra.mxu0 0
  %1549 = vmatprep.subr.bf16.mxu0 0
  %1550 = vmatpush1.bf16.msra.mxu0 0
  %1551 = vmatprep.subr.bf16.mxu0 0
  %1552 = vmatpush1.bf16.msra.mxu0 0
  %1553 = vmatprep.subr.bf16.mxu0 0
  %1554 = vmatpush1.bf16.msra.mxu0 0
  %1555 = vmatprep.subr.bf16.mxu0 0
  %1556 = vmatpush1.bf16.msra.mxu0 0
  %1557 = vmatprep.subr.bf16.mxu0 0
  %1558 = vmatpush1.bf16.msra.mxu0 0
  %1559 = vmatprep.subr.bf16.mxu0 0
  %1560 = vmatpush1.bf16.msra.mxu0 0
  %1561 = vmatprep.subr.bf16.mxu0 0
  %1562 = vmatpush1.bf16.msra.mxu0 0
  %1563 = vmatprep.mubr.bf16.mxu0 0
  %1564 = vmatmul.mubr.bf16.gmra.mrb[0].mxu0 %v1109
  %v1565 = vpop.f32.mrb[0].mxu0
  %v1566 = vadd.f32 %v1437, %v1565
  %v1567 = vpop.f32.mrb[0].mxu0
  %v1568 = vpop.f32.mrb[0].mxu0
  %v1569 = vadd.f32 %v1440, %v1568
  %v1570 = vpop.f32.mrb[0].mxu0
  %1571 = vmatprep.mubr.bf16.mxu0 0
  %1572 = vmatmul.mubr.bf16.gmra.mrb[0].mxu0 %v1112
  %v1573 = vpop.f32.mrb[0].mxu0
  %v1574 = vadd.f32 %v1445, %v1573
  %v1575 = vpop.f32.mrb[0].mxu0
  %v1576 = vpop.f32.mrb[0].mxu0
  %v1577 = vadd.f32 %v1448, %v1576
  %v1578 = vpop.f32.mrb[0].mxu0
  %1579 = vmatprep.mubr.bf16.mxu0 0
  %1580 = vmatmul.mubr.bf16.gmra.mrb[0].mxu0 %v1115
  %v1581 = vpop.f32.mrb[0].mxu0
  %v1582 = vadd.f32 %v1453, %v1581
  %v1583 = vpop.f32.mrb[0].mxu0
  %v1584 = vpop.f32.mrb[0].mxu0
  %v1585 = vadd.f32 %v1456, %v1584
  %v1586 = vpop.f32.mrb[0].mxu0
  %1587 = vmatprep.mubr.bf16.mxu0 0
  %1588 = vmatmul.mubr.bf16.gmra.mrb[0].mxu0 %v1118
  %v1589 = vpop.f32.mrb[0].mxu0
  %v1590 = vadd.f32 %v1461, %v1589
  %v1591 = vpop.f32.mrb[0].mxu0
  %v1592 = vpop.f32.mrb[0].mxu0
  %v1593 = vadd.f32 %v1464, %v1592
  %v1594 = vpop.f32.mrb[0].mxu0
  %1595 = vmatprep.mubr.bf16.mxu0 0
  %1596 = vmatmul.mubr.bf16.gmra.mrb[0].mxu0 %v1121
  %v1597 = vpop.f32.mrb[0].mxu0
  %v1598 = vadd.f32 %v1469, %v1597
  %v1599 = vpop.f32.mrb[0].mxu0
  %v1600 = vpop.f32.mrb[0].mxu0
  %v1601 = vadd.f32 %v1472, %v1600
  %v1602 = vpop.f32.mrb[0].mxu0
  %1603 = vmatprep.mubr.bf16.mxu0 0
  %1604 = vmatmul.mubr.bf16.gmra.mrb[0].mxu0 %v1124
  %v1605 = vpop.f32.mrb[0].mxu0
  %v1606 = vadd.f32 %v1477, %v1605
  %v1607 = vpop.f32.mrb[0].mxu0
  %v1608 = vpop.f32.mrb[0].mxu0
  %v1609 = vadd.f32 %v1480, %v1608
  %v1610 = vpop.f32.mrb[0].mxu0
  %1611 = vmatprep.mubr.bf16.mxu0 0
  %1612 = vmatmul.mubr.bf16.gmra.mrb[0].mxu0 %v1127
  %v1613 = vpop.f32.mrb[0].mxu0
  %v1614 = vadd.f32 %v1485, %v1613
  %v1615 = vpop.f32.mrb[0].mxu0
  %v1616 = vpop.f32.mrb[0].mxu0
  %v1617 = vadd.f32 %v1488, %v1616
  %v1618 = vpop.f32.mrb[0].mxu0
  %1619 = vmatprep.mubr.bf16.mxu0 0
  %1620 = vmatmul.mubr.bf16.gmra.mrb[0].mxu0 %v1130
  %v1621 = vpop.f32.mrb[0].mxu0
  %v1622 = vadd.f32 %v1493, %v1621
  %v1623 = vpop.f32.mrb[0].mxu0
  %v1624 = vpop.f32.mrb[0].mxu0
  %v1625 = vadd.f32 %v1496, %v1624
  %v1626 = vpop.f32.mrb[0].mxu0
  %1627 = vmatprep.mubr.bf16.mxu0 0
  %1628 = vmatmul.mubr.bf16.gmra.mrb[0].mxu0 %v1133
  %v1629 = vpop.f32.mrb[0].mxu0
  %v1630 = vadd.f32 %v1501, %v1629
  %v1631 = vpop.f32.mrb[0].mxu0
  %v1632 = vpop.f32.mrb[0].mxu0
  %v1633 = vadd.f32 %v1504, %v1632
  %v1634 = vpop.f32.mrb[0].mxu0
  %1635 = vmatprep.mubr.bf16.mxu0 0
  %1636 = vmatmul.mubr.bf16.gmra.mrb[0].mxu0 %v1136
  %v1637 = vpop.f32.mrb[0].mxu0
  %v1638 = vadd.f32 %v1509, %v1637
  %v1639 = vpop.f32.mrb[0].mxu0
  %v1640 = vpop.f32.mrb[0].mxu0
  %v1641 = vadd.f32 %v1512, %v1640
  %v1642 = vpop.f32.mrb[0].mxu0
  %1643 = vmatprep.mubr.bf16.mxu0 0
  %1644 = vmatmul.mubr.bf16.gmra.mrb[0].mxu0 %v1139
  %v1645 = vpop.f32.mrb[0].mxu0
  %v1646 = vadd.f32 %v1517, %v1645
  %v1647 = vpop.f32.mrb[0].mxu0
  %v1648 = vpop.f32.mrb[0].mxu0
  %v1649 = vadd.f32 %v1520, %v1648
  %v1650 = vpop.f32.mrb[0].mxu0
  %1651 = vmatprep.mubr.bf16.mxu0 0
  %1652 = vmatmul.mubr.bf16.gmra.mrb[0].mxu0 %v1142
  %v1653 = vpop.f32.mrb[0].mxu0
  %v1654 = vadd.f32 %v1525, %v1653
  %v1655 = vpop.f32.mrb[0].mxu0
  %v1656 = vpop.f32.mrb[0].mxu0
  %v1657 = vadd.f32 %v1528, %v1656
  %v1658 = vpop.f32.mrb[0].mxu0
  %1659 = vdwg.mxu0
  %v1660 = vmax.f32 %v1566, 0.0
  %v1661 = vmax.f32 %v1569, 0.0
  %v1662 = vmax.f32 %v1574, 0.0
  %v1663 = vmax.f32 %v1577, 0.0
  %v1664 = vmax.f32 %v1582, 0.0
  %v1665 = vmax.f32 %v1585, 0.0
  %v1666 = vmax.f32 %v1590, 0.0
  %v1667 = vmax.f32 %v1593, 0.0
  %v1668 = vmax.f32 %v1598, 0.0
  %v1669 = vmax.f32 %v1601, 0.0
  %v1670 = vmax.f32 %v1606, 0.0
  %v1671 = vmax.f32 %v1609, 0.0
  %v1672 = vmax.f32 %v1614, 0.0
  %v1673 = vmax.f32 %v1617, 0.0
  %v1674 = vmax.f32 %v1622, 0.0
  %v1675 = vmax.f32 %v1625, 0.0
  %v1676 = vmax.f32 %v1630, 0.0
  %v1677 = vmax.f32 %v1633, 0.0
  %v1678 = vmax.f32 %v1638, 0.0
  %v1679 = vmax.f32 %v1641, 0.0
  %v1680 = vmax.f32 %v1646, 0.0
  %v1681 = vmax.f32 %v1649, 0.0
  %v1682 = vmax.f32 %v1654, 0.0
  %v1683 = vmax.f32 %v1657, 0.0
  %v1684 = vpack.c.bf16 %v1661, %v1660
  %v1685 = vpack.c.bf16 %v1663, %v1662
  %v1686 = vpack.c.bf16 %v1665, %v1664
  %v1687 = vpack.c.bf16 %v1667, %v1666
  %v1688 = vpack.c.bf16 %v1669, %v1668
  %v1689 = vpack.c.bf16 %v1671, %v1670
  %v1690 = vpack.c.bf16 %v1673, %v1672
  %v1691 = vpack.c.bf16 %v1675, %v1674
  %v1692 = vpack.c.bf16 %v1677, %v1676
  %v1693 = vpack.c.bf16 %v1679, %v1678
  %v1694 = vpack.c.bf16 %v1681, %v1680
  %v1695 = vpack.c.bf16 %v1683, %v1682
  %v1708 = vunpack.c.l.b16 %v1684
  %v1709 = vunpack.c.h.b16 %v1684
  %v1710 = vunpack.c.l.b16 %v1685
  %v1711 = vunpack.c.h.b16 %v1685
  %v1712 = vunpack.c.l.b16 %v1686
  %v1713 = vunpack.c.h.b16 %v1686
  %v1714 = vunpack.c.l.b16 %v1687
  %v1715 = vunpack.c.h.b16 %v1687
  %v1716 = vunpack.c.l.b16 %v1688
  %v1717 = vunpack.c.h.b16 %v1688
  %v1718 = vunpack.c.l.b16 %v1689
  %v1719 = vunpack.c.h.b16 %v1689
  %v1720 = vunpack.c.l.b16 %v1690
  %v1721 = vunpack.c.h.b16 %v1690
  %v1722 = vunpack.c.l.b16 %v1691
  %v1723 = vunpack.c.h.b16 %v1691
  %v1724 = vunpack.c.l.b16 %v1692
  %v1725 = vunpack.c.h.b16 %v1692
  %v1726 = vunpack.c.l.b16 %v1693
  %v1727 = vunpack.c.h.b16 %v1693
  %v1728 = vunpack.c.l.b16 %v1694
  %v1729 = vunpack.c.h.b16 %v1694
  %v1730 = vunpack.c.l.b16 %v1695
  %v1731 = vunpack.c.h.b16 %v1695
  %v1732 = vpack.c.b16 %v1708, %v1708
  %v1733 = vpack.c.b16 %v1709, %v1709
  %v1734 = vpack.c.b16 %v1710, %v1710
  %v1735 = vpack.c.b16 %v1711, %v1711
  %v1736 = vpack.c.b16 %v1712, %v1712
  %v1737 = vpack.c.b16 %v1713, %v1713
  %v1738 = vpack.c.b16 %v1714, %v1714
  %v1739 = vpack.c.b16 %v1715, %v1715
  %v1740 = vpack.c.b16 %v1716, %v1716
  %v1741 = vpack.c.b16 %v1717, %v1717
  %v1742 = vpack.c.b16 %v1718, %v1718
  %v1743 = vpack.c.b16 %v1719, %v1719
  %v1744 = vpack.c.b16 %v1720, %v1720
  %v1745 = vpack.c.b16 %v1721, %v1721
  %v1746 = vpack.c.b16 %v1722, %v1722
  %v1747 = vpack.c.b16 %v1723, %v1723
  %v1748 = vpack.c.b16 %v1724, %v1724
  %v1749 = vpack.c.b16 %v1725, %v1725
  %v1750 = vpack.c.b16 %v1726, %v1726
  %v1751 = vpack.c.b16 %v1727, %v1727
  %v1752 = vpack.c.b16 %v1728, %v1728
  %v1753 = vpack.c.b16 %v1729, %v1729
  %v1754 = vpack.c.b16 %v1730, %v1730
  %v1755 = vpack.c.b16 %v1731, %v1731
  %vm1780 = vcmask 60416
  %1781 = vst.msk [vmem:[%s3] sm:$0xf] %vm1780, %v1732
  %1782 = vst.msk [vmem:[%s3 + $0x4] sm:$0xf] %vm1780, %v1733
  %1783 = vst.msk [vmem:[%s3 + $0x8] sm:$0xf] %vm1780, %v1734
  %1784 = vst.msk [vmem:[%s3 + $0xc] sm:$0xf] %vm1780, %v1735
  %1785 = vst.msk [vmem:[%s3 + $0x10] sm:$0xf] %vm1780, %v1736
  %1786 = vst.msk [vmem:[%s3 + $0x14] sm:$0xf] %vm1780, %v1737
  %1787 = vst.msk [vmem:[%s3 + $0x18] sm:$0xf] %vm1780, %v1738
  %1788 = vst.msk [vmem:[%s3 + $0x1c] sm:$0xf] %vm1780, %v1739
  %1789 = vst.msk [vmem:[%s3 + $0x20] sm:$0xf] %vm1780, %v1740
  %1790 = vst.msk [vmem:[%s3 + $0x24] sm:$0xf] %vm1780, %v1741
  %1791 = vst.msk [vmem:[%s3 + $0x28] sm:$0xf] %vm1780, %v1742
  %1792 = vst.msk [vmem:[%s3 + $0x2c] sm:$0xf] %vm1780, %v1743
  %1793 = vst.msk [vmem:[%s3 + $0x30] sm:$0xf] %vm1780, %v1744
  %1794 = vst.msk [vmem:[%s3 + $0x34] sm:$0xf] %vm1780, %v1745
  %1795 = vst.msk [vmem:[%s3 + $0x38] sm:$0xf] %vm1780, %v1746
  %1796 = vst.msk [vmem:[%s3 + $0x3c] sm:$0xf] %vm1780, %v1747
  %1797 = vst.msk [vmem:[%s3 + $0x40] sm:$0xf] %vm1780, %v1748
  %1798 = vst.msk [vmem:[%s3 + $0x44] sm:$0xf] %vm1780, %v1749
  %1799 = vst.msk [vmem:[%s3 + $0x48] sm:$0xf] %vm1780, %v1750
  %1800 = vst.msk [vmem:[%s3 + $0x4c] sm:$0xf] %vm1780, %v1751
  %1801 = vst.msk [vmem:[%s3 + $0x50] sm:$0xf] %vm1780, %v1752
  %1802 = vst.msk [vmem:[%s3 + $0x54] sm:$0xf] %vm1780, %v1753
  %1803 = vst.msk [vmem:[%s3 + $0x58] sm:$0xf] %vm1780, %v1754
  %1804 = vst.msk [vmem:[%s3 + $0x5c] sm:$0xf] %vm1780, %v1755
  // Predicated region
  $region14: #{autoencoder_forward.12} parent=0 // pred_check
    _
  $region15: #{autoencoder_forward.12} parent=0 // pred_check_branch
    %1806 = sbr.rel (0) target = $region17
  $region16: #{autoencoder_forward.12} parent=0 // pred_region
    _
  $region17: #{autoencoder_forward.12} parent=0 // pred_fallthru
    _
  // Predicated region
  $region18: #{autoencoder_forward.12} parent=0 // pred_check
    _
  $region19: #{autoencoder_forward.12} parent=0 // pred_check_branch
    %1808 = sbr.rel (0) target = $region21
  $region20: #{autoencoder_forward.12} parent=0 // pred_region
    _
  $region21: #{autoencoder_forward.12} parent=0 // pred_fallthru
    _

// kernel: autoencoder_forward.13
$region0: #{autoencoder_forward.13}
  #allocation0 [shape = 'u32[]', space=smem, size = 0x4, offset = 0x4, fixed_abs, tag = 'smem constant byte address 0x4 - core index']
  #allocation1 [shape = 'u32[144,128]{1,0:T(1,128)}', space=vmem, size = 0x12000, scoped, tag = 'internal scratch']
  %s0 = inlined_call_operand.vmem [shape: bf16[96,432], index: 0, kind: input, shape index: {}]
  %s1 = inlined_call_operand.vmem [shape: bf16[432,32], index: 1, kind: input, shape index: {}]
  %s2 = inlined_call_operand.vmem [shape: f32[96,1], index: 2, kind: input, shape index: {}]
  %s3 = inlined_call_operand.vmem [shape: bf16[96,32], index: 3, kind: output, shape index: {}]
  %s4 = sld [smem:[#allocation0]]
  $region22: #{autoencoder_forward.13} parent=0
    _
  %s6 = ssub.s32 1, %s4
  %s7 = scalar_select 0, %s6, %s4
  // Predicated region
  $region2: #{autoencoder_forward.13} parent=0 // pred_check
    _
  $region3: #{autoencoder_forward.13} parent=0 // pred_check_branch
    %9 = sbr.rel (0) target = $region5
  $region4: #{autoencoder_forward.13} parent=0 // pred_region
    _
  $region5: #{autoencoder_forward.13} parent=0 // pred_fallthru
    _
  // Predicated region
  $region6: #{autoencoder_forward.13} parent=0 // pred_check
    _
  $region7: #{autoencoder_forward.13} parent=0 // pred_check_branch
    %11 = sbr.rel (0) target = $region9
  $region8: #{autoencoder_forward.13} parent=0 // pred_region
    _
  $region9: #{autoencoder_forward.13} parent=0 // pred_fallthru
    _
  // Predicated region
  $region10: #{autoencoder_forward.13} parent=0 // pred_check
    _
  $region11: #{autoencoder_forward.13} parent=0 // pred_check_branch
    %13 = sbr.rel (0) target = $region13
  $region12: #{autoencoder_forward.13} parent=0 // pred_region
    _
  $region13: #{autoencoder_forward.13} parent=0 // pred_fallthru
    _
  %v15 = vld [vmem:[%s0] sm:$0xff]
  %v16 = vld [vmem:[%s0 + $0x8] sm:$0xff]
  %v17 = vld [vmem:[%s0 + $0x10] sm:$0xff]
  %v18 = vld [vmem:[%s0 + $0x18] sm:$0xff]
  %v19 = vld [vmem:[%s0 + $0x20] sm:$0xff]
  %v20 = vld [vmem:[%s0 + $0x28] sm:$0xff]
  %v21 = vld [vmem:[%s0 + $0x30] sm:$0xff]
  %v22 = vld [vmem:[%s0 + $0x38] sm:$0xff]
  %v23 = vld [vmem:[%s0 + $0x40] sm:$0xff]
  %v24 = vld [vmem:[%s0 + $0x48] sm:$0xff]
  %v25 = vld [vmem:[%s0 + $0x50] sm:$0xff]
  %v26 = vld [vmem:[%s0 + $0x58] sm:$0xff]
  %v27 = vld [vmem:[%s0 + $0x60] sm:$0xff]
  %v28 = vld [vmem:[%s0 + $0x68] sm:$0xff]
  %v29 = vld [vmem:[%s0 + $0x70] sm:$0xff]
  %v30 = vld [vmem:[%s0 + $0x78] sm:$0xff]
  %v31 = vld [vmem:[%s0 + $0x80] sm:$0xff]
  %v32 = vld [vmem:[%s0 + $0x88] sm:$0xff]
  %v33 = vld [vmem:[%s0 + $0x90] sm:$0xff]
  %v34 = vld [vmem:[%s0 + $0x98] sm:$0xff]
  %v35 = vld [vmem:[%s0 + $0xa0] sm:$0xff]
  %v36 = vld [vmem:[%s0 + $0xa8] sm:$0xff]
  %v37 = vld [vmem:[%s0 + $0xb0] sm:$0xff]
  %v38 = vld [vmem:[%s0 + $0xb8] sm:$0xff]
  %v39 = vld [vmem:[%s1] sm:$0xf]
  %v40 = vld [vmem:[%s1 + $0x4] sm:$0xf]
  %v41 = vld [vmem:[%s1 + $0x8] sm:$0xf]
  %v42 = vld [vmem:[%s1 + $0xc] sm:$0xf]
  %v43 = vld [vmem:[%s1 + $0x10] sm:$0xf]
  %v44 = vld [vmem:[%s1 + $0x14] sm:$0xf]
  %v45 = vld [vmem:[%s1 + $0x18] sm:$0xf]
  %v46 = vld [vmem:[%s1 + $0x1c] sm:$0xf]
  %v47 = vld [vmem:[%s1 + $0x20] sm:$0xf]
  %v48 = vld [vmem:[%s1 + $0x24] sm:$0xf]
  %v49 = vld [vmem:[%s1 + $0x28] sm:$0xf]
  %v50 = vld [vmem:[%s1 + $0x2c] sm:$0xf]
  %v51 = vld [vmem:[%s1 + $0x30] sm:$0xf]
  %v52 = vld [vmem:[%s1 + $0x34] sm:$0xf]
  %v53 = vld [vmem:[%s1 + $0x38] sm:$0xf]
  %v54 = vld [vmem:[%s1 + $0x3c] sm:$0xf]
  %v55 = vld [vmem:[%s1 + $0x40] sm:$0xf]
  %v56 = vld [vmem:[%s1 + $0x44] sm:$0xf]
  %v57 = vld [vmem:[%s1 + $0x48] sm:$0xf]
  %v58 = vld [vmem:[%s1 + $0x4c] sm:$0xf]
  %v59 = vld [vmem:[%s1 + $0x50] sm:$0xf]
  %v60 = vld [vmem:[%s1 + $0x54] sm:$0xf]
  %v61 = vld [vmem:[%s1 + $0x58] sm:$0xf]
  %v62 = vld [vmem:[%s1 + $0x5c] sm:$0xf]
  %v63 = vld [vmem:[%s1 + $0x60] sm:$0xf]
  %v64 = vld [vmem:[%s1 + $0x64] sm:$0xf]
  %v65 = vld [vmem:[%s1 + $0x68] sm:$0xf]
  %v66 = vld [vmem:[%s1 + $0x6c] sm:$0xf]
  %v67 = vld [vmem:[%s1 + $0x70] sm:$0xf]
  %v68 = vld [vmem:[%s1 + $0x74] sm:$0xf]
  %v69 = vld [vmem:[%s1 + $0x78] sm:$0xf]
  %v70 = vld [vmem:[%s1 + $0x7c] sm:$0xf]
  %v71 = vld [vmem:[%s1 + $0x80] sm:$0xf]
  %v72 = vld [vmem:[%s1 + $0x84] sm:$0xf]
  %v73 = vld [vmem:[%s1 + $0x88] sm:$0xf]
  %v74 = vld [vmem:[%s1 + $0x8c] sm:$0xf]
  %v75 = vld [vmem:[%s1 + $0x90] sm:$0xf]
  %v76 = vld [vmem:[%s1 + $0x94] sm:$0xf]
  %v77 = vld [vmem:[%s1 + $0x98] sm:$0xf]
  %v78 = vld [vmem:[%s1 + $0x9c] sm:$0xf]
  %v79 = vld [vmem:[%s1 + $0xa0] sm:$0xf]
  %v80 = vld [vmem:[%s1 + $0xa4] sm:$0xf]
  %v81 = vld [vmem:[%s1 + $0xa8] sm:$0xf]
  %v82 = vld [vmem:[%s1 + $0xac] sm:$0xf]
  %v83 = vld [vmem:[%s1 + $0xb0] sm:$0xf]
  %v84 = vld [vmem:[%s1 + $0xb4] sm:$0xf]
  %v85 = vld [vmem:[%s1 + $0xb8] sm:$0xf]
  %v86 = vld [vmem:[%s1 + $0xbc] sm:$0xf]
  %v87 = vld [vmem:[%s1 + $0xc0] sm:$0xf]
  %v88 = vld [vmem:[%s1 + $0xc4] sm:$0xf]
  %v89 = vld [vmem:[%s1 + $0xc8] sm:$0xf]
  %v90 = vld [vmem:[%s1 + $0xcc] sm:$0xf]
  %v91 = vld [vmem:[%s1 + $0xd0] sm:$0xf]
  %v92 = vld [vmem:[%s1 + $0xd4] sm:$0xf]
  %v93 = vld [vmem:[%s2] sm:$0xff]
  %v94 = vld [vmem:[%s2 + $0x8] sm:$0xff]
  %v95 = vld [vmem:[%s2 + $0x10] sm:$0xff]
  %v96 = vld [vmem:[%s2 + $0x18] sm:$0xff]
  %v97 = vld [vmem:[%s2 + $0x20] sm:$0xff]
  %v98 = vld [vmem:[%s2 + $0x28] sm:$0xff]
  %v99 = vld [vmem:[%s2 + $0x30] sm:$0xff]
  %v100 = vld [vmem:[%s2 + $0x38] sm:$0xff]
  %v101 = vld [vmem:[%s2 + $0x40] sm:$0xff]
  %v102 = vld [vmem:[%s2 + $0x48] sm:$0xff]
  %v103 = vld [vmem:[%s2 + $0x50] sm:$0xff]
  %v104 = vld [vmem:[%s2 + $0x58] sm:$0xff]
  %106 = vset.pattern.permute.xlu0 0
  %107 = vperm.xlu0 %106, %v93
  %v108 = vpop.permute.xlu0 %107
  %111 = vset.pattern.permute.xlu0 0
  %112 = vperm.xlu0 %111, %v94
  %v113 = vpop.permute.xlu0 %112
  %116 = vset.pattern.permute.xlu0 0
  %117 = vperm.xlu0 %116, %v95
  %v118 = vpop.permute.xlu0 %117
  %121 = vset.pattern.permute.xlu0 0
  %122 = vperm.xlu0 %121, %v96
  %v123 = vpop.permute.xlu0 %122
  %126 = vset.pattern.permute.xlu0 0
  %127 = vperm.xlu0 %126, %v97
  %v128 = vpop.permute.xlu0 %127
  %131 = vset.pattern.permute.xlu0 0
  %132 = vperm.xlu0 %131, %v98
  %v133 = vpop.permute.xlu0 %132
  %136 = vset.pattern.permute.xlu0 0
  %137 = vperm.xlu0 %136, %v99
  %v138 = vpop.permute.xlu0 %137
  %141 = vset.pattern.permute.xlu0 0
  %142 = vperm.xlu0 %141, %v100
  %v143 = vpop.permute.xlu0 %142
  %146 = vset.pattern.permute.xlu0 0
  %147 = vperm.xlu0 %146, %v101
  %v148 = vpop.permute.xlu0 %147
  %151 = vset.pattern.permute.xlu0 0
  %152 = vperm.xlu0 %151, %v102
  %v153 = vpop.permute.xlu0 %152
  %156 = vset.pattern.permute.xlu0 0
  %157 = vperm.xlu0 %156, %v103
  %v158 = vpop.permute.xlu0 %157
  %161 = vset.pattern.permute.xlu0 0
  %162 = vperm.xlu0 %161, %v104
  %v163 = vpop.permute.xlu0 %162
  %v189 = vunpack.c.l.b16 %v15
  %v190 = vunpack.c.h.b16 %v15
  %v191 = vunpack.c.l.b16 %v16
  %v192 = vunpack.c.h.b16 %v16
  %v193 = vunpack.c.l.b16 %v17
  %v194 = vunpack.c.h.b16 %v17
  %v195 = vunpack.c.l.b16 %v18
  %v196 = vunpack.c.h.b16 %v18
  %v197 = vunpack.c.l.b16 %v19
  %v198 = vunpack.c.h.b16 %v19
  %v199 = vunpack.c.l.b16 %v20
  %v200 = vunpack.c.h.b16 %v20
  %v201 = vunpack.c.l.b16 %v21
  %v202 = vunpack.c.h.b16 %v21
  %v203 = vunpack.c.l.b16 %v22
  %v204 = vunpack.c.h.b16 %v22
  %v205 = vunpack.c.l.b16 %v23
  %v206 = vunpack.c.h.b16 %v23
  %v207 = vunpack.c.l.b16 %v24
  %v208 = vunpack.c.h.b16 %v24
  %v209 = vunpack.c.l.b16 %v25
  %v210 = vunpack.c.h.b16 %v25
  %v211 = vunpack.c.l.b16 %v26
  %v212 = vunpack.c.h.b16 %v26
  %v213 = vunpack.c.l.b16 %v27
  %v214 = vunpack.c.h.b16 %v27
  %v215 = vunpack.c.l.b16 %v28
  %v216 = vunpack.c.h.b16 %v28
  %v217 = vunpack.c.l.b16 %v29
  %v218 = vunpack.c.h.b16 %v29
  %v219 = vunpack.c.l.b16 %v30
  %v220 = vunpack.c.h.b16 %v30
  %v221 = vunpack.c.l.b16 %v31
  %v222 = vunpack.c.h.b16 %v31
  %v223 = vunpack.c.l.b16 %v32
  %v224 = vunpack.c.h.b16 %v32
  %v225 = vunpack.c.l.b16 %v33
  %v226 = vunpack.c.h.b16 %v33
  %v227 = vunpack.c.l.b16 %v34
  %v228 = vunpack.c.h.b16 %v34
  %v229 = vunpack.c.l.b16 %v35
  %v230 = vunpack.c.h.b16 %v35
  %v231 = vunpack.c.l.b16 %v36
  %v232 = vunpack.c.h.b16 %v36
  %v233 = vunpack.c.l.b16 %v37
  %v234 = vunpack.c.h.b16 %v37
  %v235 = vunpack.c.l.b16 %v38
  %v236 = vunpack.c.h.b16 %v38
  %v237 = vpack.c.b16 %v193, %v189
  %v238 = vpack.c.b16 %v194, %v190
  %v239 = vpack.c.b16 %v195, %v191
  %v240 = vpack.c.b16 %v196, %v192
  %v241 = vpack.c.b16 %v201, %v197
  %v242 = vpack.c.b16 %v202, %v198
  %v243 = vpack.c.b16 %v203, %v199
  %v244 = vpack.c.b16 %v204, %v200
  %v245 = vpack.c.b16 %v209, %v205
  %v246 = vpack.c.b16 %v210, %v206
  %v247 = vpack.c.b16 %v211, %v207
  %v248 = vpack.c.b16 %v212, %v208
  %v249 = vpack.c.b16 %v217, %v213
  %v250 = vpack.c.b16 %v218, %v214
  %v251 = vpack.c.b16 %v219, %v215
  %v252 = vpack.c.b16 %v220, %v216
  %v253 = vpack.c.b16 %v225, %v221
  %v254 = vpack.c.b16 %v226, %v222
  %v255 = vpack.c.b16 %v227, %v223
  %v256 = vpack.c.b16 %v228, %v224
  %v257 = vpack.c.b16 %v233, %v229
  %v258 = vpack.c.b16 %v234, %v230
  %v259 = vpack.c.b16 %v235, %v231
  %v260 = vpack.c.b16 %v236, %v232
  %v333 = vunpack.c.l.b16 %v39
  %v334 = vunpack.c.l.b16 %v40
  %v335 = vunpack.c.l.b16 %v41
  %v336 = vunpack.c.l.b16 %v42
  %v337 = vunpack.c.l.b16 %v43
  %v338 = vunpack.c.l.b16 %v44
  %v339 = vunpack.c.l.b16 %v45
  %v340 = vunpack.c.l.b16 %v46
  %v341 = vunpack.c.l.b16 %v47
  %v342 = vunpack.c.l.b16 %v48
  %v343 = vunpack.c.l.b16 %v49
  %v344 = vunpack.c.l.b16 %v50
  %v345 = vunpack.c.l.b16 %v51
  %v346 = vunpack.c.l.b16 %v52
  %v347 = vunpack.c.l.b16 %v53
  %v348 = vunpack.c.l.b16 %v54
  %v349 = vunpack.c.l.b16 %v55
  %v350 = vunpack.c.l.b16 %v56
  %v351 = vunpack.c.l.b16 %v57
  %v352 = vunpack.c.l.b16 %v58
  %v353 = vunpack.c.l.b16 %v59
  %v354 = vunpack.c.l.b16 %v60
  %v355 = vunpack.c.l.b16 %v61
  %v356 = vunpack.c.l.b16 %v62
  %v357 = vunpack.c.l.b16 %v63
  %v358 = vunpack.c.l.b16 %v64
  %v359 = vunpack.c.l.b16 %v65
  %v360 = vunpack.c.l.b16 %v66
  %v361 = vunpack.c.l.b16 %v67
  %v362 = vunpack.c.l.b16 %v68
  %v363 = vunpack.c.l.b16 %v69
  %v364 = vunpack.c.l.b16 %v70
  %v365 = vunpack.c.l.b16 %v71
  %v366 = vunpack.c.l.b16 %v72
  %v367 = vunpack.c.l.b16 %v73
  %v368 = vunpack.c.l.b16 %v74
  %v369 = vunpack.c.l.b16 %v75
  %v370 = vunpack.c.l.b16 %v76
  %v371 = vunpack.c.l.b16 %v77
  %v372 = vunpack.c.l.b16 %v78
  %v373 = vunpack.c.l.b16 %v79
  %v374 = vunpack.c.l.b16 %v80
  %v375 = vunpack.c.l.b16 %v81
  %v376 = vunpack.c.l.b16 %v82
  %v377 = vunpack.c.l.b16 %v83
  %v378 = vunpack.c.l.b16 %v84
  %v379 = vunpack.c.l.b16 %v85
  %v380 = vunpack.c.l.b16 %v86
  %v381 = vunpack.c.l.b16 %v87
  %v382 = vunpack.c.l.b16 %v88
  %v383 = vunpack.c.l.b16 %v89
  %v384 = vunpack.c.l.b16 %v90
  %v385 = vunpack.c.l.b16 %v91
  %v386 = vunpack.c.l.b16 %v92
  %v387 = vpack.c.b16 %v334, %v333
  %v388 = vpack.c.b16 %v336, %v335
  %v389 = vpack.c.b16 %v338, %v337
  %v390 = vpack.c.b16 %v340, %v339
  %v391 = vpack.c.b16 %v342, %v341
  %v392 = vpack.c.b16 %v344, %v343
  %v393 = vpack.c.b16 %v346, %v345
  %v394 = vpack.c.b16 %v348, %v347
  %v395 = vpack.c.b16 %v350, %v349
  %v396 = vpack.c.b16 %v352, %v351
  %v397 = vpack.c.b16 %v354, %v353
  %v398 = vpack.c.b16 %v356, %v355
  %v399 = vpack.c.b16 %v358, %v357
  %v400 = vpack.c.b16 %v360, %v359
  %v401 = vpack.c.b16 %v362, %v361
  %v402 = vpack.c.b16 %v364, %v363
  %v403 = vpack.c.b16 %v366, %v365
  %v404 = vpack.c.b16 %v368, %v367
  %v405 = vpack.c.b16 %v370, %v369
  %v406 = vpack.c.b16 %v372, %v371
  %v407 = vpack.c.b16 %v374, %v373
  %v408 = vpack.c.b16 %v376, %v375
  %v409 = vpack.c.b16 %v378, %v377
  %v410 = vpack.c.b16 %v380, %v379
  %v411 = vpack.c.b16 %v382, %v381
  %v412 = vpack.c.b16 %v384, %v383
  %v413 = vpack.c.b16 %v386, %v385
  %vm441 = vcmask 392192
  %v443 = vsel %vm441, %v240, 0
  %v446 = vsel %vm441, %v244, 0
  %v449 = vsel %vm441, %v248, 0
  %v452 = vsel %vm441, %v252, 0
  %v455 = vsel %vm441, %v256, 0
  %v458 = vsel %vm441, %v260, 0
  %460 = vmatprep.subr.bf16.mxu0 0
  %461 = vmatpush1.bf16.msra.mxu0 %v387
  %462 = vmatprep.subr.bf16.mxu0 0
  %463 = vmatpush1.bf16.msra.mxu0 %v388
  %464 = vmatprep.subr.bf16.mxu0 0
  %465 = vmatpush1.bf16.msra.mxu0 %v389
  %466 = vmatprep.subr.bf16.mxu0 0
  %467 = vmatpush1.bf16.msra.mxu0 %v390
  %468 = vmatprep.subr.bf16.mxu0 0
  %469 = vmatpush1.bf16.msra.mxu0 %v391
  %470 = vmatprep.subr.bf16.mxu0 0
  %471 = vmatpush1.bf16.msra.mxu0 %v392
  %472 = vmatprep.subr.bf16.mxu0 0
  %473 = vmatpush1.bf16.msra.mxu0 %v393
  %474 = vmatprep.subr.bf16.mxu0 0
  %475 = vmatpush1.bf16.msra.mxu0 %v394
  %476 = vmatprep.subr.bf16.mxu0 0
  %477 = vmatpush1.bf16.msra.mxu0 %v395
  %478 = vmatprep.subr.bf16.mxu0 0
  %479 = vmatpush1.bf16.msra.mxu0 %v396
  %480 = vmatprep.subr.bf16.mxu0 0
  %481 = vmatpush1.bf16.msra.mxu0 %v397
  %482 = vmatprep.subr.bf16.mxu0 0
  %483 = vmatpush1.bf16.msra.mxu0 %v398
  %484 = vmatprep.subr.bf16.mxu0 0
  %485 = vmatpush1.bf16.msra.mxu0 %v399
  %486 = vmatprep.subr.bf16.mxu0 0
  %487 = vmatpush1.bf16.msra.mxu0 %v400
  %488 = vmatprep.subr.bf16.mxu0 0
  %489 = vmatpush1.bf16.msra.mxu0 %v401
  %490 = vmatprep.subr.bf16.mxu0 0
  %491 = vmatpush1.bf16.msra.mxu0 %v402
  %492 = vmatprep.mubr.bf16.mxu0 %v238
  %493 = vmatmul.mubr.bf16.gmra.mrb[0].mxu0 %v237
  %v494 = vpop.f32.mrb[0].mxu0
  %v495 = vadd.f32 %v108, %v494
  %v496 = vpop.f32.mrb[0].mxu0
  %v497 = vpop.f32.mrb[0].mxu0
  %v498 = vadd.f32 %v113, %v497
  %v499 = vpop.f32.mrb[0].mxu0
  %500 = vmatprep.mubr.bf16.mxu0 %v242
  %501 = vmatmul.mubr.bf16.gmra.mrb[0].mxu0 %v241
  %v502 = vpop.f32.mrb[0].mxu0
  %v503 = vadd.f32 %v118, %v502
  %v504 = vpop.f32.mrb[0].mxu0
  %v505 = vpop.f32.mrb[0].mxu0
  %v506 = vadd.f32 %v123, %v505
  %v507 = vpop.f32.mrb[0].mxu0
  %508 = vmatprep.mubr.bf16.mxu0 %v246
  %509 = vmatmul.mubr.bf16.gmra.mrb[0].mxu0 %v245
  %v510 = vpop.f32.mrb[0].mxu0
  %v511 = vadd.f32 %v128, %v510
  %v512 = vpop.f32.mrb[0].mxu0
  %v513 = vpop.f32.mrb[0].mxu0
  %v514 = vadd.f32 %v133, %v513
  %v515 = vpop.f32.mrb[0].mxu0
  %516 = vmatprep.mubr.bf16.mxu0 %v250
  %517 = vmatmul.mubr.bf16.gmra.mrb[0].mxu0 %v249
  %v518 = vpop.f32.mrb[0].mxu0
  %v519 = vadd.f32 %v138, %v518
  %v520 = vpop.f32.mrb[0].mxu0
  %v521 = vpop.f32.mrb[0].mxu0
  %v522 = vadd.f32 %v143, %v521
  %v523 = vpop.f32.mrb[0].mxu0
  %524 = vmatprep.mubr.bf16.mxu0 %v254
  %525 = vmatmul.mubr.bf16.gmra.mrb[0].mxu0 %v253
  %v526 = vpop.f32.mrb[0].mxu0
  %v527 = vadd.f32 %v148, %v526
  %v528 = vpop.f32.mrb[0].mxu0
  %v529 = vpop.f32.mrb[0].mxu0
  %v530 = vadd.f32 %v153, %v529
  %v531 = vpop.f32.mrb[0].mxu0
  %532 = vmatprep.mubr.bf16.mxu0 %v258
  %533 = vmatmul.mubr.bf16.gmra.mrb[0].mxu0 %v257
  %v534 = vpop.f32.mrb[0].mxu0
  %v535 = vadd.f32 %v158, %v534
  %v536 = vpop.f32.mrb[0].mxu0
  %v537 = vpop.f32.mrb[0].mxu0
  %v538 = vadd.f32 %v163, %v537
  %v539 = vpop.f32.mrb[0].mxu0
  %540 = vdwg.mxu0
  %541 = vmatprep.subr.bf16.mxu0 0
  %542 = vmatpush1.bf16.msra.mxu0 %v403
  %543 = vmatprep.subr.bf16.mxu0 0
  %544 = vmatpush1.bf16.msra.mxu0 %v404
  %545 = vmatprep.subr.bf16.mxu0 0
  %546 = vmatpush1.bf16.msra.mxu0 %v405
  %547 = vmatprep.subr.bf16.mxu0 0
  %548 = vmatpush1.bf16.msra.mxu0 %v406
  %549 = vmatprep.subr.bf16.mxu0 0
  %550 = vmatpush1.bf16.msra.mxu0 %v407
  %551 = vmatprep.subr.bf16.mxu0 0
  %552 = vmatpush1.bf16.msra.mxu0 %v408
  %553 = vmatprep.subr.bf16.mxu0 0
  %554 = vmatpush1.bf16.msra.mxu0 %v409
  %555 = vmatprep.subr.bf16.mxu0 0
  %556 = vmatpush1.bf16.msra.mxu0 %v410
  %557 = vmatprep.subr.bf16.mxu0 0
  %558 = vmatpush1.bf16.msra.mxu0 %v411
  %559 = vmatprep.subr.bf16.mxu0 0
  %560 = vmatpush1.bf16.msra.mxu0 %v412
  %561 = vmatprep.subr.bf16.mxu0 0
  %562 = vmatpush1.bf16.msra.mxu0 %v413
  %563 = vmatprep.subr.bf16.mxu0 0
  %564 = vmatpush1.bf16.msra.mxu0 0
  %565 = vmatprep.subr.bf16.mxu0 0
  %566 = vmatpush1.bf16.msra.mxu0 0
  %567 = vmatprep.subr.bf16.mxu0 0
  %568 = vmatpush1.bf16.msra.mxu0 0
  %569 = vmatprep.subr.bf16.mxu0 0
  %570 = vmatpush1.bf16.msra.mxu0 0
  %571 = vmatprep.subr.bf16.mxu0 0
  %572 = vmatpush1.bf16.msra.mxu0 0
  %573 = vmatprep.mubr.bf16.mxu0 %v443
  %574 = vmatmul.mubr.bf16.gmra.mrb[0].mxu0 %v239
  %v575 = vpop.f32.mrb[0].mxu0
  %v576 = vadd.f32 %v495, %v575
  %v577 = vpop.f32.mrb[0].mxu0
  %v578 = vpop.f32.mrb[0].mxu0
  %v579 = vadd.f32 %v498, %v578
  %v580 = vpop.f32.mrb[0].mxu0
  %581 = vmatprep.mubr.bf16.mxu0 %v446
  %582 = vmatmul.mubr.bf16.gmra.mrb[0].mxu0 %v243
  %v583 = vpop.f32.mrb[0].mxu0
  %v584 = vadd.f32 %v503, %v583
  %v585 = vpop.f32.mrb[0].mxu0
  %v586 = vpop.f32.mrb[0].mxu0
  %v587 = vadd.f32 %v506, %v586
  %v588 = vpop.f32.mrb[0].mxu0
  %589 = vmatprep.mubr.bf16.mxu0 %v449
  %590 = vmatmul.mubr.bf16.gmra.mrb[0].mxu0 %v247
  %v591 = vpop.f32.mrb[0].mxu0
  %v592 = vadd.f32 %v511, %v591
  %v593 = vpop.f32.mrb[0].mxu0
  %v594 = vpop.f32.mrb[0].mxu0
  %v595 = vadd.f32 %v514, %v594
  %v596 = vpop.f32.mrb[0].mxu0
  %597 = vmatprep.mubr.bf16.mxu0 %v452
  %598 = vmatmul.mubr.bf16.gmra.mrb[0].mxu0 %v251
  %v599 = vpop.f32.mrb[0].mxu0
  %v600 = vadd.f32 %v519, %v599
  %v601 = vpop.f32.mrb[0].mxu0
  %v602 = vpop.f32.mrb[0].mxu0
  %v603 = vadd.f32 %v522, %v602
  %v604 = vpop.f32.mrb[0].mxu0
  %605 = vmatprep.mubr.bf16.mxu0 %v455
  %606 = vmatmul.mubr.bf16.gmra.mrb[0].mxu0 %v255
  %v607 = vpop.f32.mrb[0].mxu0
  %v608 = vadd.f32 %v527, %v607
  %v609 = vpop.f32.mrb[0].mxu0
  %v610 = vpop.f32.mrb[0].mxu0
  %v611 = vadd.f32 %v530, %v610
  %v612 = vpop.f32.mrb[0].mxu0
  %613 = vmatprep.mubr.bf16.mxu0 %v458
  %614 = vmatmul.mubr.bf16.gmra.mrb[0].mxu0 %v259
  %v615 = vpop.f32.mrb[0].mxu0
  %v616 = vadd.f32 %v535, %v615
  %v617 = vpop.f32.mrb[0].mxu0
  %v618 = vpop.f32.mrb[0].mxu0
  %v619 = vadd.f32 %v538, %v618
  %v620 = vpop.f32.mrb[0].mxu0
  %621 = vdwg.mxu0
  %v622 = vmax.f32 %v576, 0.0
  %v623 = vmax.f32 %v579, 0.0
  %v624 = vmax.f32 %v584, 0.0
  %v625 = vmax.f32 %v587, 0.0
  %v626 = vmax.f32 %v592, 0.0
  %v627 = vmax.f32 %v595, 0.0
  %v628 = vmax.f32 %v600, 0.0
  %v629 = vmax.f32 %v603, 0.0
  %v630 = vmax.f32 %v608, 0.0
  %v631 = vmax.f32 %v611, 0.0
  %v632 = vmax.f32 %v616, 0.0
  %v633 = vmax.f32 %v619, 0.0
  %v634 = vpack.c.bf16 %v623, %v622
  %v635 = vpack.c.bf16 %v625, %v624
  %v636 = vpack.c.bf16 %v627, %v626
  %v637 = vpack.c.bf16 %v629, %v628
  %v638 = vpack.c.bf16 %v631, %v630
  %v639 = vpack.c.bf16 %v633, %v632
  %v646 = vunpack.c.l.b16 %v634
  %v647 = vunpack.c.h.b16 %v634
  %v648 = vunpack.c.l.b16 %v635
  %v649 = vunpack.c.h.b16 %v635
  %v650 = vunpack.c.l.b16 %v636
  %v651 = vunpack.c.h.b16 %v636
  %v652 = vunpack.c.l.b16 %v637
  %v653 = vunpack.c.h.b16 %v637
  %v654 = vunpack.c.l.b16 %v638
  %v655 = vunpack.c.h.b16 %v638
  %v656 = vunpack.c.l.b16 %v639
  %v657 = vunpack.c.h.b16 %v639
  %v658 = vpack.c.b16 %v646, %v646
  %v659 = vpack.c.b16 %v647, %v647
  %v660 = vpack.c.b16 %v648, %v648
  %v661 = vpack.c.b16 %v649, %v649
  %v662 = vpack.c.b16 %v650, %v650
  %v663 = vpack.c.b16 %v651, %v651
  %v664 = vpack.c.b16 %v652, %v652
  %v665 = vpack.c.b16 %v653, %v653
  %v666 = vpack.c.b16 %v654, %v654
  %v667 = vpack.c.b16 %v655, %v655
  %v668 = vpack.c.b16 %v656, %v656
  %v669 = vpack.c.b16 %v657, %v657
  %vm682 = vcmask 257024
  %683 = vst.msk [vmem:[%s3] sm:$0xf] %vm682, %v658
  %684 = vst.msk [vmem:[%s3 + $0x4] sm:$0xf] %vm682, %v659
  %685 = vst.msk [vmem:[%s3 + $0x8] sm:$0xf] %vm682, %v660
  %686 = vst.msk [vmem:[%s3 + $0xc] sm:$0xf] %vm682, %v661
  %687 = vst.msk [vmem:[%s3 + $0x10] sm:$0xf] %vm682, %v662
  %688 = vst.msk [vmem:[%s3 + $0x14] sm:$0xf] %vm682, %v663
  %689 = vst.msk [vmem:[%s3 + $0x18] sm:$0xf] %vm682, %v664
  %690 = vst.msk [vmem:[%s3 + $0x1c] sm:$0xf] %vm682, %v665
  %691 = vst.msk [vmem:[%s3 + $0x20] sm:$0xf] %vm682, %v666
  %692 = vst.msk [vmem:[%s3 + $0x24] sm:$0xf] %vm682, %v667
  %693 = vst.msk [vmem:[%s3 + $0x28] sm:$0xf] %vm682, %v668
  %694 = vst.msk [vmem:[%s3 + $0x2c] sm:$0xf] %vm682, %v669
  // Predicated region
  $region14: #{autoencoder_forward.13} parent=0 // pred_check
    _
  $region15: #{autoencoder_forward.13} parent=0 // pred_check_branch
    %696 = sbr.rel (0) target = $region17
  $region16: #{autoencoder_forward.13} parent=0 // pred_region
    _
  $region17: #{autoencoder_forward.13} parent=0 // pred_fallthru
    _
  // Predicated region
  $region18: #{autoencoder_forward.13} parent=0 // pred_check
    _
  $region19: #{autoencoder_forward.13} parent=0 // pred_check_branch
    %698 = sbr.rel (0) target = $region21
  $region20: #{autoencoder_forward.13} parent=0 // pred_region
    _
  $region21: #{autoencoder_forward.13} parent=0 // pred_fallthru
    _

// kernel: autoencoder_forward.14
$region0: #{autoencoder_forward.14}
  #allocation0 [shape = 'u32[]', space=smem, size = 0x4, offset = 0x4, fixed_abs, tag = 'smem constant byte address 0x4 - core index']
  #allocation1 [shape = 'u32[144,128]{1,0:T(1,128)}', space=vmem, size = 0x12000, scoped, tag = 'internal scratch']
  %s0 = inlined_call_operand.vmem [shape: bf16[48,216], index: 0, kind: input, shape index: {}]
  %s1 = inlined_call_operand.vmem [shape: bf16[216,128], index: 1, kind: input, shape index: {}]
  %s2 = inlined_call_operand.vmem [shape: f32[48,1], index: 2, kind: input, shape index: {}]
  %s3 = inlined_call_operand.vmem [shape: bf16[48,128], index: 3, kind: output, shape index: {}]
  %s4 = sld [smem:[#allocation0]]
  $region22: #{autoencoder_forward.14} parent=0
    _
  %s6 = ssub.s32 1, %s4
  %s7 = scalar_select 0, %s6, %s4
  // Predicated region
  $region2: #{autoencoder_forward.14} parent=0 // pred_check
    _
  $region3: #{autoencoder_forward.14} parent=0 // pred_check_branch
    %9 = sbr.rel (0) target = $region5
  $region4: #{autoencoder_forward.14} parent=0 // pred_region
    _
  $region5: #{autoencoder_forward.14} parent=0 // pred_fallthru
    _
  // Predicated region
  $region6: #{autoencoder_forward.14} parent=0 // pred_check
    _
  $region7: #{autoencoder_forward.14} parent=0 // pred_check_branch
    %11 = sbr.rel (0) target = $region9
  $region8: #{autoencoder_forward.14} parent=0 // pred_region
    _
  $region9: #{autoencoder_forward.14} parent=0 // pred_fallthru
    _
  // Predicated region
  $region10: #{autoencoder_forward.14} parent=0 // pred_check
    _
  $region11: #{autoencoder_forward.14} parent=0 // pred_check_branch
    %13 = sbr.rel (0) target = $region13
  $region12: #{autoencoder_forward.14} parent=0 // pred_region
    _
  $region13: #{autoencoder_forward.14} parent=0 // pred_fallthru
    _
  %v15 = vld [vmem:[%s0] sm:$0xff]
  %v16 = vld [vmem:[%s0 + $0x8] sm:$0xff]
  %v17 = vld [vmem:[%s0 + $0x10] sm:$0xff]
  %v18 = vld [vmem:[%s0 + $0x18] sm:$0xff]
  %v19 = vld [vmem:[%s0 + $0x20] sm:$0xff]
  %v20 = vld [vmem:[%s0 + $0x28] sm:$0xff]
  %v21 = vld [vmem:[%s1] sm:$0xf]
  %v22 = vld [vmem:[%s1 + $0x4] sm:$0xf]
  %v23 = vld [vmem:[%s1 + $0x8] sm:$0xf]
  %v24 = vld [vmem:[%s1 + $0xc] sm:$0xf]
  %v25 = vld [vmem:[%s1 + $0x10] sm:$0xf]
  %v26 = vld [vmem:[%s1 + $0x14] sm:$0xf]
  %v27 = vld [vmem:[%s1 + $0x18] sm:$0xf]
  %v28 = vld [vmem:[%s1 + $0x1c] sm:$0xf]
  %v29 = vld [vmem:[%s1 + $0x20] sm:$0xf]
  %v30 = vld [vmem:[%s1 + $0x24] sm:$0xf]
  %v31 = vld [vmem:[%s1 + $0x28] sm:$0xf]
  %v32 = vld [vmem:[%s1 + $0x2c] sm:$0xf]
  %v33 = vld [vmem:[%s1 + $0x30] sm:$0xf]
  %v34 = vld [vmem:[%s1 + $0x34] sm:$0xf]
  %v35 = vld [vmem:[%s1 + $0x38] sm:$0xf]
  %v36 = vld [vmem:[%s1 + $0x3c] sm:$0xf]
  %v37 = vld [vmem:[%s1 + $0x40] sm:$0xf]
  %v38 = vld [vmem:[%s1 + $0x44] sm:$0xf]
  %v39 = vld [vmem:[%s1 + $0x48] sm:$0xf]
  %v40 = vld [vmem:[%s1 + $0x4c] sm:$0xf]
  %v41 = vld [vmem:[%s1 + $0x50] sm:$0xf]
  %v42 = vld [vmem:[%s1 + $0x54] sm:$0xf]
  %v43 = vld [vmem:[%s1 + $0x58] sm:$0xf]
  %v44 = vld [vmem:[%s1 + $0x5c] sm:$0xf]
  %v45 = vld [vmem:[%s1 + $0x60] sm:$0xf]
  %v46 = vld [vmem:[%s1 + $0x64] sm:$0xf]
  %v47 = vld [vmem:[%s1 + $0x68] sm:$0xf]
  %v48 = vld [vmem:[%s2] sm:$0xff]
  %v49 = vld [vmem:[%s2 + $0x8] sm:$0xff]
  %v50 = vld [vmem:[%s2 + $0x10] sm:$0xff]
  %v51 = vld [vmem:[%s2 + $0x18] sm:$0xff]
  %v52 = vld [vmem:[%s2 + $0x20] sm:$0xff]
  %v53 = vld [vmem:[%s2 + $0x28] sm:$0xff]
  %55 = vset.pattern.permute.xlu0 0
  %56 = vperm.xlu0 %55, %v48
  %v57 = vpop.permute.xlu0 %56
  %60 = vset.pattern.permute.xlu0 0
  %61 = vperm.xlu0 %60, %v49
  %v62 = vpop.permute.xlu0 %61
  %65 = vset.pattern.permute.xlu0 0
  %66 = vperm.xlu0 %65, %v50
  %v67 = vpop.permute.xlu0 %66
  %70 = vset.pattern.permute.xlu0 0
  %71 = vperm.xlu0 %70, %v51
  %v72 = vpop.permute.xlu0 %71
  %75 = vset.pattern.permute.xlu0 0
  %76 = vperm.xlu0 %75, %v52
  %v77 = vpop.permute.xlu0 %76
  %80 = vset.pattern.permute.xlu0 0
  %81 = vperm.xlu0 %80, %v53
  %v82 = vpop.permute.xlu0 %81
  %v90 = vunpack.c.l.b16 %v15
  %v91 = vunpack.c.h.b16 %v15
  %v92 = vunpack.c.l.b16 %v16
  %v93 = vunpack.c.h.b16 %v16
  %v94 = vunpack.c.l.b16 %v17
  %v95 = vunpack.c.h.b16 %v17
  %v96 = vunpack.c.l.b16 %v18
  %v97 = vunpack.c.h.b16 %v18
  %v98 = vunpack.c.l.b16 %v19
  %v99 = vunpack.c.h.b16 %v19
  %v100 = vunpack.c.l.b16 %v20
  %v101 = vunpack.c.h.b16 %v20
  %v102 = vpack.c.b16 %v92, %v90
  %v103 = vpack.c.b16 %v93, %v91
  %v104 = vpack.c.b16 %v96, %v94
  %v105 = vpack.c.b16 %v97, %v95
  %v106 = vpack.c.b16 %v100, %v98
  %v107 = vpack.c.b16 %v101, %v99
  %v138 = vunpack.c.l.b16 %v21
  %v139 = vunpack.c.l.b16 %v22
  %v140 = vunpack.c.l.b16 %v23
  %v141 = vunpack.c.l.b16 %v24
  %v142 = vunpack.c.l.b16 %v25
  %v143 = vunpack.c.l.b16 %v26
  %v144 = vunpack.c.l.b16 %v27
  %v145 = vunpack.c.l.b16 %v28
  %v146 = vunpack.c.l.b16 %v29
  %v147 = vunpack.c.l.b16 %v30
  %v148 = vunpack.c.l.b16 %v31
  %v149 = vunpack.c.l.b16 %v32
  %v150 = vunpack.c.l.b16 %v33
  %v151 = vunpack.c.l.b16 %v34
  %v152 = vunpack.c.l.b16 %v35
  %v153 = vunpack.c.l.b16 %v36
  %v154 = vunpack.c.l.b16 %v37
  %v155 = vunpack.c.l.b16 %v38
  %v156 = vunpack.c.l.b16 %v39
  %v157 = vunpack.c.l.b16 %v40
  %v158 = vunpack.c.l.b16 %v41
  %v159 = vunpack.c.l.b16 %v42
  %v160 = vunpack.c.l.b16 %v43
  %v161 = vunpack.c.l.b16 %v44
  %v162 = vunpack.c.l.b16 %v45
  %v163 = vunpack.c.l.b16 %v46
  %v164 = vunpack.c.l.b16 %v47
  %v165 = vpack.c.b16 %v139, %v138
  %v166 = vpack.c.b16 %v141, %v140
  %v167 = vpack.c.b16 %v143, %v142
  %v168 = vpack.c.b16 %v145, %v144
  %v169 = vpack.c.b16 %v147, %v146
  %v170 = vpack.c.b16 %v149, %v148
  %v171 = vpack.c.b16 %v151, %v150
  %v172 = vpack.c.b16 %v153, %v152
  %v173 = vpack.c.b16 %v155, %v154
  %v174 = vpack.c.b16 %v157, %v156
  %v175 = vpack.c.b16 %v159, %v158
  %v176 = vpack.c.b16 %v161, %v160
  %v177 = vpack.c.b16 %v163, %v162
  %v178 = vpack.c.b16 %v164, %v164
  %vm192 = vcmask 719872
  %v194 = vsel %vm192, %v103, 0
  %v197 = vsel %vm192, %v105, 0
  %v200 = vsel %vm192, %v107, 0
  %vm202 = vcmask 1043456
  %v204 = vsel %vm202, %v178, 0
  %206 = vmatprep.subr.bf16.mxu0 0
  %207 = vmatpush1.bf16.msra.mxu0 %v165
  %208 = vmatprep.subr.bf16.mxu0 0
  %209 = vmatpush1.bf16.msra.mxu0 %v166
  %210 = vmatprep.subr.bf16.mxu0 0
  %211 = vmatpush1.bf16.msra.mxu0 %v167
  %212 = vmatprep.subr.bf16.mxu0 0
  %213 = vmatpush1.bf16.msra.mxu0 %v168
  %214 = vmatprep.subr.bf16.mxu0 0
  %215 = vmatpush1.bf16.msra.mxu0 %v169
  %216 = vmatprep.subr.bf16.mxu0 0
  %217 = vmatpush1.bf16.msra.mxu0 %v170
  %218 = vmatprep.subr.bf16.mxu0 0
  %219 = vmatpush1.bf16.msra.mxu0 %v171
  %220 = vmatprep.subr.bf16.mxu0 0
  %221 = vmatpush1.bf16.msra.mxu0 %v172
  %222 = vmatprep.subr.bf16.mxu0 0
  %223 = vmatpush1.bf16.msra.mxu0 %v173
  %224 = vmatprep.subr.bf16.mxu0 0
  %225 = vmatpush1.bf16.msra.mxu0 %v174
  %226 = vmatprep.subr.bf16.mxu0 0
  %227 = vmatpush1.bf16.msra.mxu0 %v175
  %228 = vmatprep.subr.bf16.mxu0 0
  %229 = vmatpush1.bf16.msra.mxu0 %v176
  %230 = vmatprep.subr.bf16.mxu0 0
  %231 = vmatpush1.bf16.msra.mxu0 %v177
  %232 = vmatprep.subr.bf16.mxu0 0
  %233 = vmatpush1.bf16.msra.mxu0 %v204
  %234 = vmatprep.subr.bf16.mxu0 0
  %235 = vmatpush1.bf16.msra.mxu0 0
  %236 = vmatprep.subr.bf16.mxu0 0
  %237 = vmatpush1.bf16.msra.mxu0 0
  %238 = vmatprep.mubr.bf16.mxu0 %v194
  %239 = vmatmul.mubr.bf16.gmra.mrb[0].mxu0 %v102
  %v240 = vpop.f32.mrb[0].mxu0
  %v241 = vadd.f32 %v57, %v240
  %v242 = vpop.f32.mrb[0].mxu0
  %v243 = vpop.f32.mrb[0].mxu0
  %v244 = vadd.f32 %v62, %v243
  %v245 = vpop.f32.mrb[0].mxu0
  %246 = vmatprep.mubr.bf16.mxu0 %v197
  %247 = vmatmul.mubr.bf16.gmra.mrb[0].mxu0 %v104
  %v248 = vpop.f32.mrb[0].mxu0
  %v249 = vadd.f32 %v67, %v248
  %v250 = vpop.f32.mrb[0].mxu0
  %v251 = vpop.f32.mrb[0].mxu0
  %v252 = vadd.f32 %v72, %v251
  %v253 = vpop.f32.mrb[0].mxu0
  %254 = vmatprep.mubr.bf16.mxu0 %v200
  %255 = vmatmul.mubr.bf16.gmra.mrb[0].mxu0 %v106
  %v256 = vpop.f32.mrb[0].mxu0
  %v257 = vadd.f32 %v77, %v256
  %v258 = vpop.f32.mrb[0].mxu0
  %v259 = vpop.f32.mrb[0].mxu0
  %v260 = vadd.f32 %v82, %v259
  %v261 = vpop.f32.mrb[0].mxu0
  %262 = vdwg.mxu0
  %v263 = vmax.f32 %v241, 0.0
  %v264 = vmax.f32 %v244, 0.0
  %v265 = vmax.f32 %v249, 0.0
  %v266 = vmax.f32 %v252, 0.0
  %v267 = vmax.f32 %v257, 0.0
  %v268 = vmax.f32 %v260, 0.0
  %v269 = vpack.c.bf16 %v264, %v263
  %v270 = vpack.c.bf16 %v266, %v265
  %v271 = vpack.c.bf16 %v268, %v267
  %v275 = vunpack.c.l.b16 %v269
  %v276 = vunpack.c.h.b16 %v269
  %v277 = vunpack.c.l.b16 %v270
  %v278 = vunpack.c.h.b16 %v270
  %v279 = vunpack.c.l.b16 %v271
  %v280 = vunpack.c.h.b16 %v271
  %v281 = vpack.c.b16 %v275, %v275
  %v282 = vpack.c.b16 %v276, %v276
  %v283 = vpack.c.b16 %v277, %v277
  %v284 = vpack.c.b16 %v278, %v278
  %v285 = vpack.c.b16 %v279, %v279
  %v286 = vpack.c.b16 %v280, %v280
  %293 = vst [vmem:[%s3] sm:$0xf] %v281
  %294 = vst [vmem:[%s3 + $0x4] sm:$0xf] %v282
  %295 = vst [vmem:[%s3 + $0x8] sm:$0xf] %v283
  %296 = vst [vmem:[%s3 + $0xc] sm:$0xf] %v284
  %297 = vst [vmem:[%s3 + $0x10] sm:$0xf] %v285
  %298 = vst [vmem:[%s3 + $0x14] sm:$0xf] %v286
  // Predicated region
  $region14: #{autoencoder_forward.14} parent=0 // pred_check
    _
  $region15: #{autoencoder_forward.14} parent=0 // pred_check_branch
    %300 = sbr.rel (0) target = $region17
  $region16: #{autoencoder_forward.14} parent=0 // pred_region
    _
  $region17: #{autoencoder_forward.14} parent=0 // pred_fallthru
    _
  // Predicated region
  $region18: #{autoencoder_forward.14} parent=0 // pred_check
    _
  $region19: #{autoencoder_forward.14} parent=0 // pred_check_branch
    %302 = sbr.rel (0) target = $region21
  $region20: #{autoencoder_forward.14} parent=0 // pred_region
    _
  $region21: #{autoencoder_forward.14} parent=0 // pred_fallthru
    _

// kernel: autoencoder_forward.15
$region0: #{autoencoder_forward.15}
  #allocation0 [shape = 'u32[]', space=smem, size = 0x4, offset = 0x4, fixed_abs, tag = 'smem constant byte address 0x4 - core index']
  #allocation1 [shape = 'u32[144,128]{1,0:T(1,128)}', space=vmem, size = 0x12000, scoped, tag = 'internal scratch']
  %s0 = inlined_call_operand.vmem [shape: bf16[12,108], index: 0, kind: input, shape index: {}]
  %s1 = inlined_call_operand.vmem [shape: bf16[108,512], index: 1, kind: input, shape index: {}]
  %s2 = inlined_call_operand.vmem [shape: f32[12,1], index: 2, kind: input, shape index: {}]
  %s3 = inlined_call_operand.vmem [shape: f32[12,512], index: 3, kind: output, shape index: {}]
  %s4 = sld [smem:[#allocation0]]
  $region22: #{autoencoder_forward.15} parent=0
    _
  %s6 = ssub.s32 1, %s4
  %s7 = scalar_select 0, %s6, %s4
  // Predicated region
  $region2: #{autoencoder_forward.15} parent=0 // pred_check
    _
  $region3: #{autoencoder_forward.15} parent=0 // pred_check_branch
    %9 = sbr.rel (0) target = $region5
  $region4: #{autoencoder_forward.15} parent=0 // pred_region
    _
  $region5: #{autoencoder_forward.15} parent=0 // pred_fallthru
    _
  // Predicated region
  $region6: #{autoencoder_forward.15} parent=0 // pred_check
    _
  $region7: #{autoencoder_forward.15} parent=0 // pred_check_branch
    %11 = sbr.rel (0) target = $region9
  $region8: #{autoencoder_forward.15} parent=0 // pred_region
    _
  $region9: #{autoencoder_forward.15} parent=0 // pred_fallthru
    _
  // Predicated region
  $region10: #{autoencoder_forward.15} parent=0 // pred_check
    _
  $region11: #{autoencoder_forward.15} parent=0 // pred_check_branch
    %13 = sbr.rel (0) target = $region13
  $region12: #{autoencoder_forward.15} parent=0 // pred_region
    _
  $region13: #{autoencoder_forward.15} parent=0 // pred_fallthru
    _
  %v15 = vld [vmem:[%s0] sm:$0xf]
  %v16 = vld [vmem:[%s0 + $0x4] sm:$0x3]
  %v17 = vld [vmem:[%s1] sm:$0xff]
  %v18 = vld [vmem:[%s1 + $0x8] sm:$0xff]
  %v19 = vld [vmem:[%s1 + $0x10] sm:$0xff]
  %v20 = vld [vmem:[%s1 + $0x18] sm:$0xff]
  %v21 = vld [vmem:[%s1 + $0x20] sm:$0xff]
  %v22 = vld [vmem:[%s1 + $0x28] sm:$0xff]
  %v23 = vld [vmem:[%s1 + $0x30] sm:$0xff]
  %v24 = vld [vmem:[%s1 + $0x38] sm:$0xff]
  %v25 = vld [vmem:[%s1 + $0x40] sm:$0xff]
  %v26 = vld [vmem:[%s1 + $0x48] sm:$0xff]
  %v27 = vld [vmem:[%s1 + $0x50] sm:$0xff]
  %v28 = vld [vmem:[%s1 + $0x58] sm:$0xff]
  %v29 = vld [vmem:[%s1 + $0x60] sm:$0xff]
  %v30 = vld [vmem:[%s1 + $0x68] sm:$0xff]
  %v31 = vld [vmem:[%s1 + $0x70] sm:$0xff]
  %v32 = vld [vmem:[%s1 + $0x78] sm:$0xff]
  %v33 = vld [vmem:[%s1 + $0x80] sm:$0xff]
  %v34 = vld [vmem:[%s1 + $0x88] sm:$0xff]
  %v35 = vld [vmem:[%s1 + $0x90] sm:$0xff]
  %v36 = vld [vmem:[%s1 + $0x98] sm:$0xff]
  %v37 = vld [vmem:[%s1 + $0xa0] sm:$0xff]
  %v38 = vld [vmem:[%s1 + $0xa8] sm:$0xff]
  %v39 = vld [vmem:[%s1 + $0xb0] sm:$0xff]
  %v40 = vld [vmem:[%s1 + $0xb8] sm:$0xff]
  %v41 = vld [vmem:[%s1 + $0xc0] sm:$0xff]
  %v42 = vld [vmem:[%s1 + $0xc8] sm:$0xff]
  %v43 = vld [vmem:[%s1 + $0xd0] sm:$0x33]
  %v44 = vld [vmem:[%s1 + $0xd8] sm:$0x33]
  %v45 = vld [vmem:[%s2] sm:$0xff]
  %v46 = vld [vmem:[%s2 + $0x8] sm:$0xf]
  %48 = vset.pattern.permute.xlu0 0
  %49 = vperm.xlu0 %48, %v45
  %v50 = vpop.permute.xlu0 %49
  %53 = vset.pattern.permute.xlu0 0
  %54 = vperm.xlu0 %53, %v46
  %v55 = vpop.permute.xlu0 %54
  %v59 = vunpack.c.l.b16 %v15
  %v60 = vunpack.c.l.b16 %v16
  %v61 = vpack.c.b16 %v60, %v59
  %v90 = vunpack.c.l.b16 %v17
  %v91 = vunpack.c.h.b16 %v17
  %v92 = vunpack.c.l.b16 %v18
  %v93 = vunpack.c.h.b16 %v18
  %v94 = vunpack.c.l.b16 %v19
  %v95 = vunpack.c.h.b16 %v19
  %v96 = vunpack.c.l.b16 %v20
  %v97 = vunpack.c.h.b16 %v20
  %v98 = vunpack.c.l.b16 %v21
  %v99 = vunpack.c.h.b16 %v21
  %v100 = vunpack.c.l.b16 %v22
  %v101 = vunpack.c.h.b16 %v22
  %v102 = vunpack.c.l.b16 %v23
  %v103 = vunpack.c.h.b16 %v23
  %v104 = vunpack.c.l.b16 %v24
  %v105 = vunpack.c.h.b16 %v24
  %v106 = vunpack.c.l.b16 %v25
  %v107 = vunpack.c.h.b16 %v25
  %v108 = vunpack.c.l.b16 %v26
  %v109 = vunpack.c.h.b16 %v26
  %v110 = vunpack.c.l.b16 %v27
  %v111 = vunpack.c.h.b16 %v27
  %v112 = vunpack.c.l.b16 %v28
  %v113 = vunpack.c.h.b16 %v28
  %v114 = vunpack.c.l.b16 %v29
  %v115 = vunpack.c.h.b16 %v29
  %v116 = vunpack.c.l.b16 %v30
  %v117 = vunpack.c.h.b16 %v30
  %v118 = vunpack.c.l.b16 %v31
  %v119 = vunpack.c.h.b16 %v31
  %v120 = vunpack.c.l.b16 %v32
  %v121 = vunpack.c.h.b16 %v32
  %v122 = vunpack.c.l.b16 %v33
  %v123 = vunpack.c.h.b16 %v33
  %v124 = vunpack.c.l.b16 %v34
  %v125 = vunpack.c.h.b16 %v34
  %v126 = vunpack.c.l.b16 %v35
  %v127 = vunpack.c.h.b16 %v35
  %v128 = vunpack.c.l.b16 %v36
  %v129 = vunpack.c.h.b16 %v36
  %v130 = vunpack.c.l.b16 %v37
  %v131 = vunpack.c.h.b16 %v37
  %v132 = vunpack.c.l.b16 %v38
  %v133 = vunpack.c.h.b16 %v38
  %v134 = vunpack.c.l.b16 %v39
  %v135 = vunpack.c.h.b16 %v39
  %v136 = vunpack.c.l.b16 %v40
  %v137 = vunpack.c.h.b16 %v40
  %v138 = vunpack.c.l.b16 %v41
  %v139 = vunpack.c.h.b16 %v41
  %v140 = vunpack.c.l.b16 %v42
  %v141 = vunpack.c.h.b16 %v42
  %v142 = vunpack.c.l.b16 %v43
  %v143 = vunpack.c.h.b16 %v43
  %v144 = vunpack.c.l.b16 %v44
  %v145 = vunpack.c.h.b16 %v44
  %v146 = vpack.c.b16 %v94, %v90
  %v147 = vpack.c.b16 %v95, %v91
  %v148 = vpack.c.b16 %v96, %v92
  %v149 = vpack.c.b16 %v97, %v93
  %v150 = vpack.c.b16 %v102, %v98
  %v151 = vpack.c.b16 %v103, %v99
  %v152 = vpack.c.b16 %v104, %v100
  %v153 = vpack.c.b16 %v105, %v101
  %v154 = vpack.c.b16 %v110, %v106
  %v155 = vpack.c.b16 %v111, %v107
  %v156 = vpack.c.b16 %v112, %v108
  %v157 = vpack.c.b16 %v113, %v109
  %v158 = vpack.c.b16 %v118, %v114
  %v159 = vpack.c.b16 %v119, %v115
  %v160 = vpack.c.b16 %v120, %v116
  %v161 = vpack.c.b16 %v121, %v117
  %v162 = vpack.c.b16 %v126, %v122
  %v163 = vpack.c.b16 %v127, %v123
  %v164 = vpack.c.b16 %v128, %v124
  %v165 = vpack.c.b16 %v129, %v125
  %v166 = vpack.c.b16 %v134, %v130
  %v167 = vpack.c.b16 %v135, %v131
  %v168 = vpack.c.b16 %v136, %v132
  %v169 = vpack.c.b16 %v137, %v133
  %v170 = vpack.c.b16 %v142, %v138
  %v171 = vpack.c.b16 %v143, %v139
  %v172 = vpack.c.b16 %v144, %v140
  %v173 = vpack.c.b16 %v145, %v141
  %vm198 = vcmask 883712
  %v200 = vsel %vm198, %v61, 0
  %vm202 = vcmask 1045504
  %v204 = vsel %vm202, %v170, 0
  %v207 = vsel %vm202, %v171, 0
  %v210 = vsel %vm202, %v172, 0
  %v213 = vsel %vm202, %v173, 0
  %215 = vmatprep.subr.bf16.mxu0 %v147
  %216 = vmatpush1.bf16.msra.mxu0 %v146
  %217 = vmatprep.subr.bf16.mxu0 %v151
  %218 = vmatpush1.bf16.msra.mxu0 %v150
  %219 = vmatprep.subr.bf16.mxu0 %v155
  %220 = vmatpush1.bf16.msra.mxu0 %v154
  %221 = vmatprep.subr.bf16.mxu0 %v159
  %222 = vmatpush1.bf16.msra.mxu0 %v158
  %223 = vmatprep.subr.bf16.mxu0 %v163
  %224 = vmatpush1.bf16.msra.mxu0 %v162
  %225 = vmatprep.subr.bf16.mxu0 %v167
  %226 = vmatpush1.bf16.msra.mxu0 %v166
  %227 = vmatprep.subr.bf16.mxu0 %v207
  %228 = vmatpush1.bf16.msra.mxu0 %v204
  %229 = vmatprep.subr.bf16.mxu0 0
  %230 = vmatpush1.bf16.msra.mxu0 0
  %231 = vmatprep.subr.bf16.mxu0 0
  %232 = vmatpush1.bf16.msra.mxu0 0
  %233 = vmatprep.subr.bf16.mxu0 0
  %234 = vmatpush1.bf16.msra.mxu0 0
  %235 = vmatprep.subr.bf16.mxu0 0
  %236 = vmatpush1.bf16.msra.mxu0 0
  %237 = vmatprep.subr.bf16.mxu0 0
  %238 = vmatpush1.bf16.msra.mxu0 0
  %239 = vmatprep.subr.bf16.mxu0 0
  %240 = vmatpush1.bf16.msra.mxu0 0
  %241 = vmatprep.subr.bf16.mxu0 0
  %242 = vmatpush1.bf16.msra.mxu0 0
  %243 = vmatprep.subr.bf16.mxu0 0
  %244 = vmatpush1.bf16.msra.mxu0 0
  %245 = vmatprep.subr.bf16.mxu0 0
  %246 = vmatpush1.bf16.msra.mxu0 0
  %247 = vmatprep.mubr.bf16.mxu0 0
  %248 = vmatmul.mubr.bf16.gmra.mrb[0].mxu0 %v200
  %v249 = vpop.f32.mrb[0].mxu0
  %v250 = vadd.f32 %v50, %v249
  %v251 = vpop.f32.mrb[0].mxu0
  %v252 = vadd.f32 %v50, %v251
  %v253 = vpop.f32.mrb[0].mxu0
  %v254 = vadd.f32 %v55, %v253
  %v255 = vpop.f32.mrb[0].mxu0
  %v256 = vadd.f32 %v55, %v255
  %257 = vdwg.mxu0
  %258 = vmatprep.subr.bf16.mxu0 %v149
  %259 = vmatpush1.bf16.msra.mxu0 %v148
  %260 = vmatprep.subr.bf16.mxu0 %v153
  %261 = vmatpush1.bf16.msra.mxu0 %v152
  %262 = vmatprep.subr.bf16.mxu0 %v157
  %263 = vmatpush1.bf16.msra.mxu0 %v156
  %264 = vmatprep.subr.bf16.mxu0 %v161
  %265 = vmatpush1.bf16.msra.mxu0 %v160
  %266 = vmatprep.subr.bf16.mxu0 %v165
  %267 = vmatpush1.bf16.msra.mxu0 %v164
  %268 = vmatprep.subr.bf16.mxu0 %v169
  %269 = vmatpush1.bf16.msra.mxu0 %v168
  %270 = vmatprep.subr.bf16.mxu0 %v213
  %271 = vmatpush1.bf16.msra.mxu0 %v210
  %272 = vmatprep.subr.bf16.mxu0 0
  %273 = vmatpush1.bf16.msra.mxu0 0
  %274 = vmatprep.subr.bf16.mxu0 0
  %275 = vmatpush1.bf16.msra.mxu0 0
  %276 = vmatprep.subr.bf16.mxu0 0
  %277 = vmatpush1.bf16.msra.mxu0 0
  %278 = vmatprep.subr.bf16.mxu0 0
  %279 = vmatpush1.bf16.msra.mxu0 0
  %280 = vmatprep.subr.bf16.mxu0 0
  %281 = vmatpush1.bf16.msra.mxu0 0
  %282 = vmatprep.subr.bf16.mxu0 0
  %283 = vmatpush1.bf16.msra.mxu0 0
  %284 = vmatprep.subr.bf16.mxu0 0
  %285 = vmatpush1.bf16.msra.mxu0 0
  %286 = vmatprep.subr.bf16.mxu0 0
  %287 = vmatpush1.bf16.msra.mxu0 0
  %288 = vmatprep.subr.bf16.mxu0 0
  %289 = vmatpush1.bf16.msra.mxu0 0
  %290 = vmatprep.mubr.bf16.mxu0 0
  %291 = vmatmul.mubr.bf16.gmra.mrb[0].mxu0 %v200
  %v292 = vpop.f32.mrb[0].mxu0
  %v293 = vadd.f32 %v50, %v292
  %v294 = vpop.f32.mrb[0].mxu0
  %v295 = vadd.f32 %v50, %v294
  %v296 = vpop.f32.mrb[0].mxu0
  %v297 = vadd.f32 %v55, %v296
  %v298 = vpop.f32.mrb[0].mxu0
  %v299 = vadd.f32 %v55, %v298
  %300 = vdwg.mxu0
  %v301 = vxor.u32 %v250, 2147483648
  %v302 = vxor.u32 %v252, 2147483648
  %v303 = vxor.u32 %v293, 2147483648
  %v304 = vxor.u32 %v295, 2147483648
  %v305 = vxor.u32 %v254, 2147483648
  %v306 = vxor.u32 %v256, 2147483648
  %v307 = vxor.u32 %v297, 2147483648
  %v308 = vxor.u32 %v299, 2147483648
  %v309 = vmul.f32 %v301, 1.442695
  %v310 = vpow.pop %v309
  %v311 = vmul.f32 %v302, 1.442695
  %v312 = vpow.pop %v311
  %v313 = vmul.f32 %v303, 1.442695
  %v314 = vpow.pop %v313
  %v315 = vmul.f32 %v304, 1.442695
  %v316 = vpow.pop %v315
  %v317 = vmul.f32 %v305, 1.442695
  %v318 = vpow.pop %v317
  %v319 = vmul.f32 %v306, 1.442695
  %v320 = vpow.pop %v319
  %v321 = vmul.f32 %v307, 1.442695
  %v322 = vpow.pop %v321
  %v323 = vmul.f32 %v308, 1.442695
  %v324 = vpow.pop %v323
  %v325 = vadd.f32 %v310, 1.0
  %v326 = vadd.f32 %v312, 1.0
  %v327 = vadd.f32 %v314, 1.0
  %v328 = vadd.f32 %v316, 1.0
  %v329 = vadd.f32 %v318, 1.0
  %v330 = vadd.f32 %v320, 1.0
  %v331 = vadd.f32 %v322, 1.0
  %v332 = vadd.f32 %v324, 1.0
  %v333 = vrcp.pop %v325
  %v334 = vmul.f32 1.0, %v333
  %v335 = vrcp.pop %v326
  %v336 = vmul.f32 1.0, %v335
  %v337 = vrcp.pop %v327
  %v338 = vmul.f32 1.0, %v337
  %v339 = vrcp.pop %v328
  %v340 = vmul.f32 1.0, %v339
  %v341 = vrcp.pop %v329
  %v342 = vmul.f32 1.0, %v341
  %v343 = vrcp.pop %v330
  %v344 = vmul.f32 1.0, %v343
  %v345 = vrcp.pop %v331
  %v346 = vmul.f32 1.0, %v345
  %v347 = vrcp.pop %v332
  %v348 = vmul.f32 1.0, %v347
  %349 = vst [vmem:[%s3] sm:$0xff] %v334
  %350 = vst [vmem:[%s3 + $0x8] sm:$0xff] %v336
  %351 = vst [vmem:[%s3 + $0x10] sm:$0xff] %v338
  %352 = vst [vmem:[%s3 + $0x18] sm:$0xff] %v340
  %353 = vst [vmem:[%s3 + $0x20] sm:$0xf] %v342
  %354 = vst [vmem:[%s3 + $0x28] sm:$0xf] %v344
  %355 = vst [vmem:[%s3 + $0x30] sm:$0xf] %v346
  %356 = vst [vmem:[%s3 + $0x38] sm:$0xf] %v348
  // Predicated region
  $region14: #{autoencoder_forward.15} parent=0 // pred_check
    _
  $region15: #{autoencoder_forward.15} parent=0 // pred_check_branch
    %358 = sbr.rel (0) target = $region17
  $region16: #{autoencoder_forward.15} parent=0 // pred_region
    _
  $region17: #{autoencoder_forward.15} parent=0 // pred_fallthru
    _
  // Predicated region
  $region18: #{autoencoder_forward.15} parent=0 // pred_check
    _
  $region19: #{autoencoder_forward.15} parent=0 // pred_check_branch
    %360 = sbr.rel (0) target = $region21
  $region20: #{autoencoder_forward.15} parent=0 // pred_region
    _
  $region21: #{autoencoder_forward.15} parent=0 // pred_fallthru
    _

</llo_original>
